<compile_context>
chip_gen: v7x
topology: tpu7x:2x2x1
jax: 0.10.0
libtpu: 0.0.40
codegen_flags: <defaults>
</compile_context>

<pallas_src>
import functools
import math

import jax
import jax.numpy as jnp
from jax import lax
from jax.experimental import pallas as pl
from jax.experimental.pallas import tpu as pltpu

# ----------------------------- config (small, synthetic) -----------------------------
B, S, H, NH, V, L = 2, 8, 32, 4, 64, 2      # batch, seq, hidden, heads, padded vocab, layers
DH = H // NH                                 # head dim
FFN = 4 * H                                  # MLP intermediate
EPS = 1e-5
W_DTYPE = jnp.bfloat16                       # weights on the MXU path
A_DTYPE = jnp.bfloat16                       # activations between kernels
LOGITS_DTYPE = jnp.float32                   # TODO(synk): bf16 halves the (B*S,V) HBM writeback

# tile targets (shrunk automatically to fit / divide the toy shapes)
TM_TGT = 256          # row tiles (MLP / logits)
TQ_TGT = 256          # attention q-row tile
TKV_TGT = 512         # attention kv tile
TF_TGT = 512          # FFN tile
TV_TGT = 512          # vocab tile
LANE_QUANTA = (256, 128, 8)   # prefer 256-wide lanes for v6e/v7x MXU, fall back to 128/8
ROW_QUANTA = (8,)


def _vmem_limit_bytes():
    """Per-generation scoped-VMEM budget: ~3/4 of physical, capped at 100 MiB."""
    cap = 128 * 1024 * 1024
    try:
        info = pltpu.get_tpu_info()
        cap = int(getattr(info, "vmem_capacity_bytes", cap) or cap)
    except Exception:
        pass
    return max(32 * 1024 * 1024, min(cap * 3 // 4, 100 * 1024 * 1024))


VMEM_LIMIT = _vmem_limit_bytes()


def _pick_tile(dim, target, quanta=ROW_QUANTA):
    """Largest tile <= target that divides `dim` and is a multiple of one of `quanta`
    (tried in order); falls back to the full dim (full-extent blocks are always legal).
    TODO(synk): for awkward real shapes, pad the dim / use cdiv grids with masked edge
    tiles instead of the full-dim fallback (can silently create a VMEM-busting block)."""
    if dim <= target:
        return dim
    for q in quanta:
        t = (target // q) * q
        while t >= q:
            if dim % t == 0:
                return t
            t -= q
    return dim


def _mosaic(dims):
    return pltpu.CompilerParams(dimension_semantics=dims,
                                vmem_limit_bytes=VMEM_LIMIT)


def _layernorm_f32(x, g, b, eps):
    mu = jnp.mean(x, axis=-1, keepdims=True)
    var = jnp.mean(jnp.square(x - mu), axis=-1, keepdims=True)
    return (x - mu) * lax.rsqrt(var + eps) * g + b


# ----------------------------- LN1 -> per-head QKV projection -----------------------------
# grid = (batch, q-row-tile, head); LN computed once per row tile (head==0) into a VMEM
# scratch; q/k/v written directly in head-major (B, NH, S, DH) attention layout.
def _ln_qkv_kernel(x_ref, g_ref, b_ref, wq_ref, wk_ref, wv_ref, bq_ref, bk_ref, bv_ref,
                   q_ref, k_ref, v_ref, xn_ref, *, eps):
    @pl.when(pl.program_id(2) == 0)
    def _():
        x = x_ref[...].astype(jnp.float32)
        xn_ref[...] = _layernorm_f32(x, g_ref[...], b_ref[...], eps).astype(xn_ref.dtype)

    xn = xn_ref[...]
    # TODO(synk): real Megatron fused-QKV checkpoints interleave per-head [NH, 3, DH];
    # synthetic per-head weight slabs here are self-consistent.
    q_ref[0, 0] = (jnp.dot(xn, wq_ref[0], preferred_element_type=jnp.float32)
                   + bq_ref[0]).astype(q_ref.dtype)
    k_ref[0, 0] = (jnp.dot(xn, wk_ref[0], preferred_element_type=jnp.float32)
                   + bk_ref[0]).astype(k_ref.dtype)
    v_ref[0, 0] = (jnp.dot(xn, wv_ref[0], preferred_element_type=jnp.float32)
                   + bv_ref[0]).astype(v_ref.dtype)


def ln_qkv_heads(x2, g, b, w_q, w_k, w_v, b_q, b_k, b_v, *, batch, seq, eps=EPS):
    _, hdim = x2.shape
    nh, _, dh = w_q.shape
    tq = _pick_tile(seq, TQ_TGT, ROW_QUANTA)
    s_blocks = seq // tq
    row_idx = lambda bi, i, h: (bi * s_blocks + i, 0)
    head_idx3 = lambda bi, i, h: (h, 0, 0)
    out_idx = lambda bi, i, h: (bi, h, i, 0)
    out_sds = jax.ShapeDtypeStruct((batch, nh, seq, dh), x2.dtype)
    return pl.pallas_call(
        functools.partial(_ln_qkv_kernel, eps=eps),
        grid=(batch, s_blocks, nh),
        in_specs=[
            pl.BlockSpec((tq, hdim), row_idx),
            pl.BlockSpec((1, hdim), lambda bi, i, h: (0, 0)),
            pl.BlockSpec((1, hdim), lambda bi, i, h: (0, 0)),
            pl.BlockSpec((1, hdim, dh), head_idx3),
            pl.BlockSpec((1, hdim, dh), head_idx3),
            pl.BlockSpec((1, hdim, dh), head_idx3),
            pl.BlockSpec((1, 1, dh), head_idx3),
            pl.BlockSpec((1, 1, dh), head_idx3),
            pl.BlockSpec((1, 1, dh), head_idx3),
        ],
        out_specs=[
            pl.BlockSpec((1, 1, tq, dh), out_idx),
            pl.BlockSpec((1, 1, tq, dh), out_idx),
            pl.BlockSpec((1, 1, tq, dh), out_idx),
        ],
        out_shape=(out_sds, out_sds, out_sds),
        scratch_shapes=[pltpu.VMEM((tq, hdim), x2.dtype)],
        compiler_params=_mosaic(("parallel", "parallel", "arbitrary")),
    )(x2, g, b, w_q, w_k, w_v, b_q, b_k, b_v)


# ----------------------------- flash-style causal self-attention -----------------------------
# grid = (batch, head, q-tile, kv-tile); online softmax with f32 m/l/acc scratch.
def _flash_attn_kernel(q_ref, k_ref, v_ref, o_ref, m_ref, l_ref, acc_ref, *, scale, tq, tk):
    i = pl.program_id(2)
    kv = pl.program_id(3)

    @pl.when(kv == 0)
    def _():
        m_ref[...] = jnp.full_like(m_ref[...], -jnp.inf)
        l_ref[...] = jnp.zeros_like(l_ref)
        acc_ref[...] = jnp.zeros_like(acc_ref)

    q_start = i * tq
    kv_start = kv * tk

    # Skip fully-masked (future-only) kv tiles.
    # TODO(synk): restrict the kv grid per q-tile to also skip their DMA traffic.
    @pl.when(kv_start <= q_start + tq - 1)
    def _():
        q = q_ref[0, 0]
        k = k_ref[0, 0]
        v = v_ref[0, 0]
        s = lax.dot_general(q, k, (((1,), (1,)), ((), ())),
                            preferred_element_type=jnp.float32) * scale
        row = q_start + lax.broadcasted_iota(jnp.int32, (tq, tk), 0)
        col = kv_start + lax.broadcasted_iota(jnp.int32, (tq, tk), 1)
        s = jnp.where(col > row, jnp.finfo(jnp.float32).min, s)   # gpt2_attention_mask_func
        m_prev = m_ref[...]
        m_new = jnp.maximum(m_prev, jnp.max(s, axis=-1, keepdims=True))
        alpha = jnp.exp(m_prev - m_new)
        p = jnp.exp(s - m_new)                                    # exp kept in f32 (EUP)
        l_ref[...] = alpha * l_ref[...] + jnp.sum(p, axis=-1, keepdims=True)
        acc_ref[...] = alpha * acc_ref[...] + jnp.dot(p.astype(v.dtype), v,
                                                      preferred_element_type=jnp.float32)
        m_ref[...] = m_new

    @pl.when(kv == pl.num_programs(3) - 1)
    def _():
        o_ref[0, 0] = (acc_ref[...] *
                       pl.reciprocal(l_ref[...], approx=True)).astype(o_ref.dtype)


def flash_attention(q, k, v):
    batch, nh, seq, dh = q.shape
    tq = _pick_tile(seq, TQ_TGT, ROW_QUANTA)
    tk = _pick_tile(seq, TKV_TGT, ROW_QUANTA)
    return pl.pallas_call(
        functools.partial(_flash_attn_kernel, scale=1.0 / math.sqrt(dh), tq=tq, tk=tk),
        grid=(batch, nh, seq // tq, seq // tk),
        in_specs=[
            pl.BlockSpec((1, 1, tq, dh), lambda b, h, i, kv: (b, h, i, 0)),
            pl.BlockSpec((1, 1, tk, dh), lambda b, h, i, kv: (b, h, kv, 0)),
            pl.BlockSpec((1, 1, tk, dh), lambda b, h, i, kv: (b, h, kv, 0)),
        ],
        out_specs=pl.BlockSpec((1, 1, tq, dh), lambda b, h, i, kv: (b, h, i, 0)),
        out_shape=jax.ShapeDtypeStruct((batch, nh, seq, dh), q.dtype),
        scratch_shapes=[pltpu.VMEM((tq, 1), jnp.float32),
                        pltpu.VMEM((tq, 1), jnp.float32),
                        pltpu.VMEM((tq, dh), jnp.float32)],
        compiler_params=_mosaic(("parallel", "parallel", "parallel", "arbitrary")),
    )(q, k, v)


# ----------------------------- out-projection: head merge + bias + residual -----------------------------
# grid = (batch, q-row-tile, head); heads are the reduction axis into an f32 (tq, H)
# accumulator -> one lane-dense (tq, H) store, no (B,NH,S,DH)->(B,S,H) relayout pass.
def _outproj_kernel(ctx_ref, w_ref, bias_ref, res_ref, o_ref, acc_ref):
    h = pl.program_id(2)

    @pl.when(h == 0)
    def _():
        acc_ref[...] = jnp.zeros_like(acc_ref)

    acc_ref[...] += jnp.dot(ctx_ref[0, 0], w_ref[0], preferred_element_type=jnp.float32)

    @pl.when(h == pl.num_programs(2) - 1)
    def _():
        o_ref[...] = (acc_ref[...] + bias_ref[...]
                      + res_ref[...].astype(jnp.float32)).astype(o_ref.dtype)


def outproj_headmerge_residual(ctx, w_o, b_o, res, *, batch, seq):
    nh, dh, hdim = w_o.shape
    tq = _pick_tile(seq, TQ_TGT, ROW_QUANTA)
    s_blocks = seq // tq
    row_idx = lambda bi, i, h: (bi * s_blocks + i, 0)
    return pl.pallas_call(
        _outproj_kernel,
        grid=(batch, s_blocks, nh),
        in_specs=[
            pl.BlockSpec((1, 1, tq, dh), lambda bi, i, h: (bi, h, i, 0)),
            pl.BlockSpec((1, dh, hdim), lambda bi, i, h: (h, 0, 0)),
            pl.BlockSpec((1, hdim), lambda bi, i, h: (0, 0)),
            pl.BlockSpec((tq, hdim), row_idx),
        ],
        out_specs=pl.BlockSpec((tq, hdim), row_idx),
        out_shape=jax.ShapeDtypeStruct((batch * seq, hdim), res.dtype),
        scratch_shapes=[pltpu.VMEM((tq, hdim), jnp.float32)],
        compiler_params=_mosaic(("parallel", "parallel", "arbitrary")),
    )(ctx, w_o, b_o, res)


# ----------------------------- fused MLP: LN2 -> FC -> GELU -> proj -> +residual -----------------------------
# LN computed once per row tile (f==0) into a bf16 VMEM scratch and reused across FFN tiles.
def _mlp_fused_kernel(x_ref, g_ref, b_ref, wfc_ref, bfc_ref, wproj_ref, bproj_ref,
                      o_ref, xn_ref, acc_ref, *, eps):
    f = pl.program_id(1)

    @pl.when(f == 0)
    def _():
        x = x_ref[...].astype(jnp.float32)
        xn_ref[...] = _layernorm_f32(x, g_ref[...], b_ref[...], eps).astype(xn_ref.dtype)
        acc_ref[...] = jnp.zeros_like(acc_ref)

    hcur = jnp.dot(xn_ref[...], wfc_ref[...], preferred_element_type=jnp.float32) + bfc_ref[...]
    # TODO(synk): tanh-approx GELU (jax.nn.gelu default); Megatron reference may be erf-based.
    hcur = jax.nn.gelu(hcur).astype(wproj_ref.dtype)
    acc_ref[...] += jnp.dot(hcur, wproj_ref[...], preferred_element_type=jnp.float32)

    @pl.when(f == pl.num_programs(1) - 1)
    def _():
        o_ref[...] = (acc_ref[...] + bproj_ref[...]
                      + x_ref[...].astype(jnp.float32)).astype(o_ref.dtype)


def mlp_fused(x, g, b, w_fc, b_fc, w_proj, b_proj, *, eps=EPS):
    m, k = x.shape                      # k = H
    ffn = w_fc.shape[1]
    tm = _pick_tile(m, TM_TGT, ROW_QUANTA)
    tf = _pick_tile(ffn, TF_TGT, LANE_QUANTA)   # FFN tiled so weight slabs stay in VMEM budget
    return pl.pallas_call(
        functools.partial(_mlp_fused_kernel, eps=eps),
        grid=(m // tm, ffn // tf),
        in_specs=[
            pl.BlockSpec((tm, k), lambda i, f: (i, 0)),
            pl.BlockSpec((1, k), lambda i, f: (0, 0)),
            pl.BlockSpec((1, k), lambda i, f: (0, 0)),
            pl.BlockSpec((k, tf), lambda i, f: (0, f)),
            pl.BlockSpec((1, tf), lambda i, f: (0, f)),
            pl.BlockSpec((tf, k), lambda i, f: (f, 0)),
            pl.BlockSpec((1, k), lambda i, f: (0, 0)),
        ],
        out_specs=pl.BlockSpec((tm, k), lambda i, f: (i, 0)),
        out_shape=jax.ShapeDtypeStruct((m, k), x.dtype),
        scratch_shapes=[pltpu.VMEM((tm, k), x.dtype),
                        pltpu.VMEM((tm, k), jnp.float32)],
        compiler_params=_mosaic(("parallel", "arbitrary")),
    )(x, g, b, w_fc, b_fc, w_proj, b_proj)


# ----------------------------- final LN + tied-embedding logits (wte kept as (V, H)) ----------------
# LN computed once per row tile (j==0) and reused across all vocab tiles.
def _ln_logits_kernel(x_ref, g_ref, b_ref, wte_ref, o_ref, xn_ref, *, eps):
    @pl.when(pl.program_id(1) == 0)
    def _():
        x = x_ref[...].astype(jnp.float32)
        xn_ref[...] = _layernorm_f32(x, g_ref[...], b_ref[...], eps).astype(xn_ref.dtype)

    # contract on H: xn @ wte^T (trans_b); no runtime wte.T materialization.
    o_ref[...] = lax.dot_general(
        xn_ref[...], wte_ref[...], (((1,), (1,)), ((), ())),
        preferred_element_type=jnp.float32).astype(o_ref.dtype)


def ln_logits(x, g, b, wte, *, eps=EPS):
    m, k = x.shape
    v = wte.shape[0]
    tm = _pick_tile(m, TM_TGT, ROW_QUANTA)
    tv = _pick_tile(v, TV_TGT, LANE_QUANTA)        # vocab axis tiled; (m, V) never sits in VMEM
    return pl.pallas_call(
        functools.partial(_ln_logits_kernel, eps=eps),
        grid=(m // tm, v // tv),
        in_specs=[
            pl.BlockSpec((tm, k), lambda i, j: (i, 0)),
            pl.BlockSpec((1, k), lambda i, j: (0, 0)),
            pl.BlockSpec((1, k), lambda i, j: (0, 0)),
            pl.BlockSpec((tv, k), lambda i, j: (j, 0)),
        ],
        out_specs=pl.BlockSpec((tm, tv), lambda i, j: (i, j)),
        out_shape=jax.ShapeDtypeStruct((m, v), LOGITS_DTYPE),
        scratch_shapes=[pltpu.VMEM((tm, k), x.dtype)],
        compiler_params=_mosaic(("parallel", "arbitrary")),
    )(x, g, b, wte)


# ----------------------------- parameters (deterministic, synthetic) -----------------------------
def init_params(key):
    def normal(k_, shape, std=0.02):
        return (std * jax.random.normal(k_, shape, dtype=jnp.float32)).astype(W_DTYPE)

    keys = jax.random.split(key, 2 + 6 * L)
    params = {
        "wte": normal(keys[0], (V, H)),                # word_embeddings_weight (tied)
        "wpe": normal(keys[1], (S, H)),                # position embeddings
        "lnf_g": jnp.ones((1, H), jnp.float32),
        "lnf_b": jnp.zeros((1, H), jnp.float32),
        "layers": [],
    }
    for i in range(L):
        k = keys[2 + 6 * i: 2 + 6 * (i + 1)]
        params["layers"].append({
            "ln1_g": jnp.ones((1, H), jnp.float32), "ln1_b": jnp.zeros((1, H), jnp.float32),
            # per-head QKV weights: (NH, H, DH); biases (NH, 1, DH)
            "w_q": normal(k[0], (NH, H, DH)), "b_q": jnp.zeros((NH, 1, DH), jnp.float32),
            "w_k": normal(k[1], (NH, H, DH)), "b_k": jnp.zeros((NH, 1, DH), jnp.float32),
            "w_v": normal(k[2], (NH, H, DH)), "b_v": jnp.zeros((NH, 1, DH), jnp.float32),
            # out-proj weight split per head: (NH, DH, H)
            "w_o": normal(k[3], (NH, DH, H)), "b_o": jnp.zeros((1, H), jnp.float32),
            "ln2_g": jnp.ones((1, H), jnp.float32), "ln2_b": jnp.zeros((1, H), jnp.float32),
            "w_fc": normal(k[4], (H, FFN)), "b_fc": jnp.zeros((1, FFN), jnp.float32),
            "w_proj": normal(k[5], (FFN, H)), "b_proj": jnp.zeros((1, H), jnp.float32),
        })
    return params


# ----------------------------- GPT2ModelPipe forward -----------------------------
def gpt2_model_pipe_forward(params, tokens):
    b, s = tokens.shape
    # EmbeddingPipe: word-emb gather + position emb (plain-JAX glue).
    # TODO(synk): hidden/attention dropout not applied (inference-mode forward).
    pos_ids = jnp.arange(s)
    h = jnp.take(params["wte"], tokens, axis=0) + params["wpe"][pos_ids][None, :, :]  # (B,S,H)

    # megatron's _pre/_post_transformer_block transposes are pure layout; rows are kept
    # in (B*S, H) order throughout (free reshapes only, numerics unchanged).
    x2 = h.astype(A_DTYPE).reshape(b * s, H)

    for lp in params["layers"]:
        # --- attention sub-block (pre-LN residual) ---
        q, k, v = ln_qkv_heads(x2, lp["ln1_g"], lp["ln1_b"],
                               lp["w_q"], lp["w_k"], lp["w_v"],
                               lp["b_q"], lp["b_k"], lp["b_v"], batch=b, seq=s)
        ctx = flash_attention(q, k, v)                                  # (B, NH, S, DH)
        x2 = outproj_headmerge_residual(ctx, lp["w_o"], lp["b_o"], x2, batch=b, seq=s)

        # --- MLP sub-block: LN2 + FC + GELU + proj + residual, FFN-tiled, one kernel ---
        x2 = mlp_fused(x2, lp["ln2_g"], lp["ln2_b"], lp["w_fc"], lp["b_fc"],
                       lp["w_proj"], lp["b_proj"])

    # NormPipe + _logits_helper / parallel_lm_logits with tied word_embeddings_weight
    # (parallel_output=True, single device -> plain matmul, no gather).
    logits = ln_logits(x2, params["lnf_g"], params["lnf_b"], params["wte"])   # (B*S, V)
    return logits.reshape(b, s, V)


# ----------------------------- main -----------------------------
if __name__ == "__main__":
    key = jax.random.PRNGKey(0)
    pkey, tkey = jax.random.split(key)
    params = init_params(pkey)
    tokens = jax.random.randint(tkey, (B, S), 0, V, dtype=jnp.int32)

    logits = jax.jit(gpt2_model_pipe_forward)(params, tokens)
    jax.block_until_ready(logits)

    assert logits.shape == (B, S, V), logits.shape
    assert bool(jnp.all(jnp.isfinite(logits))), "non-finite logits"
    print("KERNEL_OK")
</pallas_src>

<mosaic_0001>
module attributes {stable_mosaic.version = 11 : i64} {
  func.func @_outproj_kernel(%arg0: i32, %arg1: i32, %arg2: i32, %arg3: memref<1x1x8x8xbf16, #tpu.memory_space<vmem>>, %arg4: memref<1x8x32xbf16, #tpu.memory_space<vmem>>, %arg5: memref<1x32xf32, #tpu.memory_space<vmem>>, %arg6: memref<8x32xbf16, #tpu.memory_space<vmem>>, %arg7: memref<8x32xbf16, #tpu.memory_space<vmem>>, %arg8: memref<8x32xf32, #tpu.memory_space<vmem>>) attributes {dimension_semantics = [#tpu.dimension_semantics<parallel>, #tpu.dimension_semantics<parallel>, #tpu.dimension_semantics<arbitrary>], iteration_bounds = array<i64: 2, 1, 4>, scalar_prefetch = 0 : i64, scratch_operands = 1 : i64, tpu.core_type = #tpu.core_type<tc>, window_params = [{transform_indices = @transform_0, window_bounds = array<i64: 1, 1, 8, 8>}, {transform_indices = @transform_1, window_bounds = array<i64: 1, 8, 32>}, {pipeline_mode = #tpu.pipeline_mode<synchronous>, transform_indices = @transform_2, window_bounds = array<i64: 1, 32>}, {transform_indices = @transform_3, window_bounds = array<i64: 8, 32>}, {transform_indices = @transform_4, window_bounds = array<i64: 8, 32>}]} {
    %c0_i32 = arith.constant 0 : i32
    %0 = arith.cmpi eq, %arg2, %c0_i32 : i32
    %1 = arith.extui %0 : i1 to i32
    %c0_i32_0 = arith.constant 0 : i32
    %2 = arith.cmpi ne, %1, %c0_i32_0 : i32
    scf.if %2 {
      %cst_12 = arith.constant 0.000000e+00 : f32
      %14 = vector.broadcast %cst_12 : f32 to vector<8x32xf32>
      %c0_13 = arith.constant 0 : index
      %c0_14 = arith.constant 0 : index
      %15 = vector.load %arg8[%c0_13, %c0_14] : memref<8x32xf32, #tpu.memory_space<vmem>>, vector<8x32xf32>
      tpu.vector_store %arg8[%c0_13, %c0_14], %14 {strides = array<i32>} : memref<8x32xf32, #tpu.memory_space<vmem>>, vector<8x32xf32>,
    } else {
    }
    %c0 = arith.constant 0 : index
    %c0_1 = arith.constant 0 : index
    %3 = vector.load %arg8[%c0, %c0_1] : memref<8x32xf32, #tpu.memory_space<vmem>>, vector<8x32xf32>
    %c0_2 = arith.constant 0 : index
    %c0_3 = arith.constant 0 : index
    %c0_4 = arith.constant 0 : index
    %c0_5 = arith.constant 0 : index
    %4 = vector.load %arg3[%c0_2, %c0_3, %c0_4, %c0_5] : memref<1x1x8x8xbf16, #tpu.memory_space<vmem>>, vector<1x1x8x8xbf16>
    %5 = vector.shape_cast %4 : vector<1x1x8x8xbf16> to vector<8x8xbf16>
    %c0_6 = arith.constant 0 : index
    %c0_7 = arith.constant 0 : index
    %c0_8 = arith.constant 0 : index
    %6 = vector.load %arg4[%c0_6, %c0_7, %c0_8] : memref<1x8x32xbf16, #tpu.memory_space<vmem>>, vector<1x8x32xbf16>
    %7 = vector.shape_cast %6 : vector<1x8x32xbf16> to vector<8x32xbf16>
    %cst = arith.constant dense<0.000000e+00> : vector<8x32xf32>
    %8 = tpu.matmul %5, %7, %cst {dimension_numbers = #tpu.dot_dimension_numbers<[1], [0], [0], [1], [0, 0, 1, 1], [], []>} : vector<8x8xbf16>, vector<8x32xbf16>, vector<8x32xf32> -> vector<8x32xf32>
    %9 = arith.addf %3, %8 : vector<8x32xf32>
    %c0_9 = arith.constant 0 : index
    %c0_10 = arith.constant 0 : index
    %10 = vector.load %arg8[%c0_9, %c0_10] : memref<8x32xf32, #tpu.memory_space<vmem>>, vector<8x32xf32>
    tpu.vector_store %arg8[%c0_9, %c0_10], %9 {strides = array<i32>} : memref<8x32xf32, #tpu.memory_space<vmem>>, vector<8x32xf32>,
    %c3_i32 = arith.constant 3 : i32
    %11 = arith.cmpi eq, %arg2, %c3_i32 : i32
    %12 = arith.extui %11 : i1 to i32
    %c0_i32_11 = arith.constant 0 : i32
    %13 = arith.cmpi ne, %12, %c0_i32_11 : i32
    scf.if %13 {
      %c0_12 = arith.constant 0 : index
      %c0_13 = arith.constant 0 : index
      %14 = vector.load %arg8[%c0_12, %c0_13] : memref<8x32xf32, #tpu.memory_space<vmem>>, vector<8x32xf32>
      %c0_14 = arith.constant 0 : index
      %c0_15 = arith.constant 0 : index
      %15 = vector.load %arg5[%c0_14, %c0_15] : memref<1x32xf32, #tpu.memory_space<vmem>>, vector<1x32xf32>
      %16 = vector.broadcast %15 : vector<1x32xf32> to vector<8x32xf32>
      %17 = arith.addf %14, %16 : vector<8x32xf32>
      %c0_16 = arith.constant 0 : index
      %c0_17 = arith.constant 0 : index
      %18 = vector.load %arg6[%c0_16, %c0_17] : memref<8x32xbf16, #tpu.memory_space<vmem>>, vector<8x32xbf16>
      %19 = arith.extf %18 : vector<8x32xbf16> to vector<8x32xf32>
      %20 = arith.addf %17, %19 : vector<8x32xf32>
      %21 = arith.truncf %20 : vector<8x32xf32> to vector<8x32xbf16>
      %c0_18 = arith.constant 0 : index
      %c0_19 = arith.constant 0 : index
      %22 = vector.load %arg7[%c0_18, %c0_19] : memref<8x32xbf16, #tpu.memory_space<vmem>>, vector<8x32xbf16>
      tpu.vector_store %arg7[%c0_18, %c0_19], %21 {strides = array<i32>} : memref<8x32xbf16, #tpu.memory_space<vmem>>, vector<8x32xbf16>,
    } else {
    }
    return
  }
  func.func @transform_0(%arg0: i32, %arg1: i32, %arg2: i32) -> (i32, i32, i32, i32) {
    %c0_i32 = arith.constant 0 : i32
    %c0_i32_0 = arith.constant 0 : i32
    return %arg0, %arg2, %arg1, %c0_i32 : i32, i32, i32, i32
  }
  func.func @transform_1(%arg0: i32, %arg1: i32, %arg2: i32) -> (i32, i32, i32) {
    %c0_i32 = arith.constant 0 : i32
    %c0_i32_0 = arith.constant 0 : i32
    %c0_i32_1 = arith.constant 0 : i32
    return %arg2, %c0_i32, %c0_i32_0 : i32, i32, i32
  }
  func.func @transform_2(%arg0: i32, %arg1: i32, %arg2: i32) -> (i32, i32) {
    %c0_i32 = arith.constant 0 : i32
    %c0_i32_0 = arith.constant 0 : i32
    %c0_i32_1 = arith.constant 0 : i32
    return %c0_i32, %c0_i32_0 : i32, i32
  }
  func.func @transform_3(%arg0: i32, %arg1: i32, %arg2: i32) -> (i32, i32) {
    %c1_i32 = arith.constant 1 : i32
    %0 = arith.muli %arg0, %c1_i32 : i32
    %1 = arith.addi %0, %arg1 : i32
    %c0_i32 = arith.constant 0 : i32
    %c0_i32_0 = arith.constant 0 : i32
    return %1, %c0_i32 : i32, i32
  }
  func.func @transform_4(%arg0: i32, %arg1: i32, %arg2: i32) -> (i32, i32) {
    %c1_i32 = arith.constant 1 : i32
    %0 = arith.muli %arg0, %c1_i32 : i32
    %1 = arith.addi %0, %arg1 : i32
    %c0_i32 = arith.constant 0 : i32
    %c0_i32_0 = arith.constant 0 : i32
    return %1, %c0_i32 : i32, i32
  }
}

module attributes {stable_mosaic.version = 11 : i64} {
  func.func @_flash_attn_kernel(%arg0: i32, %arg1: i32, %arg2: i32, %arg3: i32, %arg4: memref<1x1x8x8xbf16, #tpu.memory_space<vmem>>, %arg5: memref<1x1x8x8xbf16, #tpu.memory_space<vmem>>, %arg6: memref<1x1x8x8xbf16, #tpu.memory_space<vmem>>, %arg7: memref<1x1x8x8xbf16, #tpu.memory_space<vmem>>, %arg8: memref<8x1xf32, #tpu.memory_space<vmem>>, %arg9: memref<8x1xf32, #tpu.memory_space<vmem>>, %arg10: memref<8x8xf32, #tpu.memory_space<vmem>>) attributes {dimension_semantics = [#tpu.dimension_semantics<parallel>, #tpu.dimension_semantics<parallel>, #tpu.dimension_semantics<parallel>, #tpu.dimension_semantics<arbitrary>], iteration_bounds = array<i64: 2, 4, 1, 1>, scalar_prefetch = 0 : i64, scratch_operands = 3 : i64, tpu.core_type = #tpu.core_type<tc>, window_params = [{transform_indices = @transform_0, window_bounds = array<i64: 1, 1, 8, 8>}, {transform_indices = @transform_1, window_bounds = array<i64: 1, 1, 8, 8>}, {transform_indices = @transform_2, window_bounds = array<i64: 1, 1, 8, 8>}, {transform_indices = @transform_3, window_bounds = array<i64: 1, 1, 8, 8>}]} {
    %c0_i32 = arith.constant 0 : i32
    %0 = arith.cmpi eq, %arg3, %c0_i32 : i32
    %1 = arith.extui %0 : i1 to i32
    %c0_i32_0 = arith.constant 0 : i32
    %2 = arith.cmpi ne, %1, %c0_i32_0 : i32
    scf.if %2 {
      %cst = arith.constant 0xFF800000 : f32
      %13 = vector.broadcast %cst : f32 to vector<8x1xf32>
      %c0 = arith.constant 0 : index
      %c0_6 = arith.constant 0 : index
      %14 = vector.load %arg8[%c0, %c0_6] : memref<8x1xf32, #tpu.memory_space<vmem>>, vector<8x1xf32>
      tpu.vector_store %arg8[%c0, %c0_6], %13 {strides = array<i32>} : memref<8x1xf32, #tpu.memory_space<vmem>>, vector<8x1xf32>,
      %cst_7 = arith.constant 0.000000e+00 : f32
      %15 = vector.broadcast %cst_7 : f32 to vector<8x1xf32>
      %c0_8 = arith.constant 0 : index
      %c0_9 = arith.constant 0 : index
      %16 = vector.load %arg9[%c0_8, %c0_9] : memref<8x1xf32, #tpu.memory_space<vmem>>, vector<8x1xf32>
      tpu.vector_store %arg9[%c0_8, %c0_9], %15 {strides = array<i32>} : memref<8x1xf32, #tpu.memory_space<vmem>>, vector<8x1xf32>,
      %cst_10 = arith.constant 0.000000e+00 : f32
      %17 = vector.broadcast %cst_10 : f32 to vector<8x8xf32>
      %c0_11 = arith.constant 0 : index
      %c0_12 = arith.constant 0 : index
      %18 = vector.load %arg10[%c0_11, %c0_12] : memref<8x8xf32, #tpu.memory_space<vmem>>, vector<8x8xf32>
      tpu.vector_store %arg10[%c0_11, %c0_12], %17 {strides = array<i32>} : memref<8x8xf32, #tpu.memory_space<vmem>>, vector<8x8xf32>,
    } else {
    }
    %c8_i32 = arith.constant 8 : i32
    %3 = arith.muli %arg2, %c8_i32 : i32
    %c8_i32_1 = arith.constant 8 : i32
    %4 = arith.muli %arg3, %c8_i32_1 : i32
    %c8_i32_2 = arith.constant 8 : i32
    %5 = arith.addi %3, %c8_i32_2 : i32
    %c1_i32 = arith.constant 1 : i32
    %6 = arith.subi %5, %c1_i32 : i32
    %7 = arith.cmpi sle, %4, %6 : i32
    %8 = arith.extui %7 : i1 to i32
    %c0_i32_3 = arith.constant 0 : i32
    %9 = arith.cmpi ne, %8, %c0_i32_3 : i32
    scf.if %9 {
      %c0 = arith.constant 0 : index
      %c0_6 = arith.constant 0 : index
      %c0_7 = arith.constant 0 : index
      %c0_8 = arith.constant 0 : index
      %13 = vector.load %arg4[%c0, %c0_6, %c0_7, %c0_8] : memref<1x1x8x8xbf16, #tpu.memory_space<vmem>>, vector<1x1x8x8xbf16>
      %14 = vector.shape_cast %13 : vector<1x1x8x8xbf16> to vector<8x8xbf16>
      %c0_9 = arith.constant 0 : index
      %c0_10 = arith.constant 0 : index
      %c0_11 = arith.constant 0 : index
      %c0_12 = arith.constant 0 : index
      %15 = vector.load %arg5[%c0_9, %c0_10, %c0_11, %c0_12] : memref<1x1x8x8xbf16, #tpu.memory_space<vmem>>, vector<1x1x8x8xbf16>
      %16 = vector.shape_cast %15 : vector<1x1x8x8xbf16> to vector<8x8xbf16>
      %c0_13 = arith.constant 0 : index
      %c0_14 = arith.constant 0 : index
      %c0_15 = arith.constant 0 : index
      %c0_16 = arith.constant 0 : index
      %17 = vector.load %arg6[%c0_13, %c0_14, %c0_15, %c0_16] : memref<1x1x8x8xbf16, #tpu.memory_space<vmem>>, vector<1x1x8x8xbf16>
      %18 = vector.shape_cast %17 : vector<1x1x8x8xbf16> to vector<8x8xbf16>
      %cst = arith.constant dense<0.000000e+00> : vector<8x8xf32>
      %19 = tpu.matmul %14, %16, %cst {dimension_numbers = #tpu.dot_dimension_numbers<[1], [1], [0], [0], [0, 0, 1, 0], [], []>} : vector<8x8xbf16>, vector<8x8xbf16>, vector<8x8xf32> -> vector<8x8xf32>
      %cst_17 = arith.constant 0.353553385 : f32
      %20 = vector.broadcast %cst_17 : f32 to vector<8x8xf32>
      %21 = arith.mulf %19, %20 : vector<8x8xf32>
      %22 = tpu.iota {dimensions = array<i32: 0>} : vector<8x8xi32>
      %23 = vector.broadcast %3 : i32 to vector<8x8xi32>
      %24 = arith.addi %23, %22 : vector<8x8xi32>
      %25 = tpu.iota {dimensions = array<i32: 1>} : vector<8x8xi32>
      %26 = vector.broadcast %4 : i32 to vector<8x8xi32>
      %27 = arith.addi %26, %25 : vector<8x8xi32>
      %28 = arith.cmpi sgt, %27, %24 : vector<8x8xi32>
      %cst_18 = arith.constant -3.40282347E+38 : f32
      %29 = vector.broadcast %cst_18 : f32 to vector<8x8xf32>
      %30 = arith.select %28, %29, %21 : vector<8x8xi1>, vector<8x8xf32>
      %c0_19 = arith.constant 0 : index
      %c0_20 = arith.constant 0 : index
      %31 = vector.load %arg8[%c0_19, %c0_20] : memref<8x1xf32, #tpu.memory_space<vmem>>, vector<8x1xf32>
      %cst_21 = arith.constant dense<0xFF800000> : vector<8xf32>
      %32 = vector.multi_reduction <maximumf>, %30, %cst_21 [1] : vector<8x8xf32> to vector<8xf32>
      %33 = vector.shape_cast %32 : vector<8xf32> to vector<8x1xf32>
      %34 = arith.maximumf %31, %33 : vector<8x1xf32>
      %35 = arith.subf %31, %34 : vector<8x1xf32>
      %36 = math.exp %35 : vector<8x1xf32>
      %37 = vector.broadcast %34 : vector<8x1xf32> to vector<8x8xf32>
      %38 = arith.subf %30, %37 : vector<8x8xf32>
      %39 = math.exp %38 : vector<8x8xf32>
      %c0_22 = arith.constant 0 : index
      %c0_23 = arith.constant 0 : index
      %40 = vector.load %arg9[%c0_22, %c0_23] : memref<8x1xf32, #tpu.memory_space<vmem>>, vector<8x1xf32>
      %41 = arith.mulf %36, %40 : vector<8x1xf32>
      %cst_24 = arith.constant dense<0.000000e+00> : vector<8xf32>
      %42 = vector.multi_reduction <add>, %39, %cst_24 [1] : vector<8x8xf32> to vector<8xf32>
      %43 = vector.shape_cast %42 : vector<8xf32> to vector<8x1xf32>
      %44 = arith.addf %41, %43 : vector<8x1xf32>
      %c0_25 = arith.constant 0 : index
      %c0_26 = arith.constant 0 : index
      %45 = vector.load %arg9[%c0_25, %c0_26] : memref<8x1xf32, #tpu.memory_space<vmem>>, vector<8x1xf32>
      tpu.vector_store %arg9[%c0_25, %c0_26], %44 {strides = array<i32>} : memref<8x1xf32, #tpu.memory_space<vmem>>, vector<8x1xf32>,
      %c0_27 = arith.constant 0 : index
      %c0_28 = arith.constant 0 : index
      %46 = vector.load %arg10[%c0_27, %c0_28] : memref<8x8xf32, #tpu.memory_space<vmem>>, vector<8x8xf32>
      %47 = vector.broadcast %36 : vector<8x1xf32> to vector<8x8xf32>
      %48 = arith.mulf %47, %46 : vector<8x8xf32>
      %49 = arith.truncf %39 : vector<8x8xf32> to vector<8x8xbf16>
      %cst_29 = arith.constant dense<0.000000e+00> : vector<8x8xf32>
      %50 = tpu.matmul %49, %18, %cst_29 {dimension_numbers = #tpu.dot_dimension_numbers<[1], [0], [0], [1], [0, 0, 1, 1], [], []>} : vector<8x8xbf16>, vector<8x8xbf16>, vector<8x8xf32> -> vector<8x8xf32>
      %51 = arith.addf %48, %50 : vector<8x8xf32>
      %c0_30 = arith.constant 0 : index
      %c0_31 = arith.constant 0 : index
      %52 = vector.load %arg10[%c0_30, %c0_31] : memref<8x8xf32, #tpu.memory_space<vmem>>, vector<8x8xf32>
      tpu.vector_store %arg10[%c0_30, %c0_31], %51 {strides = array<i32>} : memref<8x8xf32, #tpu.memory_space<vmem>>, vector<8x8xf32>,
      %c0_32 = arith.constant 0 : index
      %c0_33 = arith.constant 0 : index
      %53 = vector.load %arg8[%c0_32, %c0_33] : memref<8x1xf32, #tpu.memory_space<vmem>>, vector<8x1xf32>
      tpu.vector_store %arg8[%c0_32, %c0_33], %34 {strides = array<i32>} : memref<8x1xf32, #tpu.memory_space<vmem>>, vector<8x1xf32>,
    } else {
    }
    %c0_i32_4 = arith.constant 0 : i32
    %10 = arith.cmpi eq, %arg3, %c0_i32_4 : i32
    %11 = arith.extui %10 : i1 to i32
    %c0_i32_5 = arith.constant 0 : i32
    %12 = arith.cmpi ne, %11, %c0_i32_5 : i32
    scf.if %12 {
      %c0 = arith.constant 0 : index
      %c0_6 = arith.constant 0 : index
      %13 = vector.load %arg10[%c0, %c0_6] : memref<8x8xf32, #tpu.memory_space<vmem>>, vector<8x8xf32>
      %c0_7 = arith.constant 0 : index
      %c0_8 = arith.constant 0 : index
      %14 = vector.load %arg9[%c0_7, %c0_8] : memref<8x1xf32, #tpu.memory_space<vmem>>, vector<8x1xf32>
      %15 = tpu.reciprocal %14 {approx = true} : vector<8x1xf32> -> vector<8x1xf32>
      %16 = vector.broadcast %15 : vector<8x1xf32> to vector<8x8xf32>
      %17 = arith.mulf %13, %16 : vector<8x8xf32>
      %18 = arith.truncf %17 : vector<8x8xf32> to vector<8x8xbf16>
      %c0_9 = arith.constant 0 : index
      %c0_10 = arith.constant 0 : index
      %c0_11 = arith.constant 0 : index
      %c0_12 = arith.constant 0 : index
      %19 = vector.load %arg7[%c0_9, %c0_10, %c0_11, %c0_12] : memref<1x1x8x8xbf16, #tpu.memory_space<vmem>>, vector<1x1x8x8xbf16>
      %20 = vector.shape_cast %19 : vector<1x1x8x8xbf16> to vector<8x8xbf16>
      %21 = vector.shape_cast %18 : vector<8x8xbf16> to vector<1x1x8x8xbf16>
      tpu.vector_store %arg7[%c0_9, %c0_10, %c0_11, %c0_12], %21 {strides = array<i32>} : memref<1x1x8x8xbf16, #tpu.memory_space<vmem>>, vector<1x1x8x8xbf16>,
    } else {
    }
    return
  }
  func.func @transform_0(%arg0: i32, %arg1: i32, %arg2: i32, %arg3: i32) -> (i32, i32, i32, i32) {
    %c0_i32 = arith.constant 0 : i32
    %c0_i32_0 = arith.constant 0 : i32
    return %arg0, %arg1, %arg2, %c0_i32 : i32, i32, i32, i32
  }
  func.func @transform_1(%arg0: i32, %arg1: i32, %arg2: i32, %arg3: i32) -> (i32, i32, i32, i32) {
    %c0_i32 = arith.constant 0 : i32
    %c0_i32_0 = arith.constant 0 : i32
    return %arg0, %arg1, %arg3, %c0_i32 : i32, i32, i32, i32
  }
  func.func @transform_2(%arg0: i32, %arg1: i32, %arg2: i32, %arg3: i32) -> (i32, i32, i32, i32) {
    %c0_i32 = arith.constant 0 : i32
    %c0_i32_0 = arith.constant 0 : i32
    return %arg0, %arg1, %arg3, %c0_i32 : i32, i32, i32, i32
  }
  func.func @transform_3(%arg0: i32, %arg1: i32, %arg2: i32, %arg3: i32) -> (i32, i32, i32, i32) {
    %c0_i32 = arith.constant 0 : i32
    %c0_i32_0 = arith.constant 0 : i32
    return %arg0, %arg1, %arg2, %c0_i32 : i32, i32, i32, i32
  }
}

module attributes {stable_mosaic.version = 11 : i64} {
  func.func @_ln_qkv_kernel(%arg0: i32, %arg1: i32, %arg2: i32, %arg3: memref<8x32xbf16, #tpu.memory_space<vmem>>, %arg4: memref<1x32xf32, #tpu.memory_space<vmem>>, %arg5: memref<1x32xf32, #tpu.memory_space<vmem>>, %arg6: memref<1x32x8xbf16, #tpu.memory_space<vmem>>, %arg7: memref<1x32x8xbf16, #tpu.memory_space<vmem>>, %arg8: memref<1x32x8xbf16, #tpu.memory_space<vmem>>, %arg9: memref<1x1x8xf32, #tpu.memory_space<vmem>>, %arg10: memref<1x1x8xf32, #tpu.memory_space<vmem>>, %arg11: memref<1x1x8xf32, #tpu.memory_space<vmem>>, %arg12: memref<1x1x8x8xbf16, #tpu.memory_space<vmem>>, %arg13: memref<1x1x8x8xbf16, #tpu.memory_space<vmem>>, %arg14: memref<1x1x8x8xbf16, #tpu.memory_space<vmem>>, %arg15: memref<8x32xbf16, #tpu.memory_space<vmem>>) attributes {dimension_semantics = [#tpu.dimension_semantics<parallel>, #tpu.dimension_semantics<parallel>, #tpu.dimension_semantics<arbitrary>], iteration_bounds = array<i64: 2, 1, 4>, scalar_prefetch = 0 : i64, scratch_operands = 1 : i64, tpu.core_type = #tpu.core_type<tc>, window_params = [{transform_indices = @transform_0, window_bounds = array<i64: 8, 32>}, {pipeline_mode = #tpu.pipeline_mode<synchronous>, transform_indices = @transform_1, window_bounds = array<i64: 1, 32>}, {pipeline_mode = #tpu.pipeline_mode<synchronous>, transform_indices = @transform_2, window_bounds = array<i64: 1, 32>}, {transform_indices = @transform_3, window_bounds = array<i64: 1, 32, 8>}, {transform_indices = @transform_4, window_bounds = array<i64: 1, 32, 8>}, {transform_indices = @transform_5, window_bounds = array<i64: 1, 32, 8>}, {transform_indices = @transform_6, window_bounds = array<i64: 1, 1, 8>}, {transform_indices = @transform_7, window_bounds = array<i64: 1, 1, 8>}, {transform_indices = @transform_8, window_bounds = array<i64: 1, 1, 8>}, {transform_indices = @transform_9, window_bounds = array<i64: 1, 1, 8, 8>}, {transform_indices = @transform_10, window_bounds = array<i64: 1, 1, 8, 8>}, {transform_indices = @transform_11, window_bounds = array<i64: 1, 1, 8, 8>}]} {
    %c0_i32 = arith.constant 0 : i32
    %0 = arith.cmpi eq, %arg2, %c0_i32 : i32
    %1 = arith.extui %0 : i1 to i32
    %c0_i32_0 = arith.constant 0 : i32
    %2 = arith.cmpi ne, %1, %c0_i32_0 : i32
    scf.if %2 {
      %c0_34 = arith.constant 0 : index
      %c0_35 = arith.constant 0 : index
      %37 = vector.load %arg3[%c0_34, %c0_35] : memref<8x32xbf16, #tpu.memory_space<vmem>>, vector<8x32xbf16>
      %38 = arith.extf %37 : vector<8x32xbf16> to vector<8x32xf32>
      %c0_36 = arith.constant 0 : index
      %c0_37 = arith.constant 0 : index
      %39 = vector.load %arg4[%c0_36, %c0_37] : memref<1x32xf32, #tpu.memory_space<vmem>>, vector<1x32xf32>
      %c0_38 = arith.constant 0 : index
      %c0_39 = arith.constant 0 : index
      %40 = vector.load %arg5[%c0_38, %c0_39] : memref<1x32xf32, #tpu.memory_space<vmem>>, vector<1x32xf32>
      %cst_40 = arith.constant dense<0.000000e+00> : vector<8xf32>
      %41 = vector.multi_reduction <add>, %38, %cst_40 [1] : vector<8x32xf32> to vector<8xf32>
      %42 = vector.shape_cast %41 : vector<8xf32> to vector<8x1xf32>
      %cst_41 = arith.constant 3.200000e+01 : f32
      %43 = vector.broadcast %cst_41 : f32 to vector<8x1xf32>
      %44 = arith.divf %42, %43 : vector<8x1xf32>
      %45 = vector.broadcast %44 : vector<8x1xf32> to vector<8x32xf32>
      %46 = arith.subf %38, %45 : vector<8x32xf32>
      %47 = arith.mulf %46, %46 : vector<8x32xf32>
      %cst_42 = arith.constant dense<0.000000e+00> : vector<8xf32>
      %48 = vector.multi_reduction <add>, %47, %cst_42 [1] : vector<8x32xf32> to vector<8xf32>
      %49 = vector.shape_cast %48 : vector<8xf32> to vector<8x1xf32>
      %cst_43 = arith.constant 3.200000e+01 : f32
      %50 = vector.broadcast %cst_43 : f32 to vector<8x1xf32>
      %51 = arith.divf %49, %50 : vector<8x1xf32>
      %52 = vector.broadcast %44 : vector<8x1xf32> to vector<8x32xf32>
      %53 = arith.subf %38, %52 : vector<8x32xf32>
      %cst_44 = arith.constant 9.99999974E-6 : f32
      %54 = vector.broadcast %cst_44 : f32 to vector<8x1xf32>
      %55 = arith.addf %51, %54 : vector<8x1xf32>
      %56 = math.rsqrt %55 : vector<8x1xf32>
      %57 = vector.broadcast %56 : vector<8x1xf32> to vector<8x32xf32>
      %58 = arith.mulf %53, %57 : vector<8x32xf32>
      %59 = vector.broadcast %39 : vector<1x32xf32> to vector<8x32xf32>
      %60 = arith.mulf %58, %59 : vector<8x32xf32>
      %61 = vector.broadcast %40 : vector<1x32xf32> to vector<8x32xf32>
      %62 = arith.addf %60, %61 : vector<8x32xf32>
      %63 = arith.truncf %62 : vector<8x32xf32> to vector<8x32xbf16>
      %c0_45 = arith.constant 0 : index
      %c0_46 = arith.constant 0 : index
      %64 = vector.load %arg15[%c0_45, %c0_46] : memref<8x32xbf16, #tpu.memory_space<vmem>>, vector<8x32xbf16>
      tpu.vector_store %arg15[%c0_45, %c0_46], %63 {strides = array<i32>} : memref<8x32xbf16, #tpu.memory_space<vmem>>, vector<8x32xbf16>,
    } else {
    }
    %c0 = arith.constant 0 : index
    %c0_1 = arith.constant 0 : index
    %3 = vector.load %arg15[%c0, %c0_1] : memref<8x32xbf16, #tpu.memory_space<vmem>>, vector<8x32xbf16>
    %c0_2 = arith.constant 0 : index
    %c0_3 = arith.constant 0 : index
    %c0_4 = arith.constant 0 : index
    %4 = vector.load %arg6[%c0_2, %c0_3, %c0_4] : memref<1x32x8xbf16, #tpu.memory_space<vmem>>, vector<1x32x8xbf16>
    %5 = vector.shape_cast %4 : vector<1x32x8xbf16> to vector<32x8xbf16>
    %cst = arith.constant dense<0.000000e+00> : vector<8x8xf32>
    %6 = tpu.matmul %3, %5, %cst {dimension_numbers = #tpu.dot_dimension_numbers<[1], [0], [0], [1], [0, 0, 1, 1], [], []>} : vector<8x32xbf16>, vector<32x8xbf16>, vector<8x8xf32> -> vector<8x8xf32>
    %c0_5 = arith.constant 0 : index
    %c0_6 = arith.constant 0 : index
    %c0_7 = arith.constant 0 : index
    %7 = vector.load %arg9[%c0_5, %c0_6, %c0_7] : memref<1x1x8xf32, #tpu.memory_space<vmem>>, vector<1x1x8xf32>
    %8 = vector.shape_cast %7 : vector<1x1x8xf32> to vector<1x8xf32>
    %9 = vector.broadcast %8 : vector<1x8xf32> to vector<8x8xf32>
    %10 = arith.addf %6, %9 : vector<8x8xf32>
    %11 = arith.truncf %10 : vector<8x8xf32> to vector<8x8xbf16>
    %c0_8 = arith.constant 0 : index
    %c0_9 = arith.constant 0 : index
    %c0_10 = arith.constant 0 : index
    %c0_11 = arith.constant 0 : index
    %12 = vector.load %arg12[%c0_8, %c0_9, %c0_10, %c0_11] : memref<1x1x8x8xbf16, #tpu.memory_space<vmem>>, vector<1x1x8x8xbf16>
    %13 = vector.shape_cast %12 : vector<1x1x8x8xbf16> to vector<8x8xbf16>
    %14 = vector.shape_cast %11 : vector<8x8xbf16> to vector<1x1x8x8xbf16>
    tpu.vector_store %arg12[%c0_8, %c0_9, %c0_10, %c0_11], %14 {strides = array<i32>} : memref<1x1x8x8xbf16, #tpu.memory_space<vmem>>, vector<1x1x8x8xbf16>,
    %c0_12 = arith.constant 0 : index
    %c0_13 = arith.constant 0 : index
    %c0_14 = arith.constant 0 : index
    %15 = vector.load %arg7[%c0_12, %c0_13, %c0_14] : memref<1x32x8xbf16, #tpu.memory_space<vmem>>, vector<1x32x8xbf16>
    %16 = vector.shape_cast %15 : vector<1x32x8xbf16> to vector<32x8xbf16>
    %cst_15 = arith.constant dense<0.000000e+00> : vector<8x8xf32>
    %17 = tpu.matmul %3, %16, %cst_15 {dimension_numbers = #tpu.dot_dimension_numbers<[1], [0], [0], [1], [0, 0, 1, 1], [], []>} : vector<8x32xbf16>, vector<32x8xbf16>, vector<8x8xf32> -> vector<8x8xf32>
    %c0_16 = arith.constant 0 : index
    %c0_17 = arith.constant 0 : index
    %c0_18 = arith.constant 0 : index
    %18 = vector.load %arg10[%c0_16, %c0_17, %c0_18] : memref<1x1x8xf32, #tpu.memory_space<vmem>>, vector<1x1x8xf32>
    %19 = vector.shape_cast %18 : vector<1x1x8xf32> to vector<1x8xf32>
    %20 = vector.broadcast %19 : vector<1x8xf32> to vector<8x8xf32>
    %21 = arith.addf %17, %20 : vector<8x8xf32>
    %22 = arith.truncf %21 : vector<8x8xf32> to vector<8x8xbf16>
    %c0_19 = arith.constant 0 : index
    %c0_20 = arith.constant 0 : index
    %c0_21 = arith.constant 0 : index
    %c0_22 = arith.constant 0 : index
    %23 = vector.load %arg13[%c0_19, %c0_20, %c0_21, %c0_22] : memref<1x1x8x8xbf16, #tpu.memory_space<vmem>>, vector<1x1x8x8xbf16>
    %24 = vector.shape_cast %23 : vector<1x1x8x8xbf16> to vector<8x8xbf16>
    %25 = vector.shape_cast %22 : vector<8x8xbf16> to vector<1x1x8x8xbf16>
    tpu.vector_store %arg13[%c0_19, %c0_20, %c0_21, %c0_22], %25 {strides = array<i32>} : memref<1x1x8x8xbf16, #tpu.memory_space<vmem>>, vector<1x1x8x8xbf16>,
    %c0_23 = arith.constant 0 : index
    %c0_24 = arith.constant 0 : index
    %c0_25 = arith.constant 0 : index
    %26 = vector.load %arg8[%c0_23, %c0_24, %c0_25] : memref<1x32x8xbf16, #tpu.memory_space<vmem>>, vector<1x32x8xbf16>
    %27 = vector.shape_cast %26 : vector<1x32x8xbf16> to vector<32x8xbf16>
    %cst_26 = arith.constant dense<0.000000e+00> : vector<8x8xf32>
    %28 = tpu.matmul %3, %27, %cst_26 {dimension_numbers = #tpu.dot_dimension_numbers<[1], [0], [0], [1], [0, 0, 1, 1], [], []>} : vector<8x32xbf16>, vector<32x8xbf16>, vector<8x8xf32> -> vector<8x8xf32>
    %c0_27 = arith.constant 0 : index
    %c0_28 = arith.constant 0 : index
    %c0_29 = arith.constant 0 : index
    %29 = vector.load %arg11[%c0_27, %c0_28, %c0_29] : memref<1x1x8xf32, #tpu.memory_space<vmem>>, vector<1x1x8xf32>
    %30 = vector.shape_cast %29 : vector<1x1x8xf32> to vector<1x8xf32>
    %31 = vector.broadcast %30 : vector<1x8xf32> to vector<8x8xf32>
    %32 = arith.addf %28, %31 : vector<8x8xf32>
    %33 = arith.truncf %32 : vector<8x8xf32> to vector<8x8xbf16>
    %c0_30 = arith.constant 0 : index
    %c0_31 = arith.constant 0 : index
    %c0_32 = arith.constant 0 : index
    %c0_33 = arith.constant 0 : index
    %34 = vector.load %arg14[%c0_30, %c0_31, %c0_32, %c0_33] : memref<1x1x8x8xbf16, #tpu.memory_space<vmem>>, vector<1x1x8x8xbf16>
    %35 = vector.shape_cast %34 : vector<1x1x8x8xbf16> to vector<8x8xbf16>
    %36 = vector.shape_cast %33 : vector<8x8xbf16> to vector<1x1x8x8xbf16>
    tpu.vector_store %arg14[%c0_30, %c0_31, %c0_32, %c0_33], %36 {strides = array<i32>} : memref<1x1x8x8xbf16, #tpu.memory_space<vmem>>, vector<1x1x8x8xbf16>,
    return
  }
  func.func @transform_0(%arg0: i32, %arg1: i32, %arg2: i32) -> (i32, i32) {
    %c1_i32 = arith.constant 1 : i32
    %0 = arith.muli %arg0, %c1_i32 : i32
    %1 = arith.addi %0, %arg1 : i32
    %c0_i32 = arith.constant 0 : i32
    %c0_i32_0 = arith.constant 0 : i32
    return %1, %c0_i32 : i32, i32
  }
  func.func @transform_1(%arg0: i32, %arg1: i32, %arg2: i32) -> (i32, i32) {
    %c0_i32 = arith.constant 0 : i32
    %c0_i32_0 = arith.constant 0 : i32
    %c0_i32_1 = arith.constant 0 : i32
    return %c0_i32, %c0_i32_0 : i32, i32
  }
  func.func @transform_2(%arg0: i32, %arg1: i32, %arg2: i32) -> (i32, i32) {
    %c0_i32 = arith.constant 0 : i32
    %c0_i32_0 = arith.constant 0 : i32
    %c0_i32_1 = arith.constant 0 : i32
    return %c0_i32, %c0_i32_0 : i32, i32
  }
  func.func @transform_3(%arg0: i32, %arg1: i32, %arg2: i32) -> (i32, i32, i32) {
    %c0_i32 = arith.constant 0 : i32
    %c0_i32_0 = arith.constant 0 : i32
    %c0_i32_1 = arith.constant 0 : i32
    return %arg2, %c0_i32, %c0_i32_0 : i32, i32, i32
  }
  func.func @transform_4(%arg0: i32, %arg1: i32, %arg2: i32) -> (i32, i32, i32) {
    %c0_i32 = arith.constant 0 : i32
    %c0_i32_0 = arith.constant 0 : i32
    %c0_i32_1 = arith.constant 0 : i32
    return %arg2, %c0_i32, %c0_i32_0 : i32, i32, i32
  }
  func.func @transform_5(%arg0: i32, %arg1: i32, %arg2: i32) -> (i32, i32, i32) {
    %c0_i32 = arith.constant 0 : i32
    %c0_i32_0 = arith.constant 0 : i32
    %c0_i32_1 = arith.constant 0 : i32
    return %arg2, %c0_i32, %c0_i32_0 : i32, i32, i32
  }
  func.func @transform_6(%arg0: i32, %arg1: i32, %arg2: i32) -> (i32, i32, i32) {
    %c0_i32 = arith.constant 0 : i32
    %c0_i32_0 = arith.constant 0 : i32
    %c0_i32_1 = arith.constant 0 : i32
    return %arg2, %c0_i32, %c0_i32_0 : i32, i32, i32
  }
  func.func @transform_7(%arg0: i32, %arg1: i32, %arg2: i32) -> (i32, i32, i32) {
    %c0_i32 = arith.constant 0 : i32
    %c0_i32_0 = arith.constant 0 : i32
    %c0_i32_1 = arith.constant 0 : i32
    return %arg2, %c0_i32, %c0_i32_0 : i32, i32, i32
  }
  func.func @transform_8(%arg0: i32, %arg1: i32, %arg2: i32) -> (i32, i32, i32) {
    %c0_i32 = arith.constant 0 : i32
    %c0_i32_0 = arith.constant 0 : i32
    %c0_i32_1 = arith.constant 0 : i32
    return %arg2, %c0_i32, %c0_i32_0 : i32, i32, i32
  }
  func.func @transform_9(%arg0: i32, %arg1: i32, %arg2: i32) -> (i32, i32, i32, i32) {
    %c0_i32 = arith.constant 0 : i32
    %c0_i32_0 = arith.constant 0 : i32
    return %arg0, %arg2, %arg1, %c0_i32 : i32, i32, i32, i32
  }
  func.func @transform_10(%arg0: i32, %arg1: i32, %arg2: i32) -> (i32, i32, i32, i32) {
    %c0_i32 = arith.constant 0 : i32
    %c0_i32_0 = arith.constant 0 : i32
    return %arg0, %arg2, %arg1, %c0_i32 : i32, i32, i32, i32
  }
  func.func @transform_11(%arg0: i32, %arg1: i32, %arg2: i32) -> (i32, i32, i32, i32) {
    %c0_i32 = arith.constant 0 : i32
    %c0_i32_0 = arith.constant 0 : i32
    return %arg0, %arg2, %arg1, %c0_i32 : i32, i32, i32, i32
  }
}

module attributes {stable_mosaic.version = 11 : i64} {
  func.func @_mlp_fused_kernel(%arg0: i32, %arg1: i32, %arg2: memref<16x32xbf16, #tpu.memory_space<vmem>>, %arg3: memref<1x32xf32, #tpu.memory_space<vmem>>, %arg4: memref<1x32xf32, #tpu.memory_space<vmem>>, %arg5: memref<32x128xbf16, #tpu.memory_space<vmem>>, %arg6: memref<1x128xf32, #tpu.memory_space<vmem>>, %arg7: memref<128x32xbf16, #tpu.memory_space<vmem>>, %arg8: memref<1x32xf32, #tpu.memory_space<vmem>>, %arg9: memref<16x32xbf16, #tpu.memory_space<vmem>>, %arg10: memref<16x32xbf16, #tpu.memory_space<vmem>>, %arg11: memref<16x32xf32, #tpu.memory_space<vmem>>) attributes {dimension_semantics = [#tpu.dimension_semantics<parallel>, #tpu.dimension_semantics<arbitrary>], iteration_bounds = array<i64: 1, 1>, scalar_prefetch = 0 : i64, scratch_operands = 2 : i64, tpu.core_type = #tpu.core_type<tc>, window_params = [{transform_indices = @transform_0, window_bounds = array<i64: 16, 32>}, {pipeline_mode = #tpu.pipeline_mode<synchronous>, transform_indices = @transform_1, window_bounds = array<i64: 1, 32>}, {pipeline_mode = #tpu.pipeline_mode<synchronous>, transform_indices = @transform_2, window_bounds = array<i64: 1, 32>}, {transform_indices = @transform_3, window_bounds = array<i64: 32, 128>}, {transform_indices = @transform_4, window_bounds = array<i64: 1, 128>}, {transform_indices = @transform_5, window_bounds = array<i64: 128, 32>}, {pipeline_mode = #tpu.pipeline_mode<synchronous>, transform_indices = @transform_6, window_bounds = array<i64: 1, 32>}, {transform_indices = @transform_7, window_bounds = array<i64: 16, 32>}]} {
    %c0_i32 = arith.constant 0 : i32
    %0 = arith.cmpi eq, %arg1, %c0_i32 : i32
    %1 = arith.extui %0 : i1 to i32
    %c0_i32_0 = arith.constant 0 : i32
    %2 = arith.cmpi ne, %1, %c0_i32_0 : i32
    scf.if %2 {
      %c0_19 = arith.constant 0 : index
      %c0_20 = arith.constant 0 : index
      %31 = vector.load %arg2[%c0_19, %c0_20] : memref<16x32xbf16, #tpu.memory_space<vmem>>, vector<16x32xbf16>
      %32 = arith.extf %31 : vector<16x32xbf16> to vector<16x32xf32>
      %c0_21 = arith.constant 0 : index
      %c0_22 = arith.constant 0 : index
      %33 = vector.load %arg3[%c0_21, %c0_22] : memref<1x32xf32, #tpu.memory_space<vmem>>, vector<1x32xf32>
      %c0_23 = arith.constant 0 : index
      %c0_24 = arith.constant 0 : index
      %34 = vector.load %arg4[%c0_23, %c0_24] : memref<1x32xf32, #tpu.memory_space<vmem>>, vector<1x32xf32>
      %cst_25 = arith.constant dense<0.000000e+00> : vector<16xf32>
      %35 = vector.multi_reduction <add>, %32, %cst_25 [1] : vector<16x32xf32> to vector<16xf32>
      %36 = vector.shape_cast %35 : vector<16xf32> to vector<16x1xf32>
      %cst_26 = arith.constant 3.200000e+01 : f32
      %37 = vector.broadcast %cst_26 : f32 to vector<16x1xf32>
      %38 = arith.divf %36, %37 : vector<16x1xf32>
      %39 = vector.broadcast %38 : vector<16x1xf32> to vector<16x32xf32>
      %40 = arith.subf %32, %39 : vector<16x32xf32>
      %41 = arith.mulf %40, %40 : vector<16x32xf32>
      %cst_27 = arith.constant dense<0.000000e+00> : vector<16xf32>
      %42 = vector.multi_reduction <add>, %41, %cst_27 [1] : vector<16x32xf32> to vector<16xf32>
      %43 = vector.shape_cast %42 : vector<16xf32> to vector<16x1xf32>
      %cst_28 = arith.constant 3.200000e+01 : f32
      %44 = vector.broadcast %cst_28 : f32 to vector<16x1xf32>
      %45 = arith.divf %43, %44 : vector<16x1xf32>
      %46 = vector.broadcast %38 : vector<16x1xf32> to vector<16x32xf32>
      %47 = arith.subf %32, %46 : vector<16x32xf32>
      %cst_29 = arith.constant 9.99999974E-6 : f32
      %48 = vector.broadcast %cst_29 : f32 to vector<16x1xf32>
      %49 = arith.addf %45, %48 : vector<16x1xf32>
      %50 = math.rsqrt %49 : vector<16x1xf32>
      %51 = vector.broadcast %50 : vector<16x1xf32> to vector<16x32xf32>
      %52 = arith.mulf %47, %51 : vector<16x32xf32>
      %53 = vector.broadcast %33 : vector<1x32xf32> to vector<16x32xf32>
      %54 = arith.mulf %52, %53 : vector<16x32xf32>
      %55 = vector.broadcast %34 : vector<1x32xf32> to vector<16x32xf32>
      %56 = arith.addf %54, %55 : vector<16x32xf32>
      %57 = arith.truncf %56 : vector<16x32xf32> to vector<16x32xbf16>
      %c0_30 = arith.constant 0 : index
      %c0_31 = arith.constant 0 : index
      %58 = vector.load %arg10[%c0_30, %c0_31] : memref<16x32xbf16, #tpu.memory_space<vmem>>, vector<16x32xbf16>
      tpu.vector_store %arg10[%c0_30, %c0_31], %57 {strides = array<i32>} : memref<16x32xbf16, #tpu.memory_space<vmem>>, vector<16x32xbf16>,
      %cst_32 = arith.constant 0.000000e+00 : f32
      %59 = vector.broadcast %cst_32 : f32 to vector<16x32xf32>
      %c0_33 = arith.constant 0 : index
      %c0_34 = arith.constant 0 : index
      %60 = vector.load %arg11[%c0_33, %c0_34] : memref<16x32xf32, #tpu.memory_space<vmem>>, vector<16x32xf32>
      tpu.vector_store %arg11[%c0_33, %c0_34], %59 {strides = array<i32>} : memref<16x32xf32, #tpu.memory_space<vmem>>, vector<16x32xf32>,
    } else {
    }
    %c0 = arith.constant 0 : index
    %c0_1 = arith.constant 0 : index
    %3 = vector.load %arg10[%c0, %c0_1] : memref<16x32xbf16, #tpu.memory_space<vmem>>, vector<16x32xbf16>
    %c0_2 = arith.constant 0 : index
    %c0_3 = arith.constant 0 : index
    %4 = vector.load %arg5[%c0_2, %c0_3] : memref<32x128xbf16, #tpu.memory_space<vmem>>, vector<32x128xbf16>
    %cst = arith.constant dense<0.000000e+00> : vector<16x128xf32>
    %5 = tpu.matmul %3, %4, %cst {dimension_numbers = #tpu.dot_dimension_numbers<[1], [0], [0], [1], [0, 0, 1, 1], [], []>} : vector<16x32xbf16>, vector<32x128xbf16>, vector<16x128xf32> -> vector<16x128xf32>
    %c0_4 = arith.constant 0 : index
    %c0_5 = arith.constant 0 : index
    %6 = vector.load %arg6[%c0_4, %c0_5] : memref<1x128xf32, #tpu.memory_space<vmem>>, vector<1x128xf32>
    %7 = vector.broadcast %6 : vector<1x128xf32> to vector<16x128xf32>
    %8 = arith.addf %5, %7 : vector<16x128xf32>
    %9 = arith.mulf %8, %8 : vector<16x128xf32>
    %10 = arith.mulf %8, %9 : vector<16x128xf32>
    %cst_6 = arith.constant 4.471500e-02 : f32
    %11 = vector.broadcast %cst_6 : f32 to vector<16x128xf32>
    %12 = arith.mulf %11, %10 : vector<16x128xf32>
    %13 = arith.addf %8, %12 : vector<16x128xf32>
    %cst_7 = arith.constant 0.797884583 : f32
    %14 = vector.broadcast %cst_7 : f32 to vector<16x128xf32>
    %15 = arith.mulf %14, %13 : vector<16x128xf32>
    %16 = math.tanh %15 : vector<16x128xf32>
    %cst_8 = arith.constant 1.000000e+00 : f32
    %17 = vector.broadcast %cst_8 : f32 to vector<16x128xf32>
    %18 = arith.addf %17, %16 : vector<16x128xf32>
    %cst_9 = arith.constant 5.000000e-01 : f32
    %19 = vector.broadcast %cst_9 : f32 to vector<16x128xf32>
    %20 = arith.mulf %19, %18 : vector<16x128xf32>
    %21 = arith.mulf %8, %20 : vector<16x128xf32>
    %22 = arith.truncf %21 : vector<16x128xf32> to vector<16x128xbf16>
    %c0_10 = arith.constant 0 : index
    %c0_11 = arith.constant 0 : index
    %23 = vector.load %arg11[%c0_10, %c0_11] : memref<16x32xf32, #tpu.memory_space<vmem>>, vector<16x32xf32>
    %c0_12 = arith.constant 0 : index
    %c0_13 = arith.constant 0 : index
    %24 = vector.load %arg7[%c0_12, %c0_13] : memref<128x32xbf16, #tpu.memory_space<vmem>>, vector<128x32xbf16>
    %cst_14 = arith.constant dense<0.000000e+00> : vector<16x32xf32>
    %25 = tpu.matmul %22, %24, %cst_14 {dimension_numbers = #tpu.dot_dimension_numbers<[1], [0], [0], [1], [0, 0, 1, 1], [], []>} : vector<16x128xbf16>, vector<128x32xbf16>, vector<16x32xf32> -> vector<16x32xf32>
    %26 = arith.addf %23, %25 : vector<16x32xf32>
    %c0_15 = arith.constant 0 : index
    %c0_16 = arith.constant 0 : index
    %27 = vector.load %arg11[%c0_15, %c0_16] : memref<16x32xf32, #tpu.memory_space<vmem>>, vector<16x32xf32>
    tpu.vector_store %arg11[%c0_15, %c0_16], %26 {strides = array<i32>} : memref<16x32xf32, #tpu.memory_space<vmem>>, vector<16x32xf32>,
    %c0_i32_17 = arith.constant 0 : i32
    %28 = arith.cmpi eq, %arg1, %c0_i32_17 : i32
    %29 = arith.extui %28 : i1 to i32
    %c0_i32_18 = arith.constant 0 : i32
    %30 = arith.cmpi ne, %29, %c0_i32_18 : i32
    scf.if %30 {
      %c0_19 = arith.constant 0 : index
      %c0_20 = arith.constant 0 : index
      %31 = vector.load %arg11[%c0_19, %c0_20] : memref<16x32xf32, #tpu.memory_space<vmem>>, vector<16x32xf32>
      %c0_21 = arith.constant 0 : index
      %c0_22 = arith.constant 0 : index
      %32 = vector.load %arg8[%c0_21, %c0_22] : memref<1x32xf32, #tpu.memory_space<vmem>>, vector<1x32xf32>
      %33 = vector.broadcast %32 : vector<1x32xf32> to vector<16x32xf32>
      %34 = arith.addf %31, %33 : vector<16x32xf32>
      %c0_23 = arith.constant 0 : index
      %c0_24 = arith.constant 0 : index
      %35 = vector.load %arg2[%c0_23, %c0_24] : memref<16x32xbf16, #tpu.memory_space<vmem>>, vector<16x32xbf16>
      %36 = arith.extf %35 : vector<16x32xbf16> to vector<16x32xf32>
      %37 = arith.addf %34, %36 : vector<16x32xf32>
      %38 = arith.truncf %37 : vector<16x32xf32> to vector<16x32xbf16>
      %c0_25 = arith.constant 0 : index
      %c0_26 = arith.constant 0 : index
      %39 = vector.load %arg9[%c0_25, %c0_26] : memref<16x32xbf16, #tpu.memory_space<vmem>>, vector<16x32xbf16>
      tpu.vector_store %arg9[%c0_25, %c0_26], %38 {strides = array<i32>} : memref<16x32xbf16, #tpu.memory_space<vmem>>, vector<16x32xbf16>,
    } else {
    }
    return
  }
  func.func @transform_0(%arg0: i32, %arg1: i32) -> (i32, i32) {
    %c0_i32 = arith.constant 0 : i32
    %c0_i32_0 = arith.constant 0 : i32
    return %arg0, %c0_i32 : i32, i32
  }
  func.func @transform_1(%arg0: i32, %arg1: i32) -> (i32, i32) {
    %c0_i32 = arith.constant 0 : i32
    %c0_i32_0 = arith.constant 0 : i32
    %c0_i32_1 = arith.constant 0 : i32
    return %c0_i32, %c0_i32_0 : i32, i32
  }
  func.func @transform_2(%arg0: i32, %arg1: i32) -> (i32, i32) {
    %c0_i32 = arith.constant 0 : i32
    %c0_i32_0 = arith.constant 0 : i32
    %c0_i32_1 = arith.constant 0 : i32
    return %c0_i32, %c0_i32_0 : i32, i32
  }
  func.func @transform_3(%arg0: i32, %arg1: i32) -> (i32, i32) {
    %c0_i32 = arith.constant 0 : i32
    %c0_i32_0 = arith.constant 0 : i32
    return %c0_i32, %arg1 : i32, i32
  }
  func.func @transform_4(%arg0: i32, %arg1: i32) -> (i32, i32) {
    %c0_i32 = arith.constant 0 : i32
    %c0_i32_0 = arith.constant 0 : i32
    return %c0_i32, %arg1 : i32, i32
  }
  func.func @transform_5(%arg0: i32, %arg1: i32) -> (i32, i32) {
    %c0_i32 = arith.constant 0 : i32
    %c0_i32_0 = arith.constant 0 : i32
    return %arg1, %c0_i32 : i32, i32
  }
  func.func @transform_6(%arg0: i32, %arg1: i32) -> (i32, i32) {
    %c0_i32 = arith.constant 0 : i32
    %c0_i32_0 = arith.constant 0 : i32
    %c0_i32_1 = arith.constant 0 : i32
    return %c0_i32, %c0_i32_0 : i32, i32
  }
  func.func @transform_7(%arg0: i32, %arg1: i32) -> (i32, i32) {
    %c0_i32 = arith.constant 0 : i32
    %c0_i32_0 = arith.constant 0 : i32
    return %arg0, %c0_i32 : i32, i32
  }
}

module attributes {stable_mosaic.version = 11 : i64} {
  func.func @_ln_logits_kernel(%arg0: i32, %arg1: i32, %arg2: memref<16x32xbf16, #tpu.memory_space<vmem>>, %arg3: memref<1x32xf32, #tpu.memory_space<vmem>>, %arg4: memref<1x32xf32, #tpu.memory_space<vmem>>, %arg5: memref<64x32xbf16, #tpu.memory_space<vmem>>, %arg6: memref<16x64xf32, #tpu.memory_space<vmem>>, %arg7: memref<16x32xbf16, #tpu.memory_space<vmem>>) attributes {dimension_semantics = [#tpu.dimension_semantics<parallel>, #tpu.dimension_semantics<arbitrary>], iteration_bounds = array<i64: 1, 1>, scalar_prefetch = 0 : i64, scratch_operands = 1 : i64, tpu.core_type = #tpu.core_type<tc>, window_params = [{transform_indices = @transform_0, window_bounds = array<i64: 16, 32>}, {pipeline_mode = #tpu.pipeline_mode<synchronous>, transform_indices = @transform_1, window_bounds = array<i64: 1, 32>}, {pipeline_mode = #tpu.pipeline_mode<synchronous>, transform_indices = @transform_2, window_bounds = array<i64: 1, 32>}, {transform_indices = @transform_3, window_bounds = array<i64: 64, 32>}, {transform_indices = @transform_4, window_bounds = array<i64: 16, 64>}]} {
    %c0_i32 = arith.constant 0 : i32
    %0 = arith.cmpi eq, %arg1, %c0_i32 : i32
    %1 = arith.extui %0 : i1 to i32
    %c0_i32_0 = arith.constant 0 : i32
    %2 = arith.cmpi ne, %1, %c0_i32_0 : i32
    scf.if %2 {
      %c0_6 = arith.constant 0 : index
      %c0_7 = arith.constant 0 : index
      %7 = vector.load %arg2[%c0_6, %c0_7] : memref<16x32xbf16, #tpu.memory_space<vmem>>, vector<16x32xbf16>
      %8 = arith.extf %7 : vector<16x32xbf16> to vector<16x32xf32>
      %c0_8 = arith.constant 0 : index
      %c0_9 = arith.constant 0 : index
      %9 = vector.load %arg3[%c0_8, %c0_9] : memref<1x32xf32, #tpu.memory_space<vmem>>, vector<1x32xf32>
      %c0_10 = arith.constant 0 : index
      %c0_11 = arith.constant 0 : index
      %10 = vector.load %arg4[%c0_10, %c0_11] : memref<1x32xf32, #tpu.memory_space<vmem>>, vector<1x32xf32>
      %cst_12 = arith.constant dense<0.000000e+00> : vector<16xf32>
      %11 = vector.multi_reduction <add>, %8, %cst_12 [1] : vector<16x32xf32> to vector<16xf32>
      %12 = vector.shape_cast %11 : vector<16xf32> to vector<16x1xf32>
      %cst_13 = arith.constant 3.200000e+01 : f32
      %13 = vector.broadcast %cst_13 : f32 to vector<16x1xf32>
      %14 = arith.divf %12, %13 : vector<16x1xf32>
      %15 = vector.broadcast %14 : vector<16x1xf32> to vector<16x32xf32>
      %16 = arith.subf %8, %15 : vector<16x32xf32>
      %17 = arith.mulf %16, %16 : vector<16x32xf32>
      %cst_14 = arith.constant dense<0.000000e+00> : vector<16xf32>
      %18 = vector.multi_reduction <add>, %17, %cst_14 [1] : vector<16x32xf32> to vector<16xf32>
      %19 = vector.shape_cast %18 : vector<16xf32> to vector<16x1xf32>
      %cst_15 = arith.constant 3.200000e+01 : f32
      %20 = vector.broadcast %cst_15 : f32 to vector<16x1xf32>
      %21 = arith.divf %19, %20 : vector<16x1xf32>
      %22 = vector.broadcast %14 : vector<16x1xf32> to vector<16x32xf32>
      %23 = arith.subf %8, %22 : vector<16x32xf32>
      %cst_16 = arith.constant 9.99999974E-6 : f32
      %24 = vector.broadcast %cst_16 : f32 to vector<16x1xf32>
      %25 = arith.addf %21, %24 : vector<16x1xf32>
      %26 = math.rsqrt %25 : vector<16x1xf32>
      %27 = vector.broadcast %26 : vector<16x1xf32> to vector<16x32xf32>
      %28 = arith.mulf %23, %27 : vector<16x32xf32>
      %29 = vector.broadcast %9 : vector<1x32xf32> to vector<16x32xf32>
      %30 = arith.mulf %28, %29 : vector<16x32xf32>
      %31 = vector.broadcast %10 : vector<1x32xf32> to vector<16x32xf32>
      %32 = arith.addf %30, %31 : vector<16x32xf32>
      %33 = arith.truncf %32 : vector<16x32xf32> to vector<16x32xbf16>
      %c0_17 = arith.constant 0 : index
      %c0_18 = arith.constant 0 : index
      %34 = vector.load %arg7[%c0_17, %c0_18] : memref<16x32xbf16, #tpu.memory_space<vmem>>, vector<16x32xbf16>
      tpu.vector_store %arg7[%c0_17, %c0_18], %33 {strides = array<i32>} : memref<16x32xbf16, #tpu.memory_space<vmem>>, vector<16x32xbf16>,
    } else {
    }
    %c0 = arith.constant 0 : index
    %c0_1 = arith.constant 0 : index
    %3 = vector.load %arg7[%c0, %c0_1] : memref<16x32xbf16, #tpu.memory_space<vmem>>, vector<16x32xbf16>
    %c0_2 = arith.constant 0 : index
    %c0_3 = arith.constant 0 : index
    %4 = vector.load %arg5[%c0_2, %c0_3] : memref<64x32xbf16, #tpu.memory_space<vmem>>, vector<64x32xbf16>
    %cst = arith.constant dense<0.000000e+00> : vector<16x64xf32>
    %5 = tpu.matmul %3, %4, %cst {dimension_numbers = #tpu.dot_dimension_numbers<[1], [1], [0], [0], [0, 0, 1, 0], [], []>} : vector<16x32xbf16>, vector<64x32xbf16>, vector<16x64xf32> -> vector<16x64xf32>
    %c0_4 = arith.constant 0 : index
    %c0_5 = arith.constant 0 : index
    %6 = vector.load %arg6[%c0_4, %c0_5] : memref<16x64xf32, #tpu.memory_space<vmem>>, vector<16x64xf32>
    tpu.vector_store %arg6[%c0_4, %c0_5], %5 {strides = array<i32>} : memref<16x64xf32, #tpu.memory_space<vmem>>, vector<16x64xf32>,
    return
  }
  func.func @transform_0(%arg0: i32, %arg1: i32) -> (i32, i32) {
    %c0_i32 = arith.constant 0 : i32
    %c0_i32_0 = arith.constant 0 : i32
    return %arg0, %c0_i32 : i32, i32
  }
  func.func @transform_1(%arg0: i32, %arg1: i32) -> (i32, i32) {
    %c0_i32 = arith.constant 0 : i32
    %c0_i32_0 = arith.constant 0 : i32
    %c0_i32_1 = arith.constant 0 : i32
    return %c0_i32, %c0_i32_0 : i32, i32
  }
  func.func @transform_2(%arg0: i32, %arg1: i32) -> (i32, i32) {
    %c0_i32 = arith.constant 0 : i32
    %c0_i32_0 = arith.constant 0 : i32
    %c0_i32_1 = arith.constant 0 : i32
    return %c0_i32, %c0_i32_0 : i32, i32
  }
  func.func @transform_3(%arg0: i32, %arg1: i32) -> (i32, i32) {
    %c0_i32 = arith.constant 0 : i32
    %c0_i32_0 = arith.constant 0 : i32
    return %arg1, %c0_i32 : i32, i32
  }
  func.func @transform_4(%arg0: i32, %arg1: i32) -> (i32, i32) {
    %c0_i32 = arith.constant 0 : i32
    return %arg0, %arg1 : i32, i32
  }
}

</mosaic_0001>

<llo_original>
// kernel: gpt2_model_pipe_forward.11
$region0: #{gpt2_model_pipe_forward.11}
  #allocation0 [shape = 'u32[]', space=smem, size = 0x4, offset = 0x4, fixed_abs, tag = 'smem constant byte address 0x4 - core index']
  #allocation1 [shape = 'u32[144,128]{1,0:T(1,128)}', space=vmem, size = 0x12000, scoped, tag = 'internal scratch']
  #allocation2 [shape = 'f32[8,32]{1,0:T(8,128)}', space=vmem, size = 0x1000, scoped, tag = 'scratch operand']
  %s0 = inlined_call_operand.hbm [shape: bf16[2,4,8,8], index: 0, kind: input, shape index: {}]
  %s1 = inlined_call_operand.hbm [shape: bf16[4,8,32], index: 1, kind: input, shape index: {}]
  %s2 = inlined_call_operand.hbm [shape: f32[1,32], index: 2, kind: input, shape index: {}]
  %s3 = inlined_call_operand.hbm [shape: bf16[16,32], index: 3, kind: input, shape index: {}]
  %s4 = inlined_call_operand.hbm [shape: bf16[16,32], index: 4, kind: output, shape index: {}]
  %s5 = sld [smem:[#allocation0]]
  $region73: #{gpt2_model_pipe_forward.11} parent=0
    _
  %s7 = ssub.s32 1, %s5
  %s8 = scalar_select 0, %s7, %s5
  $region1: #{gpt2_model_pipe_forward.11} parent=0
    #allocation3 [shape = 'u8[4096]{0}', space=vmem, size = 0x1000, scoped, tag = 'input window, operand 0']
    #allocation4 [shape = 's32[2]{0}', space=sflag, size = 0x8, scoped, tag = 'scoped memory for gpt2_model_pipe_forward.11']
    #allocation5 [shape = 's32[2]{0}', space=sflag, size = 0x8, scoped, tag = 'scoped memory for gpt2_model_pipe_forward.11']
    #allocation6 [shape = 'u8[4096]{0}', space=vmem, size = 0x1000, scoped, tag = 'input window, operand 1']
    #allocation7 [shape = 's32[2]{0}', space=sflag, size = 0x8, scoped, tag = 'scoped memory for gpt2_model_pipe_forward.11']
    #allocation8 [shape = 'u8[512]{0}', space=vmem, size = 0x400, scoped, tag = 'input window, operand 2, single buffered']
    #allocation9 [shape = 'u8[4096]{0}', space=vmem, size = 0x1000, scoped, tag = 'input window, operand 3']
    #allocation10 [shape = 's32[2]{0}', space=sflag, size = 0x8, scoped, tag = 'scoped memory for gpt2_model_pipe_forward.11']
    #allocation11 [shape = 'u8[4096]{0}', space=vmem, size = 0x1000, scoped, tag = 'output window, operand 0']
    %9 = vsyncpa [#allocation4], 0
    %s10 = scalar_lea.sflag [#allocation4], 1
    %11 = vsyncpa %s10, 0
    %12 = vsyncpa [#allocation7], 0
    %s13 = scalar_lea.sflag [#allocation7], 1
    %14 = vsyncpa %s13, 0
    %15 = vsyncpa [#allocation10], 0
    %s16 = scalar_lea.sflag [#allocation10], 1
    %17 = vsyncpa %s16, 0
    %18 = vsyncpa [#allocation5], 0
    %s19 = scalar_lea.sflag [#allocation5], 1
    %20 = vsyncpa %s19, 0
    loop: start=0, step=1, limit=10
    $region2: #{gpt2_model_pipe_forward.11} parent=1 // loop_pre_header
      _
    $region3: #{gpt2_model_pipe_forward.11} parent=1 // loop_header
      %s22 = sphi 0, %s26
      %p23 = scmp.ge.s32.totalorder %s22, 10
      %s29 = sphi 0, %s48
      %s30 = sphi 0, %s44
      %s31 = sphi 0, %s40
      %s32 = sphi 0, %s29
      %s33 = sphi 0, %s30
      %s34 = sphi 0, %s31
      %s35 = sphi 0, %s32
      %s36 = sphi 0, %s33
      %s37 = sphi 0, %s34
      %s55 = sphi 0, %s57
      %s58 = sphi 0, %s55
      %s59 = sphi 0, %s58
      %s75 = sphi 0, %s59
      %s81 = sphi 0, %s83
      %s84 = sphi 0, %s81
      %s85 = sphi 0, %s84
      %s101 = sphi 0, %s85
      %s105 = sphi 0, %s105
      %s107 = sphi 0, %s105
      %s108 = sphi 0, %s107
      %s122 = sphi 0, %s108
      %s130 = sphi 0, %s132
      %s133 = sphi 0, %s130
      %s134 = sphi 0, %s133
      %s150 = sphi 0, %s134
      %s158 = sphi 0, %s160
      %s161 = sphi 0, %s158
      %s162 = sphi 0, %s161
      %s178 = sphi 0, %s162
    $region4: #{gpt2_model_pipe_forward.11} parent=1 // loop_header_branch
      %25 = sbr.rel (%p23) target = $region8
    $region5: #{gpt2_model_pipe_forward.11} parent=1 // loop_body
      %s27 = ssub.s32 %s22, 1
      %s28 = ssub.s32 %s22, 2
      %s38 = sadd.s32 1, %s31
      %p39 = scmp.ge.s32.totalorder %s38, 4
      %s40 = scalar_select %p39, 0, %s38
      %s41 = sadd.s32 1, %s30
      %s42 = scalar_select %p39, %s41, %s30
      %p43 = scmp.ge.s32.totalorder %s42, 1
      %s44 = scalar_select %p43, 0, %s42
      %s45 = sadd.s32 1, %s29
      %s46 = scalar_select %p43, %s45, %s29
      %p47 = scmp.ge.s32.totalorder %s46, 2
      %s48 = scalar_select %p47, 0, %s46
      %s49 = ssub.s32 %s29, %s48
      %s50 = ssub.s32 %s31, %s40
      %s51 = sor.u32 %s49, %s50
      %s52 = ssub.s32 %s30, %s44
      %s53 = sor.u32 %s51, %s52
      %p54 = scmp.eq.s32.totalorder %s53, 0
      %s56 = sadd.s32 %s55, 1
      %s57 = scalar_select %p54, %s55, %s56
      %p60 = pneg %p54
      %p61 = scmp.eq.s32.totalorder %s22, 7
      %p62 = por %p60, %p61
      %p63 = scmp.ne.s32.totalorder %s55, %s58
      %p64 = scmp.eq.s32.totalorder %s22, 0
      %p65 = por %p63, %p64
      %p66 = scmp.ne.s32.totalorder %s55, %s58
      %p67 = scmp.eq.s32.totalorder %s27, 7
      %p68 = por %p66, %p67
      %p69 = scmp.ne.s32.totalorder %s58, %s59
      %p70 = scmp.eq.s32.totalorder %s27, 0
      %p71 = por %p69, %p70
      %p72 = scmp.ne.s32.totalorder %s58, %s59
      %p73 = scmp.eq.s32.totalorder %s28, 7
      %p74 = por %p72, %p73
      %p76 = scmp.ne.s32.totalorder %s59, %s75
      %p77 = scmp.eq.s32.totalorder %s28, 0
      %p78 = por %p76, %p77
      %s79 = ssub.s32 %s31, %s40
      %p80 = scmp.eq.s32.totalorder %s79, 0
      %s82 = sadd.s32 %s81, 1
      %s83 = scalar_select %p80, %s81, %s82
      %p86 = pneg %p80
      %p87 = scmp.eq.s32.totalorder %s22, 7
      %p88 = por %p86, %p87
      %p89 = scmp.ne.s32.totalorder %s81, %s84
      %p90 = scmp.eq.s32.totalorder %s22, 0
      %p91 = por %p89, %p90
      %p92 = scmp.ne.s32.totalorder %s81, %s84
      %p93 = scmp.eq.s32.totalorder %s27, 7
      %p94 = por %p92, %p93
      %p95 = scmp.ne.s32.totalorder %s84, %s85
      %p96 = scmp.eq.s32.totalorder %s27, 0
      %p97 = por %p95, %p96
      %p98 = scmp.ne.s32.totalorder %s84, %s85
      %p99 = scmp.eq.s32.totalorder %s28, 7
      %p100 = por %p98, %p99
      %p102 = scmp.ne.s32.totalorder %s85, %s101
      %p103 = scmp.eq.s32.totalorder %s28, 0
      %p104 = por %p102, %p103
      %s106 = sadd.s32 %s105, 1
      %p109 = scmp.eq.s32.totalorder %s22, 7
      %p110 = scmp.ne.s32.totalorder %s105, %s107
      %p111 = scmp.eq.s32.totalorder %s22, 0
      %p112 = por %p110, %p111
      %p113 = scmp.ne.s32.totalorder %s105, %s107
      %p114 = scmp.eq.s32.totalorder %s27, 7
      %p115 = por %p113, %p114
      %p116 = scmp.ne.s32.totalorder %s107, %s108
      %p117 = scmp.eq.s32.totalorder %s27, 0
      %p118 = por %p116, %p117
      %p119 = scmp.ne.s32.totalorder %s107, %s108
      %p120 = scmp.eq.s32.totalorder %s28, 7
      %p121 = por %p119, %p120
      %p123 = scmp.ne.s32.totalorder %s108, %s122
      %p124 = scmp.eq.s32.totalorder %s28, 0
      %p125 = por %p123, %p124
      %s126 = sadd.s32 %s29, %s30
      %s127 = sadd.s32 %s48, %s44
      %s128 = ssub.s32 %s126, %s127
      %p129 = scmp.eq.s32.totalorder %s128, 0
      %s131 = sadd.s32 %s130, 1
      %s132 = scalar_select %p129, %s130, %s131
      %p135 = pneg %p129
      %p136 = scmp.eq.s32.totalorder %s22, 7
      %p137 = por %p135, %p136
      %p138 = scmp.ne.s32.totalorder %s130, %s133
      %p139 = scmp.eq.s32.totalorder %s22, 0
      %p140 = por %p138, %p139
      %p141 = scmp.ne.s32.totalorder %s130, %s133
      %p142 = scmp.eq.s32.totalorder %s27, 7
      %p143 = por %p141, %p142
      %p144 = scmp.ne.s32.totalorder %s133, %s134
      %p145 = scmp.eq.s32.totalorder %s27, 0
      %p146 = por %p144, %p145
      %p147 = scmp.ne.s32.totalorder %s133, %s134
      %p148 = scmp.eq.s32.totalorder %s28, 7
      %p149 = por %p147, %p148
      %p151 = scmp.ne.s32.totalorder %s134, %s150
      %p152 = scmp.eq.s32.totalorder %s28, 0
      %p153 = por %p151, %p152
      %s154 = sadd.s32 %s29, %s30
      %s155 = sadd.s32 %s48, %s44
      %s156 = ssub.s32 %s154, %s155
      %p157 = scmp.eq.s32.totalorder %s156, 0
      %s159 = sadd.s32 %s158, 1
      %s160 = scalar_select %p157, %s158, %s159
      %p163 = pneg %p157
      %p164 = scmp.eq.s32.totalorder %s22, 7
      %p165 = por %p163, %p164
      %p166 = scmp.ne.s32.totalorder %s158, %s161
      %p167 = scmp.eq.s32.totalorder %s22, 0
      %p168 = por %p166, %p167
      %p169 = scmp.ne.s32.totalorder %s158, %s161
      %p170 = scmp.eq.s32.totalorder %s27, 7
      %p171 = por %p169, %p170
      %p172 = scmp.ne.s32.totalorder %s161, %s162
      %p173 = scmp.eq.s32.totalorder %s27, 0
      %p174 = por %p172, %p173
      %p175 = scmp.ne.s32.totalorder %s161, %s162
      %p176 = scmp.eq.s32.totalorder %s28, 7
      %p177 = por %p175, %p176
      %p179 = scmp.ne.s32.totalorder %s162, %s178
      %p180 = scmp.eq.s32.totalorder %s28, 0
      %p181 = por %p179, %p180
      %p182 = scmp.le.s32.totalorder 1, %s22
      %p183 = scmp.lt.s32.totalorder %s22, 9
      %p184 = pnand %p182, %p183
      %p185 = pneg %p184
      // Predicated region
      $region9: #{gpt2_model_pipe_forward.11} parent=5 // pred_check
        _
      $region10: #{gpt2_model_pipe_forward.11} parent=5 // pred_check_branch
        %187 = sbr.rel (%p184) target = $region12
      $region11: #{gpt2_model_pipe_forward.11} parent=5 // pred_region
        %s188 = ssub.s32 %s22, 1
        // Predicated region
        $region13: #{gpt2_model_pipe_forward.11} parent=11 // pred_check
          %p189 = pneg %p118
        $region14: #{gpt2_model_pipe_forward.11} parent=11 // pred_check_branch
          %191 = sbr.rel (%p189) target = $region16
        $region15: #{gpt2_model_pipe_forward.11} parent=11 // pred_region
          %s193 = ssub.s32 16, 16
          %194 = vsyncadd [#allocation7], %s193
          %s196 = sshll.u32 [#allocation8], 4
          %s197 = int_to_ptr.vmem [resolvable:$true] %s196
          %199 = dma.hbm_to_vmem [thread:$0]  %s2, 16, %s197, [#allocation7]
        $region16: #{gpt2_model_pipe_forward.11} parent=11 // pred_fallthru
          _
      $region12: #{gpt2_model_pipe_forward.11} parent=5 // pred_fallthru
        _
      %p200 = scmp.lt.s32.totalorder %s22, 8
      // Predicated region
      $region17: #{gpt2_model_pipe_forward.11} parent=5 // pred_check
        %p201 = pneg %p200
      $region18: #{gpt2_model_pipe_forward.11} parent=5 // pred_check_branch
        %203 = sbr.rel (%p201) target = $region20
      $region19: #{gpt2_model_pipe_forward.11} parent=5 // pred_region
        // Predicated region
        $region21: #{gpt2_model_pipe_forward.11} parent=19 // pred_check
          %p204 = pneg %p65
        $region22: #{gpt2_model_pipe_forward.11} parent=19 // pred_check_branch
          %206 = sbr.rel (%p204) target = $region24
        $region23: #{gpt2_model_pipe_forward.11} parent=19 // pred_region
          %s207 = sand.u32 %s55, 1
          %s208 = scalar_lea.sflag [#allocation4], %s207
          %s209 = sand.u32 %s55, 1
          %s210 = smul.addr %s209, 4
          %s211 = scalar_lea.vmem [#allocation3], %s210
          %s213 = ssub.s32 64, 64
          %214 = vsyncadd %s208, %s213
          %s215 = sadd.s32 %s30, %s31
          %s216 = smul.addr %s29, 4
          %s217 = sadd.s32 %s215, %s216
          %s218 = smul.addr %s217, 64
          %s219 = scalar_lea.hbm %s0, %s218
          %s221 = sshll.u32 %s211, 4
          %s222 = int_to_ptr.vmem [resolvable:$true] %s221
          %224 = dma.hbm_to_vmem [thread:$0]  %s219, 64, %s222, %s208
        $region24: #{gpt2_model_pipe_forward.11} parent=19 // pred_fallthru
          _
        // Predicated region
        $region25: #{gpt2_model_pipe_forward.11} parent=19 // pred_check
          %p225 = pneg %p91
        $region26: #{gpt2_model_pipe_forward.11} parent=19 // pred_check_branch
          %227 = sbr.rel (%p225) target = $region28
        $region27: #{gpt2_model_pipe_forward.11} parent=19 // pred_region
          %s228 = sand.u32 %s22, 1
          %s229 = scalar_lea.sflag [#allocation7], %s228
          %s230 = sand.u32 %s81, 1
          %s231 = smul.addr %s230, 4
          %s232 = scalar_lea.vmem [#allocation6], %s231
          %s234 = ssub.s32 64, 64
          %235 = vsyncadd %s229, %s234
          %s236 = smul.addr %s31, 64
          %s237 = scalar_lea.hbm %s1, %s236
          %s239 = sshll.u32 %s232, 4
          %s240 = int_to_ptr.vmem [resolvable:$true] %s239
          %242 = dma.hbm_to_vmem [thread:$0]  %s237, 64, %s240, %s229
        $region28: #{gpt2_model_pipe_forward.11} parent=19 // pred_fallthru
          _
        // Predicated region
        $region29: #{gpt2_model_pipe_forward.11} parent=19 // pred_check
          %p243 = pneg %p140
        $region30: #{gpt2_model_pipe_forward.11} parent=19 // pred_check_branch
          %245 = sbr.rel (%p243) target = $region32
        $region31: #{gpt2_model_pipe_forward.11} parent=19 // pred_region
          %s246 = sand.u32 %s130, 1
          %s247 = scalar_lea.sflag [#allocation10], %s246
          %s248 = sand.u32 %s130, 1
          %s249 = smul.addr %s248, 4
          %s250 = scalar_lea.vmem [#allocation9], %s249
          %s251 = sadd.s32 %s29, %s30
          %s253 = ssub.s32 64, 64
          %254 = vsyncadd %s247, %s253
          %s255 = smul.addr %s251, 64
          %s256 = scalar_lea.hbm %s3, %s255
          %s258 = sshll.u32 %s250, 4
          %s259 = int_to_ptr.vmem [resolvable:$true] %s258
          %261 = dma.hbm_to_vmem [thread:$0]  %s256, 64, %s259, %s247
        $region32: #{gpt2_model_pipe_forward.11} parent=19 // pred_fallthru
          _
      $region20: #{gpt2_model_pipe_forward.11} parent=5 // pred_fallthru
        _
      %p262 = scmp.le.s32.totalorder 1, %s22
      %p263 = scmp.lt.s32.totalorder %s22, 9
      %p264 = pnand %p262, %p263
      %p265 = pneg %p264
      // Predicated region
      $region33: #{gpt2_model_pipe_forward.11} parent=5 // pred_check
        _
      $region34: #{gpt2_model_pipe_forward.11} parent=5 // pred_check_branch
        %267 = sbr.rel (%p264) target = $region36
      $region35: #{gpt2_model_pipe_forward.11} parent=5 // pred_region
        %s268 = ssub.s32 %s22, 1
        %s269 = sand.u32 %s58, 1
        %s270 = scalar_lea.sflag [#allocation4], %s269
        %s271 = sand.u32 %s58, 1
        %s272 = smul.addr %s271, 4
        %s273 = scalar_lea.vmem [#allocation3], %s272
        // Predicated region
        $region37: #{gpt2_model_pipe_forward.11} parent=35 // pred_check
          %p274 = pneg %p71
        $region38: #{gpt2_model_pipe_forward.11} parent=35 // pred_check_branch
          %276 = sbr.rel (%p274) target = $region40
        $region39: #{gpt2_model_pipe_forward.11} parent=35 // pred_region
          %277 = dma.done %s270, 64
        $region40: #{gpt2_model_pipe_forward.11} parent=35 // pred_fallthru
          _
        %s278 = sand.u32 %s27, 1
        %s279 = scalar_lea.sflag [#allocation7], %s278
        %s280 = sand.u32 %s84, 1
        %s281 = smul.addr %s280, 4
        %s282 = scalar_lea.vmem [#allocation6], %s281
        // Predicated region
        $region41: #{gpt2_model_pipe_forward.11} parent=35 // pred_check
          %p283 = pneg %p97
        $region42: #{gpt2_model_pipe_forward.11} parent=35 // pred_check_branch
          %285 = sbr.rel (%p283) target = $region44
        $region43: #{gpt2_model_pipe_forward.11} parent=35 // pred_region
          %286 = dma.done %s279, 64
        $region44: #{gpt2_model_pipe_forward.11} parent=35 // pred_fallthru
          _
        // Predicated region
        $region45: #{gpt2_model_pipe_forward.11} parent=35 // pred_check
          %p287 = pneg %p118
        $region46: #{gpt2_model_pipe_forward.11} parent=35 // pred_check_branch
          %289 = sbr.rel (%p287) target = $region48
        $region47: #{gpt2_model_pipe_forward.11} parent=35 // pred_region
          %290 = dma.done [#allocation7], 16
        $region48: #{gpt2_model_pipe_forward.11} parent=35 // pred_fallthru
          _
        %s291 = sand.u32 %s133, 1
        %s292 = scalar_lea.sflag [#allocation10], %s291
        %s293 = sand.u32 %s133, 1
        %s294 = smul.addr %s293, 4
        %s295 = scalar_lea.vmem [#allocation9], %s294
        // Predicated region
        $region49: #{gpt2_model_pipe_forward.11} parent=35 // pred_check
          %p296 = pneg %p146
        $region50: #{gpt2_model_pipe_forward.11} parent=35 // pred_check_branch
          %298 = sbr.rel (%p296) target = $region52
        $region51: #{gpt2_model_pipe_forward.11} parent=35 // pred_region
          %299 = dma.done %s292, 64
        $region52: #{gpt2_model_pipe_forward.11} parent=35 // pred_fallthru
          _
        %s300 = sand.u32 %s58, 1
        %s301 = scalar_lea.sflag [#allocation4], %s300
        %s302 = sand.u32 %s58, 1
        %s303 = smul.addr %s302, 4
        %s304 = scalar_lea.vmem [#allocation3], %s303
        %p305 = pneg %p71
        %p306 = pneg %p68
        %s307 = sand.u32 %s27, 1
        %s308 = scalar_lea.sflag [#allocation7], %s307
        %s309 = sand.u32 %s84, 1
        %s310 = smul.addr %s309, 4
        %s311 = scalar_lea.vmem [#allocation6], %s310
        %p312 = pneg %p97
        %p313 = pneg %p94
        %p314 = pneg %p118
        %p315 = pneg %p115
        %s316 = sand.u32 %s133, 1
        %s317 = scalar_lea.sflag [#allocation10], %s316
        %s318 = sand.u32 %s133, 1
        %s319 = smul.addr %s318, 4
        %s320 = scalar_lea.vmem [#allocation9], %s319
        %p321 = pneg %p146
        %p322 = pneg %p143
        %p323 = pneg %p174
        %p324 = pneg %p171
        %s325 = sand.u32 %s161, 1
        %s326 = scalar_lea.sflag [#allocation5], %s325
        %s327 = sand.u32 %s161, 1
        %s328 = smul.addr %s327, 4
        %s329 = scalar_lea.vmem [#allocation11], %s328
        %s330 = sadd.s32 %s32, %s33
        %s331 = sadd.s32 %s32, %s33
        %p333 = scmp.eq.s32.totalorder %s34, 0
        // Predicated region
        $region53: #{gpt2_model_pipe_forward.11} parent=35 // pred_check
          %p334 = pneg %p333
        $region54: #{gpt2_model_pipe_forward.11} parent=35 // pred_check_branch
          %336 = sbr.rel (%p334) target = $region56
        $region55: #{gpt2_model_pipe_forward.11} parent=35 // pred_region
          %vm337 = vcmask 261120
          %338 = vst.msk [vmem:[#allocation2] sm:$0xff] %vm337, 0.0
        $region56: #{gpt2_model_pipe_forward.11} parent=35 // pred_fallthru
          _
        %v339 = vld [vmem:[#allocation2] sm:$0xff]
        %v340 = vld [vmem:[%s273] sm:$0xf]
        %v341 = vld [vmem:[%s282] sm:$0xf]
        %vm342 = vcmask 64512
        %v344 = vsel %vm342, %v340, 0
        %vm346 = vcmask 1043456
        %v348 = vsel %vm346, %v341, 0
        %350 = vmatprep.subr.bf16.mxu0 0
        %351 = vmatpush1.bf16.msra.mxu0 %v348
        %352 = vmatprep.subr.bf16.mxu0 0
        %353 = vmatpush1.bf16.msra.mxu0 0
        %354 = vmatprep.subr.bf16.mxu0 0
        %355 = vmatpush1.bf16.msra.mxu0 0
        %356 = vmatprep.subr.bf16.mxu0 0
        %357 = vmatpush1.bf16.msra.mxu0 0
        %358 = vmatprep.subr.bf16.mxu0 0
        %359 = vmatpush1.bf16.msra.mxu0 0
        %360 = vmatprep.subr.bf16.mxu0 0
        %361 = vmatpush1.bf16.msra.mxu0 0
        %362 = vmatprep.subr.bf16.mxu0 0
        %363 = vmatpush1.bf16.msra.mxu0 0
        %364 = vmatprep.subr.bf16.mxu0 0
        %365 = vmatpush1.bf16.msra.mxu0 0
        %366 = vmatprep.subr.bf16.mxu0 0
        %367 = vmatpush1.bf16.msra.mxu0 0
        %368 = vmatprep.subr.bf16.mxu0 0
        %369 = vmatpush1.bf16.msra.mxu0 0
        %370 = vmatprep.subr.bf16.mxu0 0
        %371 = vmatpush1.bf16.msra.mxu0 0
        %372 = vmatprep.subr.bf16.mxu0 0
        %373 = vmatpush1.bf16.msra.mxu0 0
        %374 = vmatprep.subr.bf16.mxu0 0
        %375 = vmatpush1.bf16.msra.mxu0 0
        %376 = vmatprep.subr.bf16.mxu0 0
        %377 = vmatpush1.bf16.msra.mxu0 0
        %378 = vmatprep.subr.bf16.mxu0 0
        %379 = vmatpush1.bf16.msra.mxu0 0
        %380 = vmatprep.subr.bf16.mxu0 0
        %381 = vmatpush1.bf16.msra.mxu0 0
        %382 = vmatprep.mubr.bf16.mxu0 0
        %383 = vmatmul.mubr.bf16.gmra.mrb[0].mxu0 %v344
        %v384 = vpop.f32.mrb[0].mxu0
        %v385 = vadd.f32 0.0, %v384
        %v386 = vpop.f32.mrb[0].mxu0
        %v387 = vpop.f32.mrb[0].mxu0
        %v388 = vpop.f32.mrb[0].mxu0
        %389 = vdwg.mxu0
        %v390 = vadd.f32 %v339, %v385
        %vm391 = vcmask 261120
        %392 = vst.msk [vmem:[#allocation2] sm:$0xff] %vm391, %v390
        %p393 = scmp.eq.s32.totalorder %s34, 3
        // Predicated region
        $region57: #{gpt2_model_pipe_forward.11} parent=35 // pred_check
          %p394 = pneg %p393
        $region58: #{gpt2_model_pipe_forward.11} parent=35 // pred_check_branch
          %396 = sbr.rel (%p394) target = $region60
        $region59: #{gpt2_model_pipe_forward.11} parent=35 // pred_region
          %v397 = vld [vmem:[#allocation2] sm:$0xff]
          %v398 = vld [vmem:[#allocation8] sm:$0x1]
          %v400 = vlaneseq
          %v401 = vshrl.u32 %v400, 7
          %v402 = vsub.s32 0, %v401
          %v403 = vrot.slane %v398, %v402
          %v405 = vadd.f32 %v397, %v403
          %v406 = vld [vmem:[%s295] sm:$0xf]
          %v407 = vunpack.c.l.bf16 %v406
          %v408 = vadd.f32 %v405, %v407
          %v409 = vpack.c.bf16 %v408, %v408
          %vm410 = vcmask 257024
          %411 = vst.msk [vmem:[%s329] sm:$0xf] %vm410, %v409
        $region60: #{gpt2_model_pipe_forward.11} parent=35 // pred_fallthru
          _
        %s412 = sand.u32 %s161, 1
        %s413 = scalar_lea.sflag [#allocation5], %s412
        %s414 = sand.u32 %s161, 1
        %s415 = smul.addr %s414, 4
        %s416 = scalar_lea.vmem [#allocation11], %s415
        // Predicated region
        $region61: #{gpt2_model_pipe_forward.11} parent=35 // pred_check
          %p417 = pneg %p171
        $region62: #{gpt2_model_pipe_forward.11} parent=35 // pred_check_branch
          %419 = sbr.rel (%p417) target = $region64
        $region63: #{gpt2_model_pipe_forward.11} parent=35 // pred_region
          %s420 = sadd.s32 %s32, %s33
          %s422 = ssub.s32 64, 64
          %423 = vsyncadd %s413, %s422
          %s424 = smul.addr %s420, 64
          %s425 = scalar_lea.hbm %s4, %s424
          %s427 = sshll.u32 %s416, 4
          %s428 = int_to_ptr.vmem [resolvable:$true] %s427
          %430 = dma.vmem_to_hbm [thread:$0]  %s428, 64, %s425, %s413
        $region64: #{gpt2_model_pipe_forward.11} parent=35 // pred_fallthru
          _
      $region36: #{gpt2_model_pipe_forward.11} parent=5 // pred_fallthru
        _
      %p431 = scmp.le.s32.totalorder 2, %s22
      // Predicated region
      $region65: #{gpt2_model_pipe_forward.11} parent=5 // pred_check
        %p432 = pneg %p431
      $region66: #{gpt2_model_pipe_forward.11} parent=5 // pred_check_branch
        %434 = sbr.rel (%p432) target = $region68
      $region67: #{gpt2_model_pipe_forward.11} parent=5 // pred_region
        %s435 = ssub.s32 %s22, 2
        // Predicated region
        $region69: #{gpt2_model_pipe_forward.11} parent=67 // pred_check
          %p436 = pneg %p177
        $region70: #{gpt2_model_pipe_forward.11} parent=67 // pred_check_branch
          %438 = sbr.rel (%p436) target = $region72
        $region71: #{gpt2_model_pipe_forward.11} parent=67 // pred_region
          %s439 = sand.u32 %s162, 1
          %s440 = scalar_lea.sflag [#allocation5], %s439
          %s441 = sand.u32 %s162, 1
          %s442 = smul.addr %s441, 4
          %s443 = scalar_lea.vmem [#allocation11], %s442
          %444 = dma.done %s440, 64
        $region72: #{gpt2_model_pipe_forward.11} parent=67 // pred_fallthru
          _
      $region68: #{gpt2_model_pipe_forward.11} parent=5 // pred_fallthru
        _
    $region6: #{gpt2_model_pipe_forward.11} parent=1 // loop_footer
      %s26 = sadd.s32 1, %s22
    $region7: #{gpt2_model_pipe_forward.11} parent=1 // loop_footer_branch
      %21 = sbr.rel target = $region3
    $region8: #{gpt2_model_pipe_forward.11} parent=1 // loop_exit
      _
    %445 = vsyncpa [#allocation4], 1
    %s446 = scalar_lea.sflag [#allocation4], 1
    %447 = vsyncpa %s446, 1
    %448 = vsyncpa [#allocation7], 1
    %s449 = scalar_lea.sflag [#allocation7], 1
    %450 = vsyncpa %s449, 1
    %451 = vsyncpa [#allocation10], 1
    %s452 = scalar_lea.sflag [#allocation10], 1
    %453 = vsyncpa %s452, 1
    %454 = vsyncpa [#allocation5], 1
    %s455 = scalar_lea.sflag [#allocation5], 1
    %456 = vsyncpa %s455, 1

// kernel: gpt2_model_pipe_forward.10
$region0: #{gpt2_model_pipe_forward.10}
  #allocation0 [shape = 'u32[]', space=smem, size = 0x4, offset = 0x4, fixed_abs, tag = 'smem constant byte address 0x4 - core index']
  #allocation1 [shape = 'u32[144,128]{1,0:T(1,128)}', space=vmem, size = 0x12000, scoped, tag = 'internal scratch']
  #allocation2 [shape = 'f32[8,1]{1,0:T(8,128)}', space=vmem, size = 0x1000, scoped, tag = 'scratch operand']
  #allocation3 [shape = 'f32[8,1]{1,0:T(8,128)}', space=vmem, size = 0x1000, scoped, tag = 'scratch operand']
  #allocation4 [shape = 'f32[8,8]{1,0:T(8,128)}', space=vmem, size = 0x1000, scoped, tag = 'scratch operand']
  %s0 = inlined_call_operand.hbm [shape: bf16[2,4,8,8], index: 0, kind: input, shape index: {}]
  %s1 = inlined_call_operand.hbm [shape: bf16[2,4,8,8], index: 1, kind: input, shape index: {}]
  %s2 = inlined_call_operand.hbm [shape: bf16[2,4,8,8], index: 2, kind: input, shape index: {}]
  %s3 = inlined_call_operand.hbm [shape: bf16[2,4,8,8], index: 3, kind: output, shape index: {}]
  %s4 = sld [smem:[#allocation0]]
  $region69: #{gpt2_model_pipe_forward.10} parent=0
    _
  %s6 = ssub.s32 1, %s4
  %s7 = scalar_select 0, %s6, %s4
  $region1: #{gpt2_model_pipe_forward.10} parent=0
    #allocation5 [shape = 'u8[4096]{0}', space=vmem, size = 0x1000, scoped, tag = 'input window, operand 0']
    #allocation6 [shape = 's32[2]{0}', space=sflag, size = 0x8, scoped, tag = 'scoped memory for gpt2_model_pipe_forward.10']
    #allocation7 [shape = 's32[2]{0}', space=sflag, size = 0x8, scoped, tag = 'scoped memory for gpt2_model_pipe_forward.10']
    #allocation8 [shape = 'u8[4096]{0}', space=vmem, size = 0x1000, scoped, tag = 'input window, operand 1']
    #allocation9 [shape = 's32[2]{0}', space=sflag, size = 0x8, scoped, tag = 'scoped memory for gpt2_model_pipe_forward.10']
    #allocation10 [shape = 'u8[4096]{0}', space=vmem, size = 0x1000, scoped, tag = 'input window, operand 2']
    #allocation11 [shape = 'u8[4096]{0}', space=vmem, size = 0x1000, scoped, tag = 'output window, operand 0']
    %8 = vsyncpa [#allocation6], 0
    %s9 = scalar_lea.sflag [#allocation6], 1
    %10 = vsyncpa %s9, 0
    %11 = vsyncpa [#allocation9], 0
    %s12 = scalar_lea.sflag [#allocation9], 1
    %13 = vsyncpa %s12, 0
    %14 = vsyncpa [#allocation7], 0
    %s15 = scalar_lea.sflag [#allocation7], 1
    %16 = vsyncpa %s15, 0
    loop: start=0, step=1, limit=10
    $region2: #{gpt2_model_pipe_forward.10} parent=1 // loop_pre_header
      _
    $region3: #{gpt2_model_pipe_forward.10} parent=1 // loop_header
      %s18 = sphi 0, %s22
      %p19 = scmp.ge.s32.totalorder %s18, 10
      %s25 = sphi 0, %s51
      %s26 = sphi 0, %s47
      %s27 = sphi 0, %s43
      %s28 = sphi 0, %s39
      %s29 = sphi 0, %s25
      %s30 = sphi 0, %s26
      %s31 = sphi 0, %s27
      %s32 = sphi 0, %s28
      %s33 = sphi 0, %s29
      %s34 = sphi 0, %s30
      %s35 = sphi 0, %s31
      %s36 = sphi 0, %s32
      %s58 = sphi 0, %s60
      %s61 = sphi 0, %s58
      %s62 = sphi 0, %s61
      %s78 = sphi 0, %s62
      %s88 = sphi 0, %s90
      %s91 = sphi 0, %s88
      %s92 = sphi 0, %s91
      %s108 = sphi 0, %s92
      %s118 = sphi 0, %s120
      %s121 = sphi 0, %s118
      %s122 = sphi 0, %s121
      %s138 = sphi 0, %s122
      %s148 = sphi 0, %s150
      %s151 = sphi 0, %s148
      %s152 = sphi 0, %s151
      %s168 = sphi 0, %s152
    $region4: #{gpt2_model_pipe_forward.10} parent=1 // loop_header_branch
      %21 = sbr.rel (%p19) target = $region8
    $region5: #{gpt2_model_pipe_forward.10} parent=1 // loop_body
      %s23 = ssub.s32 %s18, 1
      %s24 = ssub.s32 %s18, 2
      %s37 = sadd.s32 1, %s28
      %p38 = scmp.ge.s32.totalorder %s37, 1
      %s39 = scalar_select %p38, 0, %s37
      %s40 = sadd.s32 1, %s27
      %s41 = scalar_select %p38, %s40, %s27
      %p42 = scmp.ge.s32.totalorder %s41, 1
      %s43 = scalar_select %p42, 0, %s41
      %s44 = sadd.s32 1, %s26
      %s45 = scalar_select %p42, %s44, %s26
      %p46 = scmp.ge.s32.totalorder %s45, 4
      %s47 = scalar_select %p46, 0, %s45
      %s48 = sadd.s32 1, %s25
      %s49 = scalar_select %p46, %s48, %s25
      %p50 = scmp.ge.s32.totalorder %s49, 2
      %s51 = scalar_select %p50, 0, %s49
      %s52 = ssub.s32 %s25, %s51
      %s53 = ssub.s32 %s26, %s47
      %s54 = sor.u32 %s52, %s53
      %s55 = ssub.s32 %s27, %s43
      %s56 = sor.u32 %s54, %s55
      %p57 = scmp.eq.s32.totalorder %s56, 0
      %s59 = sadd.s32 %s58, 1
      %s60 = scalar_select %p57, %s58, %s59
      %p63 = pneg %p57
      %p64 = scmp.eq.s32.totalorder %s18, 7
      %p65 = por %p63, %p64
      %p66 = scmp.ne.s32.totalorder %s58, %s61
      %p67 = scmp.eq.s32.totalorder %s18, 0
      %p68 = por %p66, %p67
      %p69 = scmp.ne.s32.totalorder %s58, %s61
      %p70 = scmp.eq.s32.totalorder %s23, 7
      %p71 = por %p69, %p70
      %p72 = scmp.ne.s32.totalorder %s61, %s62
      %p73 = scmp.eq.s32.totalorder %s23, 0
      %p74 = por %p72, %p73
      %p75 = scmp.ne.s32.totalorder %s61, %s62
      %p76 = scmp.eq.s32.totalorder %s24, 7
      %p77 = por %p75, %p76
      %p79 = scmp.ne.s32.totalorder %s62, %s78
      %p80 = scmp.eq.s32.totalorder %s24, 0
      %p81 = por %p79, %p80
      %s82 = ssub.s32 %s25, %s51
      %s83 = ssub.s32 %s26, %s47
      %s84 = sor.u32 %s82, %s83
      %s85 = ssub.s32 %s28, %s39
      %s86 = sor.u32 %s84, %s85
      %p87 = scmp.eq.s32.totalorder %s86, 0
      %s89 = sadd.s32 %s88, 1
      %s90 = scalar_select %p87, %s88, %s89
      %p93 = pneg %p87
      %p94 = scmp.eq.s32.totalorder %s18, 7
      %p95 = por %p93, %p94
      %p96 = scmp.ne.s32.totalorder %s88, %s91
      %p97 = scmp.eq.s32.totalorder %s18, 0
      %p98 = por %p96, %p97
      %p99 = scmp.ne.s32.totalorder %s88, %s91
      %p100 = scmp.eq.s32.totalorder %s23, 7
      %p101 = por %p99, %p100
      %p102 = scmp.ne.s32.totalorder %s91, %s92
      %p103 = scmp.eq.s32.totalorder %s23, 0
      %p104 = por %p102, %p103
      %p105 = scmp.ne.s32.totalorder %s91, %s92
      %p106 = scmp.eq.s32.totalorder %s24, 7
      %p107 = por %p105, %p106
      %p109 = scmp.ne.s32.totalorder %s92, %s108
      %p110 = scmp.eq.s32.totalorder %s24, 0
      %p111 = por %p109, %p110
      %s112 = ssub.s32 %s25, %s51
      %s113 = ssub.s32 %s26, %s47
      %s114 = sor.u32 %s112, %s113
      %s115 = ssub.s32 %s28, %s39
      %s116 = sor.u32 %s114, %s115
      %p117 = scmp.eq.s32.totalorder %s116, 0
      %s119 = sadd.s32 %s118, 1
      %s120 = scalar_select %p117, %s118, %s119
      %p123 = pneg %p117
      %p124 = scmp.eq.s32.totalorder %s18, 7
      %p125 = por %p123, %p124
      %p126 = scmp.ne.s32.totalorder %s118, %s121
      %p127 = scmp.eq.s32.totalorder %s18, 0
      %p128 = por %p126, %p127
      %p129 = scmp.ne.s32.totalorder %s118, %s121
      %p130 = scmp.eq.s32.totalorder %s23, 7
      %p131 = por %p129, %p130
      %p132 = scmp.ne.s32.totalorder %s121, %s122
      %p133 = scmp.eq.s32.totalorder %s23, 0
      %p134 = por %p132, %p133
      %p135 = scmp.ne.s32.totalorder %s121, %s122
      %p136 = scmp.eq.s32.totalorder %s24, 7
      %p137 = por %p135, %p136
      %p139 = scmp.ne.s32.totalorder %s122, %s138
      %p140 = scmp.eq.s32.totalorder %s24, 0
      %p141 = por %p139, %p140
      %s142 = ssub.s32 %s25, %s51
      %s143 = ssub.s32 %s26, %s47
      %s144 = sor.u32 %s142, %s143
      %s145 = ssub.s32 %s27, %s43
      %s146 = sor.u32 %s144, %s145
      %p147 = scmp.eq.s32.totalorder %s146, 0
      %s149 = sadd.s32 %s148, 1
      %s150 = scalar_select %p147, %s148, %s149
      %p153 = pneg %p147
      %p154 = scmp.eq.s32.totalorder %s18, 7
      %p155 = por %p153, %p154
      %p156 = scmp.ne.s32.totalorder %s148, %s151
      %p157 = scmp.eq.s32.totalorder %s18, 0
      %p158 = por %p156, %p157
      %p159 = scmp.ne.s32.totalorder %s148, %s151
      %p160 = scmp.eq.s32.totalorder %s23, 7
      %p161 = por %p159, %p160
      %p162 = scmp.ne.s32.totalorder %s151, %s152
      %p163 = scmp.eq.s32.totalorder %s23, 0
      %p164 = por %p162, %p163
      %p165 = scmp.ne.s32.totalorder %s151, %s152
      %p166 = scmp.eq.s32.totalorder %s24, 7
      %p167 = por %p165, %p166
      %p169 = scmp.ne.s32.totalorder %s152, %s168
      %p170 = scmp.eq.s32.totalorder %s24, 0
      %p171 = por %p169, %p170
      %p172 = scmp.le.s32.totalorder 1, %s18
      %p173 = scmp.lt.s32.totalorder %s18, 9
      %p174 = pnand %p172, %p173
      %p175 = pneg %p174
      // Predicated region
      $region9: #{gpt2_model_pipe_forward.10} parent=5 // pred_check
        _
      $region10: #{gpt2_model_pipe_forward.10} parent=5 // pred_check_branch
        %177 = sbr.rel (%p174) target = $region12
      $region11: #{gpt2_model_pipe_forward.10} parent=5 // pred_region
        %s178 = ssub.s32 %s18, 1
      $region12: #{gpt2_model_pipe_forward.10} parent=5 // pred_fallthru
        _
      %p179 = scmp.lt.s32.totalorder %s18, 8
      // Predicated region
      $region13: #{gpt2_model_pipe_forward.10} parent=5 // pred_check
        %p180 = pneg %p179
      $region14: #{gpt2_model_pipe_forward.10} parent=5 // pred_check_branch
        %182 = sbr.rel (%p180) target = $region16
      $region15: #{gpt2_model_pipe_forward.10} parent=5 // pred_region
        // Predicated region
        $region17: #{gpt2_model_pipe_forward.10} parent=15 // pred_check
          %p183 = pneg %p68
        $region18: #{gpt2_model_pipe_forward.10} parent=15 // pred_check_branch
          %185 = sbr.rel (%p183) target = $region20
        $region19: #{gpt2_model_pipe_forward.10} parent=15 // pred_region
          %s186 = sand.u32 %s58, 1
          %s187 = scalar_lea.sflag [#allocation6], %s186
          %s188 = sand.u32 %s58, 1
          %s189 = smul.addr %s188, 4
          %s190 = scalar_lea.vmem [#allocation5], %s189
          %s192 = ssub.s32 64, 64
          %193 = vsyncadd %s187, %s192
          %s194 = sadd.s32 %s27, %s26
          %s195 = smul.addr %s25, 4
          %s196 = sadd.s32 %s194, %s195
          %s197 = smul.addr %s196, 64
          %s198 = scalar_lea.hbm %s0, %s197
          %s200 = sshll.u32 %s190, 4
          %s201 = int_to_ptr.vmem [resolvable:$true] %s200
          %203 = dma.hbm_to_vmem [thread:$0]  %s198, 64, %s201, %s187
        $region20: #{gpt2_model_pipe_forward.10} parent=15 // pred_fallthru
          _
        // Predicated region
        $region21: #{gpt2_model_pipe_forward.10} parent=15 // pred_check
          %p204 = pneg %p98
        $region22: #{gpt2_model_pipe_forward.10} parent=15 // pred_check_branch
          %206 = sbr.rel (%p204) target = $region24
        $region23: #{gpt2_model_pipe_forward.10} parent=15 // pred_region
          %s207 = sand.u32 %s18, 1
          %s208 = scalar_lea.sflag [#allocation9], %s207
          %s209 = sand.u32 %s88, 1
          %s210 = smul.addr %s209, 4
          %s211 = scalar_lea.vmem [#allocation8], %s210
          %s213 = ssub.s32 64, 64
          %214 = vsyncadd %s208, %s213
          %s215 = sadd.s32 %s28, %s26
          %s216 = smul.addr %s25, 4
          %s217 = sadd.s32 %s215, %s216
          %s218 = smul.addr %s217, 64
          %s219 = scalar_lea.hbm %s1, %s218
          %s221 = sshll.u32 %s211, 4
          %s222 = int_to_ptr.vmem [resolvable:$true] %s221
          %224 = dma.hbm_to_vmem [thread:$0]  %s219, 64, %s222, %s208
        $region24: #{gpt2_model_pipe_forward.10} parent=15 // pred_fallthru
          _
        // Predicated region
        $region25: #{gpt2_model_pipe_forward.10} parent=15 // pred_check
          %p225 = pneg %p128
        $region26: #{gpt2_model_pipe_forward.10} parent=15 // pred_check_branch
          %227 = sbr.rel (%p225) target = $region28
        $region27: #{gpt2_model_pipe_forward.10} parent=15 // pred_region
          %s228 = sand.u32 %s18, 1
          %s229 = scalar_lea.sflag [#allocation9], %s228
          %s230 = sand.u32 %s118, 1
          %s231 = smul.addr %s230, 4
          %s232 = scalar_lea.vmem [#allocation10], %s231
          %s234 = ssub.s32 64, 64
          %235 = vsyncadd %s229, %s234
          %s236 = sadd.s32 %s28, %s26
          %s237 = smul.addr %s25, 4
          %s238 = sadd.s32 %s236, %s237
          %s239 = smul.addr %s238, 64
          %s240 = scalar_lea.hbm %s2, %s239
          %s242 = sshll.u32 %s232, 4
          %s243 = int_to_ptr.vmem [resolvable:$true] %s242
          %245 = dma.hbm_to_vmem [thread:$0]  %s240, 64, %s243, %s229
        $region28: #{gpt2_model_pipe_forward.10} parent=15 // pred_fallthru
          _
      $region16: #{gpt2_model_pipe_forward.10} parent=5 // pred_fallthru
        _
      %p246 = scmp.le.s32.totalorder 1, %s18
      %p247 = scmp.lt.s32.totalorder %s18, 9
      %p248 = pnand %p246, %p247
      %p249 = pneg %p248
      // Predicated region
      $region29: #{gpt2_model_pipe_forward.10} parent=5 // pred_check
        _
      $region30: #{gpt2_model_pipe_forward.10} parent=5 // pred_check_branch
        %251 = sbr.rel (%p248) target = $region32
      $region31: #{gpt2_model_pipe_forward.10} parent=5 // pred_region
        %s252 = ssub.s32 %s18, 1
        %s253 = sand.u32 %s61, 1
        %s254 = scalar_lea.sflag [#allocation6], %s253
        %s255 = sand.u32 %s61, 1
        %s256 = smul.addr %s255, 4
        %s257 = scalar_lea.vmem [#allocation5], %s256
        // Predicated region
        $region33: #{gpt2_model_pipe_forward.10} parent=31 // pred_check
          %p258 = pneg %p74
        $region34: #{gpt2_model_pipe_forward.10} parent=31 // pred_check_branch
          %260 = sbr.rel (%p258) target = $region36
        $region35: #{gpt2_model_pipe_forward.10} parent=31 // pred_region
          %261 = dma.done %s254, 64
        $region36: #{gpt2_model_pipe_forward.10} parent=31 // pred_fallthru
          _
        %s262 = sand.u32 %s23, 1
        %s263 = scalar_lea.sflag [#allocation9], %s262
        %s264 = sand.u32 %s91, 1
        %s265 = smul.addr %s264, 4
        %s266 = scalar_lea.vmem [#allocation8], %s265
        // Predicated region
        $region37: #{gpt2_model_pipe_forward.10} parent=31 // pred_check
          %p267 = pneg %p104
        $region38: #{gpt2_model_pipe_forward.10} parent=31 // pred_check_branch
          %269 = sbr.rel (%p267) target = $region40
        $region39: #{gpt2_model_pipe_forward.10} parent=31 // pred_region
          %270 = dma.done %s263, 64
        $region40: #{gpt2_model_pipe_forward.10} parent=31 // pred_fallthru
          _
        %s271 = sand.u32 %s23, 1
        %s272 = scalar_lea.sflag [#allocation9], %s271
        %s273 = sand.u32 %s121, 1
        %s274 = smul.addr %s273, 4
        %s275 = scalar_lea.vmem [#allocation10], %s274
        // Predicated region
        $region41: #{gpt2_model_pipe_forward.10} parent=31 // pred_check
          %p276 = pneg %p134
        $region42: #{gpt2_model_pipe_forward.10} parent=31 // pred_check_branch
          %278 = sbr.rel (%p276) target = $region44
        $region43: #{gpt2_model_pipe_forward.10} parent=31 // pred_region
          %279 = dma.done %s272, 64
        $region44: #{gpt2_model_pipe_forward.10} parent=31 // pred_fallthru
          _
        %s280 = sand.u32 %s61, 1
        %s281 = scalar_lea.sflag [#allocation6], %s280
        %s282 = sand.u32 %s61, 1
        %s283 = smul.addr %s282, 4
        %s284 = scalar_lea.vmem [#allocation5], %s283
        %p285 = pneg %p74
        %p286 = pneg %p71
        %s287 = sand.u32 %s23, 1
        %s288 = scalar_lea.sflag [#allocation9], %s287
        %s289 = sand.u32 %s91, 1
        %s290 = smul.addr %s289, 4
        %s291 = scalar_lea.vmem [#allocation8], %s290
        %p292 = pneg %p104
        %p293 = pneg %p101
        %s294 = sand.u32 %s23, 1
        %s295 = scalar_lea.sflag [#allocation9], %s294
        %s296 = sand.u32 %s121, 1
        %s297 = smul.addr %s296, 4
        %s298 = scalar_lea.vmem [#allocation10], %s297
        %p299 = pneg %p134
        %p300 = pneg %p131
        %p301 = pneg %p164
        %p302 = pneg %p161
        %s303 = sand.u32 %s151, 1
        %s304 = scalar_lea.sflag [#allocation7], %s303
        %s305 = sand.u32 %s151, 1
        %s306 = smul.addr %s305, 4
        %s307 = scalar_lea.vmem [#allocation11], %s306
        %p309 = scmp.eq.s32.totalorder %s32, 0
        // Predicated region
        $region45: #{gpt2_model_pipe_forward.10} parent=31 // pred_check
          %p310 = pneg %p309
        $region46: #{gpt2_model_pipe_forward.10} parent=31 // pred_check_branch
          %312 = sbr.rel (%p310) target = $region48
        $region47: #{gpt2_model_pipe_forward.10} parent=31 // pred_region
          %vm313 = vcmask 7168
          %314 = vst.msk [vmem:[#allocation2] sm:$0xff] %vm313, -inf
          %315 = vst.msk [vmem:[#allocation3] sm:$0xff] %vm313, 0.0
          %vm316 = vcmask 64512
          %317 = vst.msk [vmem:[#allocation4] sm:$0xff] %vm316, 0.0
        $region48: #{gpt2_model_pipe_forward.10} parent=31 // pred_fallthru
          _
        %s318 = smul.u32 %s31, 8
        %s319 = smul.u32 %s32, 8
        %s320 = sadd.s32 %s318, 7
        %p321 = scmp.le.s32.totalorder %s319, %s320
        // Predicated region
        $region49: #{gpt2_model_pipe_forward.10} parent=31 // pred_check
          %p322 = pneg %p321
        $region50: #{gpt2_model_pipe_forward.10} parent=31 // pred_check_branch
          %324 = sbr.rel (%p322) target = $region52
        $region51: #{gpt2_model_pipe_forward.10} parent=31 // pred_region
          %v325 = vld [vmem:[%s257] sm:$0xf]
          %v326 = vld [vmem:[%s266] sm:$0xf]
          %v327 = vld [vmem:[%s275] sm:$0xf]
          %vm328 = vcmask 64512
          %v330 = vsel %vm328, %v325, 0
          %v333 = vsel %vm328, %v326, 0
          %335 = vmatprep.subr.bf16.mxu0 0
          %336 = vmatpush1.bf16.xpose.msra.mxu0 %v333
          %337 = vmatprep.subr.bf16.mxu0 0
          %338 = vmatpush1.bf16.xpose.msra.mxu0 0
          %339 = vmatprep.subr.bf16.mxu0 0
          %340 = vmatpush1.bf16.xpose.msra.mxu0 0
          %341 = vmatprep.subr.bf16.mxu0 0
          %342 = vmatpush1.bf16.xpose.msra.mxu0 0
          %343 = vmatprep.subr.bf16.mxu0 0
          %344 = vmatpush1.bf16.xpose.msra.mxu0 0
          %345 = vmatprep.subr.bf16.mxu0 0
          %346 = vmatpush1.bf16.xpose.msra.mxu0 0
          %347 = vmatprep.subr.bf16.mxu0 0
          %348 = vmatpush1.bf16.xpose.msra.mxu0 0
          %349 = vmatprep.subr.bf16.mxu0 0
          %350 = vmatpush1.bf16.xpose.msra.mxu0 0
          %351 = vmatprep.subr.bf16.mxu0 0
          %352 = vmatpush1.bf16.xpose.msra.mxu0 0
          %353 = vmatprep.subr.bf16.mxu0 0
          %354 = vmatpush1.bf16.xpose.msra.mxu0 0
          %355 = vmatprep.subr.bf16.mxu0 0
          %356 = vmatpush1.bf16.xpose.msra.mxu0 0
          %357 = vmatprep.subr.bf16.mxu0 0
          %358 = vmatpush1.bf16.xpose.msra.mxu0 0
          %359 = vmatprep.subr.bf16.mxu0 0
          %360 = vmatpush1.bf16.xpose.msra.mxu0 0
          %361 = vmatprep.subr.bf16.mxu0 0
          %362 = vmatpush1.bf16.xpose.msra.mxu0 0
          %363 = vmatprep.subr.bf16.mxu0 0
          %364 = vmatpush1.bf16.xpose.msra.mxu0 0
          %365 = vmatprep.subr.bf16.mxu0 0
          %366 = vmatpush1.bf16.xpose.msra.mxu0 0
          %367 = vmatprep.mubr.bf16.mxu0 0
          %368 = vmatmul.mubr.bf16.gmra.mrb[0].mxu0 %v330
          %v369 = vpop.f32.mrb[0].mxu0
          %v370 = vadd.f32 0.0, %v369
          %v371 = vpop.f32.mrb[0].mxu0
          %v372 = vpop.f32.mrb[0].mxu0
          %v373 = vpop.f32.mrb[0].mxu0
          %374 = vdwg.mxu0
          %v375 = vmul.f32 %v370, 0.35355338
          %v376 = vlaneseq
          %v377 = vshrl.u32 %v376, 7
          %v378 = vstv %s318
          %v379 = vadd.s32 %v378, %v377
          %v380 = vlaneseq
          %v381 = vand.u32 %v380, 127
          %v382 = vstv %s319
          %v383 = vadd.s32 %v382, %v381
          %vm384 = vcmp.gt.s32.totalorder %v383, %v379
          %v385 = vsel %vm384, -3.4028235e+38, %v375
          %v386 = vld [vmem:[#allocation2] sm:$0xff]
          %v387 = vsel %vm328, %v385, -inf
          %388 = vmax.xlane.f32.xlu0 %v387
          %v389 = vpop.xlane.xlu0 %388
          %v390 = vmax.f32 %v386, %v389
          %v391 = vsub.f32 %v386, %v390
          %v392 = vmul.f32 %v391, 1.442695
          %v393 = vpow.pop %v392
          %395 = vset.pattern.permute.xlu0 0
          %396 = vperm.xlu0 %395, %v390
          %v397 = vpop.permute.xlu0 %396
          %v399 = vsub.f32 %v385, %v397
          %v400 = vmul.f32 %v399, 1.442695
          %v401 = vpow.pop %v400
          %v402 = vld [vmem:[#allocation3] sm:$0xff]
          %v403 = vmul.f32 %v393, %v402
          %v404 = vsel %vm328, %v401, 0.0
          %405 = vadd.xlane.f32.xlu0 %v404
          %v406 = vpop.xlane.xlu0 %405
          %v407 = vadd.f32 %v403, %v406
          %vm408 = vcmask 7168
          %409 = vst.msk [vmem:[#allocation3] sm:$0xff] %vm408, %v407
          %v410 = vld [vmem:[#allocation4] sm:$0xff]
          %412 = vset.pattern.permute.xlu0 0
          %413 = vperm.xlu0 %412, %v393
          %v414 = vpop.permute.xlu0 %413
          %v416 = vmul.f32 %v414, %v410
          %v417 = vpack.c.bf16 %v401, %v401
          %v419 = vsel %vm328, %v417, 0
          %vm421 = vcmask 1043456
          %v423 = vsel %vm421, %v327, 0
          %425 = vmatprep.subr.bf16.mxu0 0
          %426 = vmatpush1.bf16.msra.mxu0 %v423
          %427 = vmatprep.subr.bf16.mxu0 0
          %428 = vmatpush1.bf16.msra.mxu0 0
          %429 = vmatprep.subr.bf16.mxu0 0
          %430 = vmatpush1.bf16.msra.mxu0 0
          %431 = vmatprep.subr.bf16.mxu0 0
          %432 = vmatpush1.bf16.msra.mxu0 0
          %433 = vmatprep.subr.bf16.mxu0 0
          %434 = vmatpush1.bf16.msra.mxu0 0
          %435 = vmatprep.subr.bf16.mxu0 0
          %436 = vmatpush1.bf16.msra.mxu0 0
          %437 = vmatprep.subr.bf16.mxu0 0
          %438 = vmatpush1.bf16.msra.mxu0 0
          %439 = vmatprep.subr.bf16.mxu0 0
          %440 = vmatpush1.bf16.msra.mxu0 0
          %441 = vmatprep.subr.bf16.mxu0 0
          %442 = vmatpush1.bf16.msra.mxu0 0
          %443 = vmatprep.subr.bf16.mxu0 0
          %444 = vmatpush1.bf16.msra.mxu0 0
          %445 = vmatprep.subr.bf16.mxu0 0
          %446 = vmatpush1.bf16.msra.mxu0 0
          %447 = vmatprep.subr.bf16.mxu0 0
          %448 = vmatpush1.bf16.msra.mxu0 0
          %449 = vmatprep.subr.bf16.mxu0 0
          %450 = vmatpush1.bf16.msra.mxu0 0
          %451 = vmatprep.subr.bf16.mxu0 0
          %452 = vmatpush1.bf16.msra.mxu0 0
          %453 = vmatprep.subr.bf16.mxu0 0
          %454 = vmatpush1.bf16.msra.mxu0 0
          %455 = vmatprep.subr.bf16.mxu0 0
          %456 = vmatpush1.bf16.msra.mxu0 0
          %457 = vmatprep.mubr.bf16.mxu0 0
          %458 = vmatmul.mubr.bf16.gmra.mrb[0].mxu0 %v419
          %v459 = vpop.f32.mrb[0].mxu0
          %v460 = vadd.f32 0.0, %v459
          %v461 = vpop.f32.mrb[0].mxu0
          %v462 = vpop.f32.mrb[0].mxu0
          %v463 = vpop.f32.mrb[0].mxu0
          %464 = vdwg.mxu0
          %v465 = vadd.f32 %v416, %v460
          %466 = vst.msk [vmem:[#allocation4] sm:$0xff] %vm328, %v465
          %467 = vst.msk [vmem:[#allocation2] sm:$0xff] %vm408, %v390
        $region52: #{gpt2_model_pipe_forward.10} parent=31 // pred_fallthru
          _
        // Predicated region
        $region53: #{gpt2_model_pipe_forward.10} parent=31 // pred_check
          %p468 = pneg %p309
        $region54: #{gpt2_model_pipe_forward.10} parent=31 // pred_check_branch
          %470 = sbr.rel (%p468) target = $region56
        $region55: #{gpt2_model_pipe_forward.10} parent=31 // pred_region
          %v471 = vld [vmem:[#allocation4] sm:$0xff]
          %v472 = vld [vmem:[#allocation3] sm:$0xff]
          %v473 = vrcp.pop %v472
          %475 = vset.pattern.permute.xlu0 0
          %476 = vperm.xlu0 %475, %v473
          %v477 = vpop.permute.xlu0 %476
          %v479 = vmul.f32 %v471, %v477
          %v480 = vpack.c.bf16 %v479, %v479
          %vm481 = vcmask 60416
          %482 = vst.msk [vmem:[%s307] sm:$0xf] %vm481, %v480
        $region56: #{gpt2_model_pipe_forward.10} parent=31 // pred_fallthru
          _
        %s483 = sand.u32 %s151, 1
        %s484 = scalar_lea.sflag [#allocation7], %s483
        %s485 = sand.u32 %s151, 1
        %s486 = smul.addr %s485, 4
        %s487 = scalar_lea.vmem [#allocation11], %s486
        // Predicated region
        $region57: #{gpt2_model_pipe_forward.10} parent=31 // pred_check
          %p488 = pneg %p161
        $region58: #{gpt2_model_pipe_forward.10} parent=31 // pred_check_branch
          %490 = sbr.rel (%p488) target = $region60
        $region59: #{gpt2_model_pipe_forward.10} parent=31 // pred_region
          %s492 = ssub.s32 64, 64
          %493 = vsyncadd %s484, %s492
          %s494 = sadd.s32 %s31, %s30
          %s495 = smul.addr %s29, 4
          %s496 = sadd.s32 %s494, %s495
          %s497 = smul.addr %s496, 64
          %s498 = scalar_lea.hbm %s3, %s497
          %s500 = sshll.u32 %s487, 4
          %s501 = int_to_ptr.vmem [resolvable:$true] %s500
          %503 = dma.vmem_to_hbm [thread:$0]  %s501, 64, %s498, %s484
        $region60: #{gpt2_model_pipe_forward.10} parent=31 // pred_fallthru
          _
      $region32: #{gpt2_model_pipe_forward.10} parent=5 // pred_fallthru
        _
      %p504 = scmp.le.s32.totalorder 2, %s18
      // Predicated region
      $region61: #{gpt2_model_pipe_forward.10} parent=5 // pred_check
        %p505 = pneg %p504
      $region62: #{gpt2_model_pipe_forward.10} parent=5 // pred_check_branch
        %507 = sbr.rel (%p505) target = $region64
      $region63: #{gpt2_model_pipe_forward.10} parent=5 // pred_region
        %s508 = ssub.s32 %s18, 2
        // Predicated region
        $region65: #{gpt2_model_pipe_forward.10} parent=63 // pred_check
          %p509 = pneg %p167
        $region66: #{gpt2_model_pipe_forward.10} parent=63 // pred_check_branch
          %511 = sbr.rel (%p509) target = $region68
        $region67: #{gpt2_model_pipe_forward.10} parent=63 // pred_region
          %s512 = sand.u32 %s152, 1
          %s513 = scalar_lea.sflag [#allocation7], %s512
          %s514 = sand.u32 %s152, 1
          %s515 = smul.addr %s514, 4
          %s516 = scalar_lea.vmem [#allocation11], %s515
          %517 = dma.done %s513, 64
        $region68: #{gpt2_model_pipe_forward.10} parent=63 // pred_fallthru
          _
      $region64: #{gpt2_model_pipe_forward.10} parent=5 // pred_fallthru
        _
    $region6: #{gpt2_model_pipe_forward.10} parent=1 // loop_footer
      %s22 = sadd.s32 1, %s18
    $region7: #{gpt2_model_pipe_forward.10} parent=1 // loop_footer_branch
      %17 = sbr.rel target = $region3
    $region8: #{gpt2_model_pipe_forward.10} parent=1 // loop_exit
      _
    %518 = vsyncpa [#allocation6], 1
    %s519 = scalar_lea.sflag [#allocation6], 1
    %520 = vsyncpa %s519, 1
    %521 = vsyncpa [#allocation9], 1
    %s522 = scalar_lea.sflag [#allocation9], 1
    %523 = vsyncpa %s522, 1
    %524 = vsyncpa [#allocation7], 1
    %s525 = scalar_lea.sflag [#allocation7], 1
    %526 = vsyncpa %s525, 1

// kernel: gpt2_model_pipe_forward.9
$region0: #{gpt2_model_pipe_forward.9}
  #allocation0 [shape = 'u32[]', space=smem, size = 0x4, offset = 0x4, fixed_abs, tag = 'smem constant byte address 0x4 - core index']
  #allocation1 [shape = 'u32[144,128]{1,0:T(1,128)}', space=vmem, size = 0x12000, scoped, tag = 'internal scratch']
  #allocation2 [shape = 'bf16[8,32]{1,0:T(8,128)(2,1)}', space=vmem, size = 0x800, scoped, tag = 'scratch operand']
  %s0 = inlined_call_operand.hbm [shape: bf16[16,32], index: 0, kind: input, shape index: {}]
  %s1 = inlined_call_operand.hbm [shape: f32[1,32], index: 1, kind: input, shape index: {}]
  %s2 = inlined_call_operand.hbm [shape: f32[1,32], index: 2, kind: input, shape index: {}]
  %s3 = inlined_call_operand.hbm [shape: bf16[4,32,8], index: 3, kind: input, shape index: {}]
  %s4 = inlined_call_operand.hbm [shape: bf16[4,32,8], index: 4, kind: input, shape index: {}]
  %s5 = inlined_call_operand.hbm [shape: bf16[4,32,8], index: 5, kind: input, shape index: {}]
  %s6 = inlined_call_operand.hbm [shape: f32[4,1,8], index: 6, kind: input, shape index: {}]
  %s7 = inlined_call_operand.hbm [shape: f32[4,1,8], index: 7, kind: input, shape index: {}]
  %s8 = inlined_call_operand.hbm [shape: f32[4,1,8], index: 8, kind: input, shape index: {}]
  %s9 = inlined_call_operand.hbm [shape: bf16[2,4,8,8], index: 9, kind: output, shape index: {0}]
  %s10 = inlined_call_operand.hbm [shape: bf16[2,4,8,8], index: 10, kind: output, shape index: {1}]
  %s11 = inlined_call_operand.hbm [shape: bf16[2,4,8,8], index: 11, kind: output, shape index: {2}]
  %12 = xla_tuple %s9, %s10, %s11
  %s13 = sld [smem:[#allocation0]]
  $region125: #{gpt2_model_pipe_forward.9} parent=0
    _
  %s15 = ssub.s32 1, %s13
  %s16 = scalar_select 0, %s15, %s13
  $region1: #{gpt2_model_pipe_forward.9} parent=0
    #allocation3 [shape = 'u8[4096]{0}', space=vmem, size = 0x1000, scoped, tag = 'input window, operand 0']
    #allocation4 [shape = 's32[2]{0}', space=sflag, size = 0x8, scoped, tag = 'scoped memory for gpt2_model_pipe_forward.9']
    #allocation5 [shape = 's32[2]{0}', space=sflag, size = 0x8, scoped, tag = 'scoped memory for gpt2_model_pipe_forward.9']
    #allocation6 [shape = 'u8[512]{0}', space=vmem, size = 0x400, scoped, tag = 'input window, operand 1, single buffered']
    #allocation7 [shape = 's32[1]{0}', space=sflag, size = 0x4, scoped, tag = 'scoped memory for gpt2_model_pipe_forward.9']
    #allocation8 [shape = 'u8[512]{0}', space=vmem, size = 0x400, scoped, tag = 'input window, operand 2, single buffered']
    #allocation9 [shape = 'u8[16384]{0}', space=vmem, size = 0x4000, scoped, tag = 'input window, operand 3']
    #allocation10 [shape = 's32[2]{0}', space=sflag, size = 0x8, scoped, tag = 'scoped memory for gpt2_model_pipe_forward.9']
    #allocation11 [shape = 'u8[16384]{0}', space=vmem, size = 0x4000, scoped, tag = 'input window, operand 4']
    #allocation12 [shape = 'u8[16384]{0}', space=vmem, size = 0x4000, scoped, tag = 'input window, operand 5']
    #allocation13 [shape = 's32[2]{0}', space=sflag, size = 0x8, scoped, tag = 'scoped memory for gpt2_model_pipe_forward.9']
    #allocation14 [shape = 'u8[1024]{0}', space=vmem, size = 0x400, scoped, tag = 'input window, operand 6']
    #allocation15 [shape = 'u8[1024]{0}', space=vmem, size = 0x400, scoped, tag = 'input window, operand 7']
    #allocation16 [shape = 's32[2]{0}', space=sflag, size = 0x8, scoped, tag = 'scoped memory for gpt2_model_pipe_forward.9']
    #allocation17 [shape = 'u8[1024]{0}', space=vmem, size = 0x400, scoped, tag = 'input window, operand 8']
    #allocation18 [shape = 'u8[4096]{0}', space=vmem, size = 0x1000, scoped, tag = 'output window, operand 0']
    #allocation19 [shape = 'u8[4096]{0}', space=vmem, size = 0x1000, scoped, tag = 'output window, operand 1']
    #allocation20 [shape = 's32[2]{0}', space=sflag, size = 0x8, scoped, tag = 'scoped memory for gpt2_model_pipe_forward.9']
    #allocation21 [shape = 'u8[4096]{0}', space=vmem, size = 0x1000, scoped, tag = 'output window, operand 2']
    %17 = vsyncpa [#allocation4], 0
    %s18 = scalar_lea.sflag [#allocation4], 1
    %19 = vsyncpa %s18, 0
    %20 = vsyncpa [#allocation7], 0
    %21 = vsyncpa [#allocation10], 0
    %s22 = scalar_lea.sflag [#allocation10], 1
    %23 = vsyncpa %s22, 0
    %24 = vsyncpa [#allocation13], 0
    %s25 = scalar_lea.sflag [#allocation13], 1
    %26 = vsyncpa %s25, 0
    %27 = vsyncpa [#allocation16], 0
    %s28 = scalar_lea.sflag [#allocation16], 1
    %29 = vsyncpa %s28, 0
    %30 = vsyncpa [#allocation5], 0
    %s31 = scalar_lea.sflag [#allocation5], 1
    %32 = vsyncpa %s31, 0
    %33 = vsyncpa [#allocation20], 0
    %s34 = scalar_lea.sflag [#allocation20], 1
    %35 = vsyncpa %s34, 0
    loop: start=0, step=1, limit=10
    $region2: #{gpt2_model_pipe_forward.9} parent=1 // loop_pre_header
      _
    $region3: #{gpt2_model_pipe_forward.9} parent=1 // loop_header
      %s37 = sphi 0, %s41
      %p38 = scmp.ge.s32.totalorder %s37, 10
      %s44 = sphi 0, %s63
      %s45 = sphi 0, %s59
      %s46 = sphi 0, %s55
      %s47 = sphi 0, %s44
      %s48 = sphi 0, %s45
      %s49 = sphi 0, %s46
      %s50 = sphi 0, %s47
      %s51 = sphi 0, %s48
      %s52 = sphi 0, %s49
      %s68 = sphi 0, %s70
      %s71 = sphi 0, %s68
      %s72 = sphi 0, %s71
      %s88 = sphi 0, %s72
      %s92 = sphi 0, %s92
      %s94 = sphi 0, %s92
      %s95 = sphi 0, %s94
      %s109 = sphi 0, %s95
      %s113 = sphi 0, %s113
      %s115 = sphi 0, %s113
      %s116 = sphi 0, %s115
      %s130 = sphi 0, %s116
      %s136 = sphi 0, %s138
      %s139 = sphi 0, %s136
      %s140 = sphi 0, %s139
      %s156 = sphi 0, %s140
      %s162 = sphi 0, %s164
      %s165 = sphi 0, %s162
      %s166 = sphi 0, %s165
      %s182 = sphi 0, %s166
      %s188 = sphi 0, %s190
      %s191 = sphi 0, %s188
      %s192 = sphi 0, %s191
      %s208 = sphi 0, %s192
      %s214 = sphi 0, %s216
      %s217 = sphi 0, %s214
      %s218 = sphi 0, %s217
      %s234 = sphi 0, %s218
      %s240 = sphi 0, %s242
      %s243 = sphi 0, %s240
      %s244 = sphi 0, %s243
      %s260 = sphi 0, %s244
      %s266 = sphi 0, %s268
      %s269 = sphi 0, %s266
      %s270 = sphi 0, %s269
      %s286 = sphi 0, %s270
      %s296 = sphi 0, %s298
      %s299 = sphi 0, %s296
      %s300 = sphi 0, %s299
      %s316 = sphi 0, %s300
      %s326 = sphi 0, %s328
      %s329 = sphi 0, %s326
      %s330 = sphi 0, %s329
      %s346 = sphi 0, %s330
      %s356 = sphi 0, %s358
      %s359 = sphi 0, %s356
      %s360 = sphi 0, %s359
      %s376 = sphi 0, %s360
    $region4: #{gpt2_model_pipe_forward.9} parent=1 // loop_header_branch
      %40 = sbr.rel (%p38) target = $region8
    $region5: #{gpt2_model_pipe_forward.9} parent=1 // loop_body
      %s42 = ssub.s32 %s37, 1
      %s43 = ssub.s32 %s37, 2
      %s53 = sadd.s32 1, %s46
      %p54 = scmp.ge.s32.totalorder %s53, 4
      %s55 = scalar_select %p54, 0, %s53
      %s56 = sadd.s32 1, %s45
      %s57 = scalar_select %p54, %s56, %s45
      %p58 = scmp.ge.s32.totalorder %s57, 1
      %s59 = scalar_select %p58, 0, %s57
      %s60 = sadd.s32 1, %s44
      %s61 = scalar_select %p58, %s60, %s44
      %p62 = scmp.ge.s32.totalorder %s61, 2
      %s63 = scalar_select %p62, 0, %s61
      %s64 = sadd.s32 %s44, %s45
      %s65 = sadd.s32 %s63, %s59
      %s66 = ssub.s32 %s64, %s65
      %p67 = scmp.eq.s32.totalorder %s66, 0
      %s69 = sadd.s32 %s68, 1
      %s70 = scalar_select %p67, %s68, %s69
      %p73 = pneg %p67
      %p74 = scmp.eq.s32.totalorder %s37, 7
      %p75 = por %p73, %p74
      %p76 = scmp.ne.s32.totalorder %s68, %s71
      %p77 = scmp.eq.s32.totalorder %s37, 0
      %p78 = por %p76, %p77
      %p79 = scmp.ne.s32.totalorder %s68, %s71
      %p80 = scmp.eq.s32.totalorder %s42, 7
      %p81 = por %p79, %p80
      %p82 = scmp.ne.s32.totalorder %s71, %s72
      %p83 = scmp.eq.s32.totalorder %s42, 0
      %p84 = por %p82, %p83
      %p85 = scmp.ne.s32.totalorder %s71, %s72
      %p86 = scmp.eq.s32.totalorder %s43, 7
      %p87 = por %p85, %p86
      %p89 = scmp.ne.s32.totalorder %s72, %s88
      %p90 = scmp.eq.s32.totalorder %s43, 0
      %p91 = por %p89, %p90
      %s93 = sadd.s32 %s92, 1
      %p96 = scmp.eq.s32.totalorder %s37, 7
      %p97 = scmp.ne.s32.totalorder %s92, %s94
      %p98 = scmp.eq.s32.totalorder %s37, 0
      %p99 = por %p97, %p98
      %p100 = scmp.ne.s32.totalorder %s92, %s94
      %p101 = scmp.eq.s32.totalorder %s42, 7
      %p102 = por %p100, %p101
      %p103 = scmp.ne.s32.totalorder %s94, %s95
      %p104 = scmp.eq.s32.totalorder %s42, 0
      %p105 = por %p103, %p104
      %p106 = scmp.ne.s32.totalorder %s94, %s95
      %p107 = scmp.eq.s32.totalorder %s43, 7
      %p108 = por %p106, %p107
      %p110 = scmp.ne.s32.totalorder %s95, %s109
      %p111 = scmp.eq.s32.totalorder %s43, 0
      %p112 = por %p110, %p111
      %s114 = sadd.s32 %s113, 1
      %p117 = scmp.eq.s32.totalorder %s37, 7
      %p118 = scmp.ne.s32.totalorder %s113, %s115
      %p119 = scmp.eq.s32.totalorder %s37, 0
      %p120 = por %p118, %p119
      %p121 = scmp.ne.s32.totalorder %s113, %s115
      %p122 = scmp.eq.s32.totalorder %s42, 7
      %p123 = por %p121, %p122
      %p124 = scmp.ne.s32.totalorder %s115, %s116
      %p125 = scmp.eq.s32.totalorder %s42, 0
      %p126 = por %p124, %p125
      %p127 = scmp.ne.s32.totalorder %s115, %s116
      %p128 = scmp.eq.s32.totalorder %s43, 7
      %p129 = por %p127, %p128
      %p131 = scmp.ne.s32.totalorder %s116, %s130
      %p132 = scmp.eq.s32.totalorder %s43, 0
      %p133 = por %p131, %p132
      %s134 = ssub.s32 %s46, %s55
      %p135 = scmp.eq.s32.totalorder %s134, 0
      %s137 = sadd.s32 %s136, 1
      %s138 = scalar_select %p135, %s136, %s137
      %p141 = pneg %p135
      %p142 = scmp.eq.s32.totalorder %s37, 7
      %p143 = por %p141, %p142
      %p144 = scmp.ne.s32.totalorder %s136, %s139
      %p145 = scmp.eq.s32.totalorder %s37, 0
      %p146 = por %p144, %p145
      %p147 = scmp.ne.s32.totalorder %s136, %s139
      %p148 = scmp.eq.s32.totalorder %s42, 7
      %p149 = por %p147, %p148
      %p150 = scmp.ne.s32.totalorder %s139, %s140
      %p151 = scmp.eq.s32.totalorder %s42, 0
      %p152 = por %p150, %p151
      %p153 = scmp.ne.s32.totalorder %s139, %s140
      %p154 = scmp.eq.s32.totalorder %s43, 7
      %p155 = por %p153, %p154
      %p157 = scmp.ne.s32.totalorder %s140, %s156
      %p158 = scmp.eq.s32.totalorder %s43, 0
      %p159 = por %p157, %p158
      %s160 = ssub.s32 %s46, %s55
      %p161 = scmp.eq.s32.totalorder %s160, 0
      %s163 = sadd.s32 %s162, 1
      %s164 = scalar_select %p161, %s162, %s163
      %p167 = pneg %p161
      %p168 = scmp.eq.s32.totalorder %s37, 7
      %p169 = por %p167, %p168
      %p170 = scmp.ne.s32.totalorder %s162, %s165
      %p171 = scmp.eq.s32.totalorder %s37, 0
      %p172 = por %p170, %p171
      %p173 = scmp.ne.s32.totalorder %s162, %s165
      %p174 = scmp.eq.s32.totalorder %s42, 7
      %p175 = por %p173, %p174
      %p176 = scmp.ne.s32.totalorder %s165, %s166
      %p177 = scmp.eq.s32.totalorder %s42, 0
      %p178 = por %p176, %p177
      %p179 = scmp.ne.s32.totalorder %s165, %s166
      %p180 = scmp.eq.s32.totalorder %s43, 7
      %p181 = por %p179, %p180
      %p183 = scmp.ne.s32.totalorder %s166, %s182
      %p184 = scmp.eq.s32.totalorder %s43, 0
      %p185 = por %p183, %p184
      %s186 = ssub.s32 %s46, %s55
      %p187 = scmp.eq.s32.totalorder %s186, 0
      %s189 = sadd.s32 %s188, 1
      %s190 = scalar_select %p187, %s188, %s189
      %p193 = pneg %p187
      %p194 = scmp.eq.s32.totalorder %s37, 7
      %p195 = por %p193, %p194
      %p196 = scmp.ne.s32.totalorder %s188, %s191
      %p197 = scmp.eq.s32.totalorder %s37, 0
      %p198 = por %p196, %p197
      %p199 = scmp.ne.s32.totalorder %s188, %s191
      %p200 = scmp.eq.s32.totalorder %s42, 7
      %p201 = por %p199, %p200
      %p202 = scmp.ne.s32.totalorder %s191, %s192
      %p203 = scmp.eq.s32.totalorder %s42, 0
      %p204 = por %p202, %p203
      %p205 = scmp.ne.s32.totalorder %s191, %s192
      %p206 = scmp.eq.s32.totalorder %s43, 7
      %p207 = por %p205, %p206
      %p209 = scmp.ne.s32.totalorder %s192, %s208
      %p210 = scmp.eq.s32.totalorder %s43, 0
      %p211 = por %p209, %p210
      %s212 = ssub.s32 %s46, %s55
      %p213 = scmp.eq.s32.totalorder %s212, 0
      %s215 = sadd.s32 %s214, 1
      %s216 = scalar_select %p213, %s214, %s215
      %p219 = pneg %p213
      %p220 = scmp.eq.s32.totalorder %s37, 7
      %p221 = por %p219, %p220
      %p222 = scmp.ne.s32.totalorder %s214, %s217
      %p223 = scmp.eq.s32.totalorder %s37, 0
      %p224 = por %p222, %p223
      %p225 = scmp.ne.s32.totalorder %s214, %s217
      %p226 = scmp.eq.s32.totalorder %s42, 7
      %p227 = por %p225, %p226
      %p228 = scmp.ne.s32.totalorder %s217, %s218
      %p229 = scmp.eq.s32.totalorder %s42, 0
      %p230 = por %p228, %p229
      %p231 = scmp.ne.s32.totalorder %s217, %s218
      %p232 = scmp.eq.s32.totalorder %s43, 7
      %p233 = por %p231, %p232
      %p235 = scmp.ne.s32.totalorder %s218, %s234
      %p236 = scmp.eq.s32.totalorder %s43, 0
      %p237 = por %p235, %p236
      %s238 = ssub.s32 %s46, %s55
      %p239 = scmp.eq.s32.totalorder %s238, 0
      %s241 = sadd.s32 %s240, 1
      %s242 = scalar_select %p239, %s240, %s241
      %p245 = pneg %p239
      %p246 = scmp.eq.s32.totalorder %s37, 7
      %p247 = por %p245, %p246
      %p248 = scmp.ne.s32.totalorder %s240, %s243
      %p249 = scmp.eq.s32.totalorder %s37, 0
      %p250 = por %p248, %p249
      %p251 = scmp.ne.s32.totalorder %s240, %s243
      %p252 = scmp.eq.s32.totalorder %s42, 7
      %p253 = por %p251, %p252
      %p254 = scmp.ne.s32.totalorder %s243, %s244
      %p255 = scmp.eq.s32.totalorder %s42, 0
      %p256 = por %p254, %p255
      %p257 = scmp.ne.s32.totalorder %s243, %s244
      %p258 = scmp.eq.s32.totalorder %s43, 7
      %p259 = por %p257, %p258
      %p261 = scmp.ne.s32.totalorder %s244, %s260
      %p262 = scmp.eq.s32.totalorder %s43, 0
      %p263 = por %p261, %p262
      %s264 = ssub.s32 %s46, %s55
      %p265 = scmp.eq.s32.totalorder %s264, 0
      %s267 = sadd.s32 %s266, 1
      %s268 = scalar_select %p265, %s266, %s267
      %p271 = pneg %p265
      %p272 = scmp.eq.s32.totalorder %s37, 7
      %p273 = por %p271, %p272
      %p274 = scmp.ne.s32.totalorder %s266, %s269
      %p275 = scmp.eq.s32.totalorder %s37, 0
      %p276 = por %p274, %p275
      %p277 = scmp.ne.s32.totalorder %s266, %s269
      %p278 = scmp.eq.s32.totalorder %s42, 7
      %p279 = por %p277, %p278
      %p280 = scmp.ne.s32.totalorder %s269, %s270
      %p281 = scmp.eq.s32.totalorder %s42, 0
      %p282 = por %p280, %p281
      %p283 = scmp.ne.s32.totalorder %s269, %s270
      %p284 = scmp.eq.s32.totalorder %s43, 7
      %p285 = por %p283, %p284
      %p287 = scmp.ne.s32.totalorder %s270, %s286
      %p288 = scmp.eq.s32.totalorder %s43, 0
      %p289 = por %p287, %p288
      %s290 = ssub.s32 %s44, %s63
      %s291 = ssub.s32 %s46, %s55
      %s292 = sor.u32 %s290, %s291
      %s293 = ssub.s32 %s45, %s59
      %s294 = sor.u32 %s292, %s293
      %p295 = scmp.eq.s32.totalorder %s294, 0
      %s297 = sadd.s32 %s296, 1
      %s298 = scalar_select %p295, %s296, %s297
      %p301 = pneg %p295
      %p302 = scmp.eq.s32.totalorder %s37, 7
      %p303 = por %p301, %p302
      %p304 = scmp.ne.s32.totalorder %s296, %s299
      %p305 = scmp.eq.s32.totalorder %s37, 0
      %p306 = por %p304, %p305
      %p307 = scmp.ne.s32.totalorder %s296, %s299
      %p308 = scmp.eq.s32.totalorder %s42, 7
      %p309 = por %p307, %p308
      %p310 = scmp.ne.s32.totalorder %s299, %s300
      %p311 = scmp.eq.s32.totalorder %s42, 0
      %p312 = por %p310, %p311
      %p313 = scmp.ne.s32.totalorder %s299, %s300
      %p314 = scmp.eq.s32.totalorder %s43, 7
      %p315 = por %p313, %p314
      %p317 = scmp.ne.s32.totalorder %s300, %s316
      %p318 = scmp.eq.s32.totalorder %s43, 0
      %p319 = por %p317, %p318
      %s320 = ssub.s32 %s44, %s63
      %s321 = ssub.s32 %s46, %s55
      %s322 = sor.u32 %s320, %s321
      %s323 = ssub.s32 %s45, %s59
      %s324 = sor.u32 %s322, %s323
      %p325 = scmp.eq.s32.totalorder %s324, 0
      %s327 = sadd.s32 %s326, 1
      %s328 = scalar_select %p325, %s326, %s327
      %p331 = pneg %p325
      %p332 = scmp.eq.s32.totalorder %s37, 7
      %p333 = por %p331, %p332
      %p334 = scmp.ne.s32.totalorder %s326, %s329
      %p335 = scmp.eq.s32.totalorder %s37, 0
      %p336 = por %p334, %p335
      %p337 = scmp.ne.s32.totalorder %s326, %s329
      %p338 = scmp.eq.s32.totalorder %s42, 7
      %p339 = por %p337, %p338
      %p340 = scmp.ne.s32.totalorder %s329, %s330
      %p341 = scmp.eq.s32.totalorder %s42, 0
      %p342 = por %p340, %p341
      %p343 = scmp.ne.s32.totalorder %s329, %s330
      %p344 = scmp.eq.s32.totalorder %s43, 7
      %p345 = por %p343, %p344
      %p347 = scmp.ne.s32.totalorder %s330, %s346
      %p348 = scmp.eq.s32.totalorder %s43, 0
      %p349 = por %p347, %p348
      %s350 = ssub.s32 %s44, %s63
      %s351 = ssub.s32 %s46, %s55
      %s352 = sor.u32 %s350, %s351
      %s353 = ssub.s32 %s45, %s59
      %s354 = sor.u32 %s352, %s353
      %p355 = scmp.eq.s32.totalorder %s354, 0
      %s357 = sadd.s32 %s356, 1
      %s358 = scalar_select %p355, %s356, %s357
      %p361 = pneg %p355
      %p362 = scmp.eq.s32.totalorder %s37, 7
      %p363 = por %p361, %p362
      %p364 = scmp.ne.s32.totalorder %s356, %s359
      %p365 = scmp.eq.s32.totalorder %s37, 0
      %p366 = por %p364, %p365
      %p367 = scmp.ne.s32.totalorder %s356, %s359
      %p368 = scmp.eq.s32.totalorder %s42, 7
      %p369 = por %p367, %p368
      %p370 = scmp.ne.s32.totalorder %s359, %s360
      %p371 = scmp.eq.s32.totalorder %s42, 0
      %p372 = por %p370, %p371
      %p373 = scmp.ne.s32.totalorder %s359, %s360
      %p374 = scmp.eq.s32.totalorder %s43, 7
      %p375 = por %p373, %p374
      %p377 = scmp.ne.s32.totalorder %s360, %s376
      %p378 = scmp.eq.s32.totalorder %s43, 0
      %p379 = por %p377, %p378
      %p380 = scmp.le.s32.totalorder 1, %s37
      %p381 = scmp.lt.s32.totalorder %s37, 9
      %p382 = pnand %p380, %p381
      %p383 = pneg %p382
      // Predicated region
      $region9: #{gpt2_model_pipe_forward.9} parent=5 // pred_check
        _
      $region10: #{gpt2_model_pipe_forward.9} parent=5 // pred_check_branch
        %385 = sbr.rel (%p382) target = $region12
      $region11: #{gpt2_model_pipe_forward.9} parent=5 // pred_region
        %s386 = ssub.s32 %s37, 1
        // Predicated region
        $region13: #{gpt2_model_pipe_forward.9} parent=11 // pred_check
          %p387 = pneg %p105
        $region14: #{gpt2_model_pipe_forward.9} parent=11 // pred_check_branch
          %389 = sbr.rel (%p387) target = $region16
        $region15: #{gpt2_model_pipe_forward.9} parent=11 // pred_region
          %s391 = ssub.s32 16, 16
          %392 = vsyncadd [#allocation7], %s391
          %s394 = sshll.u32 [#allocation6], 4
          %s395 = int_to_ptr.vmem [resolvable:$true] %s394
          %397 = dma.hbm_to_vmem [thread:$0]  %s1, 16, %s395, [#allocation7]
        $region16: #{gpt2_model_pipe_forward.9} parent=11 // pred_fallthru
          _
        // Predicated region
        $region17: #{gpt2_model_pipe_forward.9} parent=11 // pred_check
          %p398 = pneg %p126
        $region18: #{gpt2_model_pipe_forward.9} parent=11 // pred_check_branch
          %400 = sbr.rel (%p398) target = $region20
        $region19: #{gpt2_model_pipe_forward.9} parent=11 // pred_region
          %s402 = ssub.s32 16, 16
          %403 = vsyncadd [#allocation7], %s402
          %s405 = sshll.u32 [#allocation8], 4
          %s406 = int_to_ptr.vmem [resolvable:$true] %s405
          %408 = dma.hbm_to_vmem [thread:$0]  %s2, 16, %s406, [#allocation7]
        $region20: #{gpt2_model_pipe_forward.9} parent=11 // pred_fallthru
          _
      $region12: #{gpt2_model_pipe_forward.9} parent=5 // pred_fallthru
        _
      %p409 = scmp.lt.s32.totalorder %s37, 8
      // Predicated region
      $region21: #{gpt2_model_pipe_forward.9} parent=5 // pred_check
        %p410 = pneg %p409
      $region22: #{gpt2_model_pipe_forward.9} parent=5 // pred_check_branch
        %412 = sbr.rel (%p410) target = $region24
      $region23: #{gpt2_model_pipe_forward.9} parent=5 // pred_region
        // Predicated region
        $region25: #{gpt2_model_pipe_forward.9} parent=23 // pred_check
          %p413 = pneg %p78
        $region26: #{gpt2_model_pipe_forward.9} parent=23 // pred_check_branch
          %415 = sbr.rel (%p413) target = $region28
        $region27: #{gpt2_model_pipe_forward.9} parent=23 // pred_region
          %s416 = sand.u32 %s68, 1
          %s417 = scalar_lea.sflag [#allocation4], %s416
          %s418 = sand.u32 %s68, 1
          %s419 = smul.addr %s418, 4
          %s420 = scalar_lea.vmem [#allocation3], %s419
          %s421 = sadd.s32 %s44, %s45
          %s423 = ssub.s32 64, 64
          %424 = vsyncadd %s417, %s423
          %s425 = smul.addr %s421, 64
          %s426 = scalar_lea.hbm %s0, %s425
          %s428 = sshll.u32 %s420, 4
          %s429 = int_to_ptr.vmem [resolvable:$true] %s428
          %431 = dma.hbm_to_vmem [thread:$0]  %s426, 64, %s429, %s417
        $region28: #{gpt2_model_pipe_forward.9} parent=23 // pred_fallthru
          _
        // Predicated region
        $region29: #{gpt2_model_pipe_forward.9} parent=23 // pred_check
          %p432 = pneg %p146
        $region30: #{gpt2_model_pipe_forward.9} parent=23 // pred_check_branch
          %434 = sbr.rel (%p432) target = $region32
        $region31: #{gpt2_model_pipe_forward.9} parent=23 // pred_region
          %s435 = sand.u32 %s37, 1
          %s436 = scalar_lea.sflag [#allocation10], %s435
          %s437 = sand.u32 %s136, 1
          %s438 = smul.addr %s437, 16
          %s439 = scalar_lea.vmem [#allocation9], %s438
          %s441 = ssub.s32 256, 256
          %442 = vsyncadd %s436, %s441
          %s443 = smul.addr %s46, 4
          %s444 = smul.addr %s443, 64
          %s445 = scalar_lea.hbm %s3, %s444
          %s446 = sshll.u32 %s439, 4
          %s447 = int_to_ptr.vmem [resolvable:$true] %s446
          %452 = dma.hbm_to_vmem [thread:$0]  %s445, 256, %s447, %s436, 64, 64, 4
        $region32: #{gpt2_model_pipe_forward.9} parent=23 // pred_fallthru
          _
        // Predicated region
        $region33: #{gpt2_model_pipe_forward.9} parent=23 // pred_check
          %p453 = pneg %p172
        $region34: #{gpt2_model_pipe_forward.9} parent=23 // pred_check_branch
          %455 = sbr.rel (%p453) target = $region36
        $region35: #{gpt2_model_pipe_forward.9} parent=23 // pred_region
          %s456 = sand.u32 %s37, 1
          %s457 = scalar_lea.sflag [#allocation10], %s456
          %s458 = sand.u32 %s162, 1
          %s459 = smul.addr %s458, 16
          %s460 = scalar_lea.vmem [#allocation11], %s459
          %s462 = ssub.s32 256, 256
          %463 = vsyncadd %s457, %s462
          %s464 = smul.addr %s46, 4
          %s465 = smul.addr %s464, 64
          %s466 = scalar_lea.hbm %s4, %s465
          %s467 = sshll.u32 %s460, 4
          %s468 = int_to_ptr.vmem [resolvable:$true] %s467
          %473 = dma.hbm_to_vmem [thread:$0]  %s466, 256, %s468, %s457, 64, 64, 4
        $region36: #{gpt2_model_pipe_forward.9} parent=23 // pred_fallthru
          _
        // Predicated region
        $region37: #{gpt2_model_pipe_forward.9} parent=23 // pred_check
          %p474 = pneg %p198
        $region38: #{gpt2_model_pipe_forward.9} parent=23 // pred_check_branch
          %476 = sbr.rel (%p474) target = $region40
        $region39: #{gpt2_model_pipe_forward.9} parent=23 // pred_region
          %s477 = sand.u32 %s37, 1
          %s478 = scalar_lea.sflag [#allocation13], %s477
          %s479 = sand.u32 %s188, 1
          %s480 = smul.addr %s479, 16
          %s481 = scalar_lea.vmem [#allocation12], %s480
          %s483 = ssub.s32 256, 256
          %484 = vsyncadd %s478, %s483
          %s485 = smul.addr %s46, 4
          %s486 = smul.addr %s485, 64
          %s487 = scalar_lea.hbm %s5, %s486
          %s488 = sshll.u32 %s481, 4
          %s489 = int_to_ptr.vmem [resolvable:$true] %s488
          %494 = dma.hbm_to_vmem [thread:$0]  %s487, 256, %s489, %s478, 64, 64, 4
        $region40: #{gpt2_model_pipe_forward.9} parent=23 // pred_fallthru
          _
        // Predicated region
        $region41: #{gpt2_model_pipe_forward.9} parent=23 // pred_check
          %p495 = pneg %p224
        $region42: #{gpt2_model_pipe_forward.9} parent=23 // pred_check_branch
          %497 = sbr.rel (%p495) target = $region44
        $region43: #{gpt2_model_pipe_forward.9} parent=23 // pred_region
          %s498 = sand.u32 %s37, 1
          %s499 = scalar_lea.sflag [#allocation13], %s498
          %s500 = sand.u32 %s214, 1
          %s501 = scalar_lea.vmem [#allocation14], %s500
          %s503 = ssub.s32 16, 16
          %504 = vsyncadd %s499, %s503
          %s505 = smul.addr %s46, 16
          %s506 = scalar_lea.hbm %s6, %s505
          %s508 = sshll.u32 %s501, 4
          %s509 = int_to_ptr.vmem [resolvable:$true] %s508
          %511 = dma.hbm_to_vmem [thread:$0]  %s506, 16, %s509, %s499
        $region44: #{gpt2_model_pipe_forward.9} parent=23 // pred_fallthru
          _
        // Predicated region
        $region45: #{gpt2_model_pipe_forward.9} parent=23 // pred_check
          %p512 = pneg %p250
        $region46: #{gpt2_model_pipe_forward.9} parent=23 // pred_check_branch
          %514 = sbr.rel (%p512) target = $region48
        $region47: #{gpt2_model_pipe_forward.9} parent=23 // pred_region
          %s515 = sand.u32 %s37, 1
          %s516 = scalar_lea.sflag [#allocation16], %s515
          %s517 = sand.u32 %s240, 1
          %s518 = scalar_lea.vmem [#allocation15], %s517
          %s520 = ssub.s32 16, 16
          %521 = vsyncadd %s516, %s520
          %s522 = smul.addr %s46, 16
          %s523 = scalar_lea.hbm %s7, %s522
          %s525 = sshll.u32 %s518, 4
          %s526 = int_to_ptr.vmem [resolvable:$true] %s525
          %528 = dma.hbm_to_vmem [thread:$0]  %s523, 16, %s526, %s516
        $region48: #{gpt2_model_pipe_forward.9} parent=23 // pred_fallthru
          _
        // Predicated region
        $region49: #{gpt2_model_pipe_forward.9} parent=23 // pred_check
          %p529 = pneg %p276
        $region50: #{gpt2_model_pipe_forward.9} parent=23 // pred_check_branch
          %531 = sbr.rel (%p529) target = $region52
        $region51: #{gpt2_model_pipe_forward.9} parent=23 // pred_region
          %s532 = sand.u32 %s37, 1
          %s533 = scalar_lea.sflag [#allocation16], %s532
          %s534 = sand.u32 %s266, 1
          %s535 = scalar_lea.vmem [#allocation17], %s534
          %s537 = ssub.s32 16, 16
          %538 = vsyncadd %s533, %s537
          %s539 = smul.addr %s46, 16
          %s540 = scalar_lea.hbm %s8, %s539
          %s542 = sshll.u32 %s535, 4
          %s543 = int_to_ptr.vmem [resolvable:$true] %s542
          %545 = dma.hbm_to_vmem [thread:$0]  %s540, 16, %s543, %s533
        $region52: #{gpt2_model_pipe_forward.9} parent=23 // pred_fallthru
          _
      $region24: #{gpt2_model_pipe_forward.9} parent=5 // pred_fallthru
        _
      %p546 = scmp.le.s32.totalorder 1, %s37
      %p547 = scmp.lt.s32.totalorder %s37, 9
      %p548 = pnand %p546, %p547
      %p549 = pneg %p548
      // Predicated region
      $region53: #{gpt2_model_pipe_forward.9} parent=5 // pred_check
        _
      $region54: #{gpt2_model_pipe_forward.9} parent=5 // pred_check_branch
        %551 = sbr.rel (%p548) target = $region56
      $region55: #{gpt2_model_pipe_forward.9} parent=5 // pred_region
        %s552 = ssub.s32 %s37, 1
        %s553 = sand.u32 %s71, 1
        %s554 = scalar_lea.sflag [#allocation4], %s553
        %s555 = sand.u32 %s71, 1
        %s556 = smul.addr %s555, 4
        %s557 = scalar_lea.vmem [#allocation3], %s556
        // Predicated region
        $region57: #{gpt2_model_pipe_forward.9} parent=55 // pred_check
          %p558 = pneg %p84
        $region58: #{gpt2_model_pipe_forward.9} parent=55 // pred_check_branch
          %560 = sbr.rel (%p558) target = $region60
        $region59: #{gpt2_model_pipe_forward.9} parent=55 // pred_region
          %561 = dma.done %s554, 64
        $region60: #{gpt2_model_pipe_forward.9} parent=55 // pred_fallthru
          _
        // Predicated region
        $region61: #{gpt2_model_pipe_forward.9} parent=55 // pred_check
          %p562 = pneg %p105
        $region62: #{gpt2_model_pipe_forward.9} parent=55 // pred_check_branch
          %564 = sbr.rel (%p562) target = $region64
        $region63: #{gpt2_model_pipe_forward.9} parent=55 // pred_region
          %565 = dma.done [#allocation7], 16
        $region64: #{gpt2_model_pipe_forward.9} parent=55 // pred_fallthru
          _
        // Predicated region
        $region65: #{gpt2_model_pipe_forward.9} parent=55 // pred_check
          %p566 = pneg %p126
        $region66: #{gpt2_model_pipe_forward.9} parent=55 // pred_check_branch
          %568 = sbr.rel (%p566) target = $region68
        $region67: #{gpt2_model_pipe_forward.9} parent=55 // pred_region
          %569 = dma.done [#allocation7], 16
        $region68: #{gpt2_model_pipe_forward.9} parent=55 // pred_fallthru
          _
        %s570 = sand.u32 %s42, 1
        %s571 = scalar_lea.sflag [#allocation10], %s570
        %s572 = sand.u32 %s139, 1
        %s573 = smul.addr %s572, 16
        %s574 = scalar_lea.vmem [#allocation9], %s573
        // Predicated region
        $region69: #{gpt2_model_pipe_forward.9} parent=55 // pred_check
          %p575 = pneg %p152
        $region70: #{gpt2_model_pipe_forward.9} parent=55 // pred_check_branch
          %577 = sbr.rel (%p575) target = $region72
        $region71: #{gpt2_model_pipe_forward.9} parent=55 // pred_region
          %578 = dma.done %s571, 256
        $region72: #{gpt2_model_pipe_forward.9} parent=55 // pred_fallthru
          _
        %s579 = sand.u32 %s42, 1
        %s580 = scalar_lea.sflag [#allocation10], %s579
        %s581 = sand.u32 %s165, 1
        %s582 = smul.addr %s581, 16
        %s583 = scalar_lea.vmem [#allocation11], %s582
        // Predicated region
        $region73: #{gpt2_model_pipe_forward.9} parent=55 // pred_check
          %p584 = pneg %p178
        $region74: #{gpt2_model_pipe_forward.9} parent=55 // pred_check_branch
          %586 = sbr.rel (%p584) target = $region76
        $region75: #{gpt2_model_pipe_forward.9} parent=55 // pred_region
          %587 = dma.done %s580, 256
        $region76: #{gpt2_model_pipe_forward.9} parent=55 // pred_fallthru
          _
        %s588 = sand.u32 %s42, 1
        %s589 = scalar_lea.sflag [#allocation13], %s588
        %s590 = sand.u32 %s191, 1
        %s591 = smul.addr %s590, 16
        %s592 = scalar_lea.vmem [#allocation12], %s591
        // Predicated region
        $region77: #{gpt2_model_pipe_forward.9} parent=55 // pred_check
          %p593 = pneg %p204
        $region78: #{gpt2_model_pipe_forward.9} parent=55 // pred_check_branch
          %595 = sbr.rel (%p593) target = $region80
        $region79: #{gpt2_model_pipe_forward.9} parent=55 // pred_region
          %596 = dma.done %s589, 256
        $region80: #{gpt2_model_pipe_forward.9} parent=55 // pred_fallthru
          _
        %s597 = sand.u32 %s42, 1
        %s598 = scalar_lea.sflag [#allocation13], %s597
        %s599 = sand.u32 %s217, 1
        %s600 = scalar_lea.vmem [#allocation14], %s599
        // Predicated region
        $region81: #{gpt2_model_pipe_forward.9} parent=55 // pred_check
          %p601 = pneg %p230
        $region82: #{gpt2_model_pipe_forward.9} parent=55 // pred_check_branch
          %603 = sbr.rel (%p601) target = $region84
        $region83: #{gpt2_model_pipe_forward.9} parent=55 // pred_region
          %604 = dma.done %s598, 16
        $region84: #{gpt2_model_pipe_forward.9} parent=55 // pred_fallthru
          _
        %s605 = sand.u32 %s42, 1
        %s606 = scalar_lea.sflag [#allocation16], %s605
        %s607 = sand.u32 %s243, 1
        %s608 = scalar_lea.vmem [#allocation15], %s607
        // Predicated region
        $region85: #{gpt2_model_pipe_forward.9} parent=55 // pred_check
          %p609 = pneg %p256
        $region86: #{gpt2_model_pipe_forward.9} parent=55 // pred_check_branch
          %611 = sbr.rel (%p609) target = $region88
        $region87: #{gpt2_model_pipe_forward.9} parent=55 // pred_region
          %612 = dma.done %s606, 16
        $region88: #{gpt2_model_pipe_forward.9} parent=55 // pred_fallthru
          _
        %s613 = sand.u32 %s42, 1
        %s614 = scalar_lea.sflag [#allocation16], %s613
        %s615 = sand.u32 %s269, 1
        %s616 = scalar_lea.vmem [#allocation17], %s615
        // Predicated region
        $region89: #{gpt2_model_pipe_forward.9} parent=55 // pred_check
          %p617 = pneg %p282
        $region90: #{gpt2_model_pipe_forward.9} parent=55 // pred_check_branch
          %619 = sbr.rel (%p617) target = $region92
        $region91: #{gpt2_model_pipe_forward.9} parent=55 // pred_region
          %620 = dma.done %s614, 16
        $region92: #{gpt2_model_pipe_forward.9} parent=55 // pred_fallthru
          _
        %s621 = sand.u32 %s71, 1
        %s622 = scalar_lea.sflag [#allocation4], %s621
        %s623 = sand.u32 %s71, 1
        %s624 = smul.addr %s623, 4
        %s625 = scalar_lea.vmem [#allocation3], %s624
        %p626 = pneg %p84
        %p627 = pneg %p81
        %p628 = pneg %p105
        %p629 = pneg %p102
        %p630 = pneg %p126
        %p631 = pneg %p123
        %s632 = sand.u32 %s42, 1
        %s633 = scalar_lea.sflag [#allocation10], %s632
        %s634 = sand.u32 %s139, 1
        %s635 = smul.addr %s634, 16
        %s636 = scalar_lea.vmem [#allocation9], %s635
        %p637 = pneg %p152
        %p638 = pneg %p149
        %s639 = sand.u32 %s42, 1
        %s640 = scalar_lea.sflag [#allocation10], %s639
        %s641 = sand.u32 %s165, 1
        %s642 = smul.addr %s641, 16
        %s643 = scalar_lea.vmem [#allocation11], %s642
        %p644 = pneg %p178
        %p645 = pneg %p175
        %s646 = sand.u32 %s42, 1
        %s647 = scalar_lea.sflag [#allocation13], %s646
        %s648 = sand.u32 %s191, 1
        %s649 = smul.addr %s648, 16
        %s650 = scalar_lea.vmem [#allocation12], %s649
        %p651 = pneg %p204
        %p652 = pneg %p201
        %s653 = sand.u32 %s42, 1
        %s654 = scalar_lea.sflag [#allocation13], %s653
        %s655 = sand.u32 %s217, 1
        %s656 = scalar_lea.vmem [#allocation14], %s655
        %p657 = pneg %p230
        %p658 = pneg %p227
        %s659 = sand.u32 %s42, 1
        %s660 = scalar_lea.sflag [#allocation16], %s659
        %s661 = sand.u32 %s243, 1
        %s662 = scalar_lea.vmem [#allocation15], %s661
        %p663 = pneg %p256
        %p664 = pneg %p253
        %s665 = sand.u32 %s42, 1
        %s666 = scalar_lea.sflag [#allocation16], %s665
        %s667 = sand.u32 %s269, 1
        %s668 = scalar_lea.vmem [#allocation17], %s667
        %p669 = pneg %p282
        %p670 = pneg %p279
        %p671 = pneg %p312
        %p672 = pneg %p309
        %s673 = sand.u32 %s299, 1
        %s674 = scalar_lea.sflag [#allocation5], %s673
        %s675 = sand.u32 %s299, 1
        %s676 = smul.addr %s675, 4
        %s677 = scalar_lea.vmem [#allocation18], %s676
        %p678 = pneg %p342
        %p679 = pneg %p339
        %s680 = sand.u32 %s42, 1
        %s681 = scalar_lea.sflag [#allocation20], %s680
        %s682 = sand.u32 %s329, 1
        %s683 = smul.addr %s682, 4
        %s684 = scalar_lea.vmem [#allocation19], %s683
        %p685 = pneg %p372
        %p686 = pneg %p369
        %s687 = sand.u32 %s42, 1
        %s688 = scalar_lea.sflag [#allocation20], %s687
        %s689 = sand.u32 %s359, 1
        %s690 = smul.addr %s689, 4
        %s691 = scalar_lea.vmem [#allocation21], %s690
        %s692 = sadd.s32 %s47, %s48
        %p694 = scmp.eq.s32.totalorder %s49, 0
        // Predicated region
        $region93: #{gpt2_model_pipe_forward.9} parent=55 // pred_check
          %p695 = pneg %p694
        $region94: #{gpt2_model_pipe_forward.9} parent=55 // pred_check_branch
          %697 = sbr.rel (%p695) target = $region96
        $region95: #{gpt2_model_pipe_forward.9} parent=55 // pred_region
          %v698 = vld [vmem:[%s557] sm:$0xf]
          %v699 = vunpack.c.l.bf16 %v698
          %v700 = vld [vmem:[#allocation6] sm:$0x1]
          %v701 = vld [vmem:[#allocation8] sm:$0x1]
          %vm702 = vcmask 261120
          %v703 = vsel %vm702, %v699, 0.0
          %704 = vadd.xlane.f32.xlu0 %v703
          %v705 = vpop.xlane.xlu0 %704
          %v706 = vrcp.pop 32.0
          %v707 = vmul.f32 %v705, %v706
          %v708 = vsub.f32 %v699, %v707
          %v709 = vmul.f32 %v708, %v708
          %v710 = vsel %vm702, %v709, 0.0
          %711 = vadd.xlane.f32.xlu0 %v710
          %v712 = vpop.xlane.xlu0 %711
          %v713 = vmul.f32 %v712, %v706
          %v714 = vadd.f32 %v713, 1e-05
          %v715 = vrsqrt.pop %v714
          %v716 = vmul.f32 %v708, %v715
          %v718 = vlaneseq
          %v719 = vshrl.u32 %v718, 7
          %v720 = vsub.s32 0, %v719
          %v721 = vrot.slane %v700, %v720
          %v723 = vmul.f32 %v716, %v721
          %v725 = vlaneseq
          %v726 = vshrl.u32 %v725, 7
          %v727 = vsub.s32 0, %v726
          %v728 = vrot.slane %v701, %v727
          %v730 = vadd.f32 %v723, %v728
          %v731 = vpack.c.bf16 %v730, %v730
          %vm732 = vcmask 257024
          %733 = vst.msk [vmem:[#allocation2] sm:$0xf] %vm732, %v731
        $region96: #{gpt2_model_pipe_forward.9} parent=55 // pred_fallthru
          _
        %v734 = vld [vmem:[#allocation2] sm:$0xf]
        %v735 = vld [vmem:[%s574] sm:$0xf]
        %v736 = vld [vmem:[%s574 + $0x4] sm:$0xf]
        %v737 = vld [vmem:[%s574 + $0x8] sm:$0xf]
        %v738 = vld [vmem:[%s574 + $0xc] sm:$0xf]
        %v739 = vld [vmem:[%s600] sm:$0x1]
        %v741 = vlaneseq
        %v742 = vshrl.u32 %v741, 7
        %v743 = vsub.s32 0, %v742
        %v744 = vrot.slane %v739, %v743
        %v750 = vunpack.c.l.b16 %v735
        %v751 = vunpack.c.l.b16 %v736
        %v752 = vunpack.c.l.b16 %v737
        %v753 = vunpack.c.l.b16 %v738
        %v754 = vpack.c.b16 %v751, %v750
        %v755 = vpack.c.b16 %v753, %v752
        %vm758 = vcmask 261120
        %v760 = vsel %vm758, %v734, 0
        %762 = vmatprep.subr.bf16.mxu0 0
        %763 = vmatpush1.bf16.msra.mxu0 %v754
        %764 = vmatprep.subr.bf16.mxu0 0
        %765 = vmatpush1.bf16.msra.mxu0 %v755
        %766 = vmatprep.subr.bf16.mxu0 0
        %767 = vmatpush1.bf16.msra.mxu0 0
        %768 = vmatprep.subr.bf16.mxu0 0
        %769 = vmatpush1.bf16.msra.mxu0 0
        %770 = vmatprep.subr.bf16.mxu0 0
        %771 = vmatpush1.bf16.msra.mxu0 0
        %772 = vmatprep.subr.bf16.mxu0 0
        %773 = vmatpush1.bf16.msra.mxu0 0
        %774 = vmatprep.subr.bf16.mxu0 0
        %775 = vmatpush1.bf16.msra.mxu0 0
        %776 = vmatprep.subr.bf16.mxu0 0
        %777 = vmatpush1.bf16.msra.mxu0 0
        %778 = vmatprep.subr.bf16.mxu0 0
        %779 = vmatpush1.bf16.msra.mxu0 0
        %780 = vmatprep.subr.bf16.mxu0 0
        %781 = vmatpush1.bf16.msra.mxu0 0
        %782 = vmatprep.subr.bf16.mxu0 0
        %783 = vmatpush1.bf16.msra.mxu0 0
        %784 = vmatprep.subr.bf16.mxu0 0
        %785 = vmatpush1.bf16.msra.mxu0 0
        %786 = vmatprep.subr.bf16.mxu0 0
        %787 = vmatpush1.bf16.msra.mxu0 0
        %788 = vmatprep.subr.bf16.mxu0 0
        %789 = vmatpush1.bf16.msra.mxu0 0
        %790 = vmatprep.subr.bf16.mxu0 0
        %791 = vmatpush1.bf16.msra.mxu0 0
        %792 = vmatprep.subr.bf16.mxu0 0
        %793 = vmatpush1.bf16.msra.mxu0 0
        %794 = vmatprep.mubr.bf16.mxu0 0
        %795 = vmatmul.mubr.bf16.gmra.mrb[0].mxu0 %v760
        %v796 = vpop.f32.mrb[0].mxu0
        %v797 = vadd.f32 %v744, %v796
        %v798 = vpop.f32.mrb[0].mxu0
        %v799 = vpop.f32.mrb[0].mxu0
        %v800 = vpop.f32.mrb[0].mxu0
        %801 = vdwg.mxu0
        %v802 = vpack.c.bf16 %v797, %v797
        %vm803 = vcmask 60416
        %804 = vst.msk [vmem:[%s677] sm:$0xf] %vm803, %v802
        %v805 = vld [vmem:[%s583] sm:$0xf]
        %v806 = vld [vmem:[%s583 + $0x4] sm:$0xf]
        %v807 = vld [vmem:[%s583 + $0x8] sm:$0xf]
        %v808 = vld [vmem:[%s583 + $0xc] sm:$0xf]
        %v809 = vld [vmem:[%s608] sm:$0x1]
        %v811 = vlaneseq
        %v812 = vshrl.u32 %v811, 7
        %v813 = vsub.s32 0, %v812
        %v814 = vrot.slane %v809, %v813
        %v820 = vunpack.c.l.b16 %v805
        %v821 = vunpack.c.l.b16 %v806
        %v822 = vunpack.c.l.b16 %v807
        %v823 = vunpack.c.l.b16 %v808
        %v824 = vpack.c.b16 %v821, %v820
        %v825 = vpack.c.b16 %v823, %v822
        %828 = vmatprep.subr.bf16.mxu0 0
        %829 = vmatpush1.bf16.msra.mxu0 %v824
        %830 = vmatprep.subr.bf16.mxu0 0
        %831 = vmatpush1.bf16.msra.mxu0 %v825
        %832 = vmatprep.subr.bf16.mxu0 0
        %833 = vmatpush1.bf16.msra.mxu0 0
        %834 = vmatprep.subr.bf16.mxu0 0
        %835 = vmatpush1.bf16.msra.mxu0 0
        %836 = vmatprep.subr.bf16.mxu0 0
        %837 = vmatpush1.bf16.msra.mxu0 0
        %838 = vmatprep.subr.bf16.mxu0 0
        %839 = vmatpush1.bf16.msra.mxu0 0
        %840 = vmatprep.subr.bf16.mxu0 0
        %841 = vmatpush1.bf16.msra.mxu0 0
        %842 = vmatprep.subr.bf16.mxu0 0
        %843 = vmatpush1.bf16.msra.mxu0 0
        %844 = vmatprep.subr.bf16.mxu0 0
        %845 = vmatpush1.bf16.msra.mxu0 0
        %846 = vmatprep.subr.bf16.mxu0 0
        %847 = vmatpush1.bf16.msra.mxu0 0
        %848 = vmatprep.subr.bf16.mxu0 0
        %849 = vmatpush1.bf16.msra.mxu0 0
        %850 = vmatprep.subr.bf16.mxu0 0
        %851 = vmatpush1.bf16.msra.mxu0 0
        %852 = vmatprep.subr.bf16.mxu0 0
        %853 = vmatpush1.bf16.msra.mxu0 0
        %854 = vmatprep.subr.bf16.mxu0 0
        %855 = vmatpush1.bf16.msra.mxu0 0
        %856 = vmatprep.subr.bf16.mxu0 0
        %857 = vmatpush1.bf16.msra.mxu0 0
        %858 = vmatprep.subr.bf16.mxu0 0
        %859 = vmatpush1.bf16.msra.mxu0 0
        %860 = vmatprep.mubr.bf16.mxu0 0
        %861 = vmatmul.mubr.bf16.gmra.mrb[0].mxu0 %v760
        %v862 = vpop.f32.mrb[0].mxu0
        %v863 = vadd.f32 %v814, %v862
        %v864 = vpop.f32.mrb[0].mxu0
        %v865 = vpop.f32.mrb[0].mxu0
        %v866 = vpop.f32.mrb[0].mxu0
        %867 = vdwg.mxu0
        %v868 = vpack.c.bf16 %v863, %v863
        %869 = vst.msk [vmem:[%s684] sm:$0xf] %vm803, %v868
        %v870 = vld [vmem:[%s592] sm:$0xf]
        %v871 = vld [vmem:[%s592 + $0x4] sm:$0xf]
        %v872 = vld [vmem:[%s592 + $0x8] sm:$0xf]
        %v873 = vld [vmem:[%s592 + $0xc] sm:$0xf]
        %v874 = vld [vmem:[%s616] sm:$0x1]
        %v876 = vlaneseq
        %v877 = vshrl.u32 %v876, 7
        %v878 = vsub.s32 0, %v877
        %v879 = vrot.slane %v874, %v878
        %v885 = vunpack.c.l.b16 %v870
        %v886 = vunpack.c.l.b16 %v871
        %v887 = vunpack.c.l.b16 %v872
        %v888 = vunpack.c.l.b16 %v873
        %v889 = vpack.c.b16 %v886, %v885
        %v890 = vpack.c.b16 %v888, %v887
        %893 = vmatprep.subr.bf16.mxu0 0
        %894 = vmatpush1.bf16.msra.mxu0 %v889
        %895 = vmatprep.subr.bf16.mxu0 0
        %896 = vmatpush1.bf16.msra.mxu0 %v890
        %897 = vmatprep.subr.bf16.mxu0 0
        %898 = vmatpush1.bf16.msra.mxu0 0
        %899 = vmatprep.subr.bf16.mxu0 0
        %900 = vmatpush1.bf16.msra.mxu0 0
        %901 = vmatprep.subr.bf16.mxu0 0
        %902 = vmatpush1.bf16.msra.mxu0 0
        %903 = vmatprep.subr.bf16.mxu0 0
        %904 = vmatpush1.bf16.msra.mxu0 0
        %905 = vmatprep.subr.bf16.mxu0 0
        %906 = vmatpush1.bf16.msra.mxu0 0
        %907 = vmatprep.subr.bf16.mxu0 0
        %908 = vmatpush1.bf16.msra.mxu0 0
        %909 = vmatprep.subr.bf16.mxu0 0
        %910 = vmatpush1.bf16.msra.mxu0 0
        %911 = vmatprep.subr.bf16.mxu0 0
        %912 = vmatpush1.bf16.msra.mxu0 0
        %913 = vmatprep.subr.bf16.mxu0 0
        %914 = vmatpush1.bf16.msra.mxu0 0
        %915 = vmatprep.subr.bf16.mxu0 0
        %916 = vmatpush1.bf16.msra.mxu0 0
        %917 = vmatprep.subr.bf16.mxu0 0
        %918 = vmatpush1.bf16.msra.mxu0 0
        %919 = vmatprep.subr.bf16.mxu0 0
        %920 = vmatpush1.bf16.msra.mxu0 0
        %921 = vmatprep.subr.bf16.mxu0 0
        %922 = vmatpush1.bf16.msra.mxu0 0
        %923 = vmatprep.subr.bf16.mxu0 0
        %924 = vmatpush1.bf16.msra.mxu0 0
        %925 = vmatprep.mubr.bf16.mxu0 0
        %926 = vmatmul.mubr.bf16.gmra.mrb[0].mxu0 %v760
        %v927 = vpop.f32.mrb[0].mxu0
        %v928 = vadd.f32 %v879, %v927
        %v929 = vpop.f32.mrb[0].mxu0
        %v930 = vpop.f32.mrb[0].mxu0
        %v931 = vpop.f32.mrb[0].mxu0
        %932 = vdwg.mxu0
        %v933 = vpack.c.bf16 %v928, %v928
        %934 = vst.msk [vmem:[%s691] sm:$0xf] %vm803, %v933
        %s935 = sand.u32 %s299, 1
        %s936 = scalar_lea.sflag [#allocation5], %s935
        %s937 = sand.u32 %s299, 1
        %s938 = smul.addr %s937, 4
        %s939 = scalar_lea.vmem [#allocation18], %s938
        %s940 = sand.u32 %s42, 1
        %s941 = scalar_lea.sflag [#allocation20], %s940
        %s942 = sand.u32 %s329, 1
        %s943 = smul.addr %s942, 4
        %s944 = scalar_lea.vmem [#allocation19], %s943
        %s945 = sand.u32 %s42, 1
        %s946 = scalar_lea.sflag [#allocation20], %s945
        %s947 = sand.u32 %s359, 1
        %s948 = smul.addr %s947, 4
        %s949 = scalar_lea.vmem [#allocation21], %s948
        // Predicated region
        $region97: #{gpt2_model_pipe_forward.9} parent=55 // pred_check
          %p950 = pneg %p309
        $region98: #{gpt2_model_pipe_forward.9} parent=55 // pred_check_branch
          %952 = sbr.rel (%p950) target = $region100
        $region99: #{gpt2_model_pipe_forward.9} parent=55 // pred_region
          %s954 = ssub.s32 64, 64
          %955 = vsyncadd %s936, %s954
          %s956 = sadd.s32 %s48, %s49
          %s957 = smul.addr %s47, 4
          %s958 = sadd.s32 %s956, %s957
          %s959 = smul.addr %s958, 64
          %s960 = scalar_lea.hbm %s9, %s959
          %s962 = sshll.u32 %s939, 4
          %s963 = int_to_ptr.vmem [resolvable:$true] %s962
          %965 = dma.vmem_to_hbm [thread:$0]  %s963, 64, %s960, %s936
        $region100: #{gpt2_model_pipe_forward.9} parent=55 // pred_fallthru
          _
        // Predicated region
        $region101: #{gpt2_model_pipe_forward.9} parent=55 // pred_check
          %p966 = pneg %p339
        $region102: #{gpt2_model_pipe_forward.9} parent=55 // pred_check_branch
          %968 = sbr.rel (%p966) target = $region104
        $region103: #{gpt2_model_pipe_forward.9} parent=55 // pred_region
          %s970 = ssub.s32 64, 64
          %971 = vsyncadd %s941, %s970
          %s972 = sadd.s32 %s48, %s49
          %s973 = smul.addr %s47, 4
          %s974 = sadd.s32 %s972, %s973
          %s975 = smul.addr %s974, 64
          %s976 = scalar_lea.hbm %s10, %s975
          %s978 = sshll.u32 %s944, 4
          %s979 = int_to_ptr.vmem [resolvable:$true] %s978
          %981 = dma.vmem_to_hbm [thread:$0]  %s979, 64, %s976, %s941
        $region104: #{gpt2_model_pipe_forward.9} parent=55 // pred_fallthru
          _
        // Predicated region
        $region105: #{gpt2_model_pipe_forward.9} parent=55 // pred_check
          %p982 = pneg %p369
        $region106: #{gpt2_model_pipe_forward.9} parent=55 // pred_check_branch
          %984 = sbr.rel (%p982) target = $region108
        $region107: #{gpt2_model_pipe_forward.9} parent=55 // pred_region
          %s986 = ssub.s32 64, 64
          %987 = vsyncadd %s946, %s986
          %s988 = sadd.s32 %s48, %s49
          %s989 = smul.addr %s47, 4
          %s990 = sadd.s32 %s988, %s989
          %s991 = smul.addr %s990, 64
          %s992 = scalar_lea.hbm %s11, %s991
          %s994 = sshll.u32 %s949, 4
          %s995 = int_to_ptr.vmem [resolvable:$true] %s994
          %997 = dma.vmem_to_hbm [thread:$0]  %s995, 64, %s992, %s946
        $region108: #{gpt2_model_pipe_forward.9} parent=55 // pred_fallthru
          _
      $region56: #{gpt2_model_pipe_forward.9} parent=5 // pred_fallthru
        _
      %p998 = scmp.le.s32.totalorder 2, %s37
      // Predicated region
      $region109: #{gpt2_model_pipe_forward.9} parent=5 // pred_check
        %p999 = pneg %p998
      $region110: #{gpt2_model_pipe_forward.9} parent=5 // pred_check_branch
        %1001 = sbr.rel (%p999) target = $region112
      $region111: #{gpt2_model_pipe_forward.9} parent=5 // pred_region
        %s1002 = ssub.s32 %s37, 2
        // Predicated region
        $region113: #{gpt2_model_pipe_forward.9} parent=111 // pred_check
          %p1003 = pneg %p315
        $region114: #{gpt2_model_pipe_forward.9} parent=111 // pred_check_branch
          %1005 = sbr.rel (%p1003) target = $region116
        $region115: #{gpt2_model_pipe_forward.9} parent=111 // pred_region
          %s1006 = sand.u32 %s300, 1
          %s1007 = scalar_lea.sflag [#allocation5], %s1006
          %s1008 = sand.u32 %s300, 1
          %s1009 = smul.addr %s1008, 4
          %s1010 = scalar_lea.vmem [#allocation18], %s1009
          %1011 = dma.done %s1007, 64
        $region116: #{gpt2_model_pipe_forward.9} parent=111 // pred_fallthru
          _
        // Predicated region
        $region117: #{gpt2_model_pipe_forward.9} parent=111 // pred_check
          %p1012 = pneg %p345
        $region118: #{gpt2_model_pipe_forward.9} parent=111 // pred_check_branch
          %1014 = sbr.rel (%p1012) target = $region120
        $region119: #{gpt2_model_pipe_forward.9} parent=111 // pred_region
          %s1015 = sand.u32 %s43, 1
          %s1016 = scalar_lea.sflag [#allocation20], %s1015
          %s1017 = sand.u32 %s330, 1
          %s1018 = smul.addr %s1017, 4
          %s1019 = scalar_lea.vmem [#allocation19], %s1018
          %1020 = dma.done %s1016, 64
        $region120: #{gpt2_model_pipe_forward.9} parent=111 // pred_fallthru
          _
        // Predicated region
        $region121: #{gpt2_model_pipe_forward.9} parent=111 // pred_check
          %p1021 = pneg %p375
        $region122: #{gpt2_model_pipe_forward.9} parent=111 // pred_check_branch
          %1023 = sbr.rel (%p1021) target = $region124
        $region123: #{gpt2_model_pipe_forward.9} parent=111 // pred_region
          %s1024 = sand.u32 %s43, 1
          %s1025 = scalar_lea.sflag [#allocation20], %s1024
          %s1026 = sand.u32 %s360, 1
          %s1027 = smul.addr %s1026, 4
          %s1028 = scalar_lea.vmem [#allocation21], %s1027
          %1029 = dma.done %s1025, 64
        $region124: #{gpt2_model_pipe_forward.9} parent=111 // pred_fallthru
          _
      $region112: #{gpt2_model_pipe_forward.9} parent=5 // pred_fallthru
        _
    $region6: #{gpt2_model_pipe_forward.9} parent=1 // loop_footer
      %s41 = sadd.s32 1, %s37
    $region7: #{gpt2_model_pipe_forward.9} parent=1 // loop_footer_branch
      %36 = sbr.rel target = $region3
    $region8: #{gpt2_model_pipe_forward.9} parent=1 // loop_exit
      _
    %1030 = vsyncpa [#allocation4], 1
    %s1031 = scalar_lea.sflag [#allocation4], 1
    %1032 = vsyncpa %s1031, 1
    %1033 = vsyncpa [#allocation7], 1
    %1034 = vsyncpa [#allocation10], 1
    %s1035 = scalar_lea.sflag [#allocation10], 1
    %1036 = vsyncpa %s1035, 1
    %1037 = vsyncpa [#allocation13], 1
    %s1038 = scalar_lea.sflag [#allocation13], 1
    %1039 = vsyncpa %s1038, 1
    %1040 = vsyncpa [#allocation16], 1
    %s1041 = scalar_lea.sflag [#allocation16], 1
    %1042 = vsyncpa %s1041, 1
    %1043 = vsyncpa [#allocation5], 1
    %s1044 = scalar_lea.sflag [#allocation5], 1
    %1045 = vsyncpa %s1044, 1
    %1046 = vsyncpa [#allocation20], 1
    %s1047 = scalar_lea.sflag [#allocation20], 1
    %1048 = vsyncpa %s1047, 1

// kernel: gpt2_model_pipe_forward.12
$region0: #{gpt2_model_pipe_forward.12}
  #allocation0 [shape = 'u32[]', space=smem, size = 0x4, offset = 0x4, fixed_abs, tag = 'smem constant byte address 0x4 - core index']
  #allocation1 [shape = 'u32[144,128]{1,0:T(1,128)}', space=vmem, size = 0x12000, scoped, tag = 'internal scratch']
  #allocation2 [shape = 'bf16[16,32]{1,0:T(16,128)(2,1)}', space=vmem, size = 0x1000, scoped, tag = 'scratch operand']
  #allocation3 [shape = 'f32[16,32]{1,0:T(8,128)}', space=vmem, size = 0x2000, scoped, tag = 'scratch operand']
  %s0 = inlined_call_operand.hbm [shape: bf16[16,32], index: 0, kind: input, shape index: {}]
  %s1 = inlined_call_operand.hbm [shape: f32[1,32], index: 1, kind: input, shape index: {}]
  %s2 = inlined_call_operand.hbm [shape: f32[1,32], index: 2, kind: input, shape index: {}]
  %s3 = inlined_call_operand.hbm [shape: bf16[32,128], index: 3, kind: input, shape index: {}]
  %s4 = inlined_call_operand.hbm [shape: f32[1,128], index: 4, kind: input, shape index: {}]
  %s5 = inlined_call_operand.hbm [shape: bf16[128,32], index: 5, kind: input, shape index: {}]
  %s6 = inlined_call_operand.hbm [shape: f32[1,32], index: 6, kind: input, shape index: {}]
  %s7 = inlined_call_operand.hbm [shape: bf16[16,32], index: 7, kind: output, shape index: {}]
  %s8 = sld [smem:[#allocation0]]
  $region74: #{gpt2_model_pipe_forward.12} parent=0
    _
  %s10 = ssub.s32 1, %s8
  %s11 = scalar_select 0, %s10, %s8
  $region1: #{gpt2_model_pipe_forward.12} parent=0
    #allocation4 [shape = 'u8[4096]{0}', space=vmem, size = 0x1000, scoped, tag = 'input window, operand 0, single buffered']
    #allocation5 [shape = 's32[1]{0}', space=sflag, size = 0x4, scoped, tag = 'scoped memory for gpt2_model_pipe_forward.12']
    #allocation6 [shape = 's32[1]{0}', space=sflag, size = 0x4, scoped, tag = 'scoped memory for gpt2_model_pipe_forward.12']
    #allocation7 [shape = 'u8[512]{0}', space=vmem, size = 0x400, scoped, tag = 'input window, operand 1, single buffered']
    #allocation8 [shape = 's32[1]{0}', space=sflag, size = 0x4, scoped, tag = 'scoped memory for gpt2_model_pipe_forward.12']
    #allocation9 [shape = 'u8[512]{0}', space=vmem, size = 0x400, scoped, tag = 'input window, operand 2, single buffered']
    #allocation10 [shape = 'u8[8192]{0}', space=vmem, size = 0x2000, scoped, tag = 'input window, operand 3, single buffered']
    #allocation11 [shape = 's32[1]{0}', space=sflag, size = 0x4, scoped, tag = 'scoped memory for gpt2_model_pipe_forward.12']
    #allocation12 [shape = 'u8[512]{0}', space=vmem, size = 0x400, scoped, tag = 'input window, operand 4, single buffered']
    #allocation13 [shape = 'u8[32768]{0}', space=vmem, size = 0x8000, scoped, tag = 'input window, operand 5, single buffered']
    #allocation14 [shape = 's32[1]{0}', space=sflag, size = 0x4, scoped, tag = 'scoped memory for gpt2_model_pipe_forward.12']
    #allocation15 [shape = 'u8[512]{0}', space=vmem, size = 0x400, scoped, tag = 'input window, operand 6, single buffered']
    #allocation16 [shape = 'u8[4096]{0}', space=vmem, size = 0x1000, scoped, tag = 'output window, operand 0, single buffered']
    %12 = vsyncpa [#allocation5], 0
    %13 = vsyncpa [#allocation8], 0
    %14 = vsyncpa [#allocation11], 0
    %15 = vsyncpa [#allocation14], 0
    %16 = vsyncpa [#allocation6], 0
    // Predicated region
    $region2: #{gpt2_model_pipe_forward.12} parent=1 // pred_check
      _
    $region3: #{gpt2_model_pipe_forward.12} parent=1 // pred_check_branch
      %18 = sbr.rel (0) target = $region5
    $region4: #{gpt2_model_pipe_forward.12} parent=1 // pred_region
      %s20 = ssub.s32 128, 128
      %21 = vsyncadd [#allocation5], %s20
      %s22 = sshll.u32 [#allocation4], 4
      %s23 = int_to_ptr.vmem [resolvable:$true] %s22
      %28 = dma.hbm_to_vmem [thread:$0]  %s0, 128, %s23, [#allocation5], 64, 64, 4
    $region5: #{gpt2_model_pipe_forward.12} parent=1 // pred_fallthru
      _
    // Predicated region
    $region6: #{gpt2_model_pipe_forward.12} parent=1 // pred_check
      _
    $region7: #{gpt2_model_pipe_forward.12} parent=1 // pred_check_branch
      %30 = sbr.rel (0) target = $region9
    $region8: #{gpt2_model_pipe_forward.12} parent=1 // pred_region
      %s32 = ssub.s32 16, 16
      %33 = vsyncadd [#allocation8], %s32
      %s35 = sshll.u32 [#allocation7], 4
      %s36 = int_to_ptr.vmem [resolvable:$true] %s35
      %38 = dma.hbm_to_vmem [thread:$0]  %s1, 16, %s36, [#allocation8]
    $region9: #{gpt2_model_pipe_forward.12} parent=1 // pred_fallthru
      _
    // Predicated region
    $region10: #{gpt2_model_pipe_forward.12} parent=1 // pred_check
      _
    $region11: #{gpt2_model_pipe_forward.12} parent=1 // pred_check_branch
      %40 = sbr.rel (0) target = $region13
    $region12: #{gpt2_model_pipe_forward.12} parent=1 // pred_region
      %s42 = ssub.s32 16, 16
      %43 = vsyncadd [#allocation8], %s42
      %s45 = sshll.u32 [#allocation9], 4
      %s46 = int_to_ptr.vmem [resolvable:$true] %s45
      %48 = dma.hbm_to_vmem [thread:$0]  %s2, 16, %s46, [#allocation8]
    $region13: #{gpt2_model_pipe_forward.12} parent=1 // pred_fallthru
      _
    // Predicated region
    $region14: #{gpt2_model_pipe_forward.12} parent=1 // pred_check
      _
    $region15: #{gpt2_model_pipe_forward.12} parent=1 // pred_check_branch
      %50 = sbr.rel (0) target = $region17
    $region16: #{gpt2_model_pipe_forward.12} parent=1 // pred_region
      %s52 = ssub.s32 256, 256
      %53 = vsyncadd [#allocation11], %s52
      %s54 = sshll.u32 [#allocation10], 4
      %s55 = int_to_ptr.vmem [resolvable:$true] %s54
      %60 = dma.hbm_to_vmem [thread:$0]  %s3, 256, %s55, [#allocation11], 64, 64, 4
    $region17: #{gpt2_model_pipe_forward.12} parent=1 // pred_fallthru
      _
    // Predicated region
    $region18: #{gpt2_model_pipe_forward.12} parent=1 // pred_check
      _
    $region19: #{gpt2_model_pipe_forward.12} parent=1 // pred_check_branch
      %62 = sbr.rel (0) target = $region21
    $region20: #{gpt2_model_pipe_forward.12} parent=1 // pred_region
      %s64 = ssub.s32 16, 16
      %65 = vsyncadd [#allocation11], %s64
      %s67 = sshll.u32 [#allocation12], 4
      %s68 = int_to_ptr.vmem [resolvable:$true] %s67
      %70 = dma.hbm_to_vmem [thread:$0]  %s4, 16, %s68, [#allocation11]
    $region21: #{gpt2_model_pipe_forward.12} parent=1 // pred_fallthru
      _
    // Predicated region
    $region22: #{gpt2_model_pipe_forward.12} parent=1 // pred_check
      _
    $region23: #{gpt2_model_pipe_forward.12} parent=1 // pred_check_branch
      %72 = sbr.rel (0) target = $region25
    $region24: #{gpt2_model_pipe_forward.12} parent=1 // pred_region
      %s74 = ssub.s32 1024, 1024
      %75 = vsyncadd [#allocation14], %s74
      %s76 = sshll.u32 [#allocation13], 4
      %s77 = int_to_ptr.vmem [resolvable:$true] %s76
      %82 = dma.hbm_to_vmem [thread:$0]  %s5, 1024, %s77, [#allocation14], 64, 64, 4
    $region25: #{gpt2_model_pipe_forward.12} parent=1 // pred_fallthru
      _
    // Predicated region
    $region26: #{gpt2_model_pipe_forward.12} parent=1 // pred_check
      _
    $region27: #{gpt2_model_pipe_forward.12} parent=1 // pred_check_branch
      %84 = sbr.rel (0) target = $region29
    $region28: #{gpt2_model_pipe_forward.12} parent=1 // pred_region
      %s86 = ssub.s32 16, 16
      %87 = vsyncadd [#allocation14], %s86
      %s89 = sshll.u32 [#allocation15], 4
      %s90 = int_to_ptr.vmem [resolvable:$true] %s89
      %92 = dma.hbm_to_vmem [thread:$0]  %s6, 16, %s90, [#allocation14]
    $region29: #{gpt2_model_pipe_forward.12} parent=1 // pred_fallthru
      _
    // Predicated region
    $region30: #{gpt2_model_pipe_forward.12} parent=1 // pred_check
      _
    $region31: #{gpt2_model_pipe_forward.12} parent=1 // pred_check_branch
      %94 = sbr.rel (0) target = $region33
    $region32: #{gpt2_model_pipe_forward.12} parent=1 // pred_region
      %95 = dma.done [#allocation5], 128
    $region33: #{gpt2_model_pipe_forward.12} parent=1 // pred_fallthru
      _
    // Predicated region
    $region34: #{gpt2_model_pipe_forward.12} parent=1 // pred_check
      _
    $region35: #{gpt2_model_pipe_forward.12} parent=1 // pred_check_branch
      %97 = sbr.rel (0) target = $region37
    $region36: #{gpt2_model_pipe_forward.12} parent=1 // pred_region
      %98 = dma.done [#allocation8], 16
    $region37: #{gpt2_model_pipe_forward.12} parent=1 // pred_fallthru
      _
    // Predicated region
    $region38: #{gpt2_model_pipe_forward.12} parent=1 // pred_check
      _
    $region39: #{gpt2_model_pipe_forward.12} parent=1 // pred_check_branch
      %100 = sbr.rel (0) target = $region41
    $region40: #{gpt2_model_pipe_forward.12} parent=1 // pred_region
      %101 = dma.done [#allocation8], 16
    $region41: #{gpt2_model_pipe_forward.12} parent=1 // pred_fallthru
      _
    // Predicated region
    $region42: #{gpt2_model_pipe_forward.12} parent=1 // pred_check
      _
    $region43: #{gpt2_model_pipe_forward.12} parent=1 // pred_check_branch
      %103 = sbr.rel (0) target = $region45
    $region44: #{gpt2_model_pipe_forward.12} parent=1 // pred_region
      %104 = dma.done [#allocation11], 256
    $region45: #{gpt2_model_pipe_forward.12} parent=1 // pred_fallthru
      _
    // Predicated region
    $region46: #{gpt2_model_pipe_forward.12} parent=1 // pred_check
      _
    $region47: #{gpt2_model_pipe_forward.12} parent=1 // pred_check_branch
      %106 = sbr.rel (0) target = $region49
    $region48: #{gpt2_model_pipe_forward.12} parent=1 // pred_region
      %107 = dma.done [#allocation11], 16
    $region49: #{gpt2_model_pipe_forward.12} parent=1 // pred_fallthru
      _
    // Predicated region
    $region50: #{gpt2_model_pipe_forward.12} parent=1 // pred_check
      _
    $region51: #{gpt2_model_pipe_forward.12} parent=1 // pred_check_branch
      %109 = sbr.rel (0) target = $region53
    $region52: #{gpt2_model_pipe_forward.12} parent=1 // pred_region
      %110 = dma.done [#allocation14], 1024
    $region53: #{gpt2_model_pipe_forward.12} parent=1 // pred_fallthru
      _
    // Predicated region
    $region54: #{gpt2_model_pipe_forward.12} parent=1 // pred_check
      _
    $region55: #{gpt2_model_pipe_forward.12} parent=1 // pred_check_branch
      %112 = sbr.rel (0) target = $region57
    $region56: #{gpt2_model_pipe_forward.12} parent=1 // pred_region
      %113 = dma.done [#allocation14], 16
    $region57: #{gpt2_model_pipe_forward.12} parent=1 // pred_fallthru
      _
    %p115 = scmp.eq.s32.totalorder 0, 0
    // Predicated region
    $region58: #{gpt2_model_pipe_forward.12} parent=1 // pred_check
      %p116 = pneg %p115
    $region59: #{gpt2_model_pipe_forward.12} parent=1 // pred_check_branch
      %118 = sbr.rel (%p116) target = $region61
    $region60: #{gpt2_model_pipe_forward.12} parent=1 // pred_region
      %v119 = vld [vmem:[#allocation4] sm:$0xf]
      %v120 = vld [vmem:[#allocation4 + $0x4] sm:$0xf]
      %v121 = vunpack.c.l.bf16 %v119
      %v122 = vunpack.c.l.bf16 %v120
      %v123 = vld [vmem:[#allocation7] sm:$0x1]
      %v124 = vld [vmem:[#allocation9] sm:$0x1]
      %vm125 = vcmask 261120
      %v126 = vsel %vm125, %v121, 0.0
      %127 = vadd.xlane.f32.xlu0 %v126
      %v128 = vpop.xlane.xlu0 %127
      %v129 = vsel %vm125, %v122, 0.0
      %130 = vadd.xlane.f32.xlu0 %v129
      %v131 = vpop.xlane.xlu0 %130
      %v132 = vrcp.pop 32.0
      %v133 = vmul.f32 %v128, %v132
      %v134 = vmul.f32 %v131, %v132
      %v135 = vsub.f32 %v121, %v133
      %v136 = vsub.f32 %v122, %v134
      %v137 = vmul.f32 %v135, %v135
      %v138 = vmul.f32 %v136, %v136
      %v139 = vsel %vm125, %v137, 0.0
      %140 = vadd.xlane.f32.xlu0 %v139
      %v141 = vpop.xlane.xlu0 %140
      %v142 = vsel %vm125, %v138, 0.0
      %143 = vadd.xlane.f32.xlu0 %v142
      %v144 = vpop.xlane.xlu0 %143
      %v145 = vmul.f32 %v141, %v132
      %v146 = vmul.f32 %v144, %v132
      %v147 = vadd.f32 %v145, 1e-05
      %v148 = vadd.f32 %v146, 1e-05
      %v149 = vrsqrt.pop %v147
      %v150 = vrsqrt.pop %v148
      %v151 = vmul.f32 %v135, %v149
      %v152 = vmul.f32 %v136, %v150
      %v154 = vlaneseq
      %v155 = vshrl.u32 %v154, 7
      %v156 = vsub.s32 0, %v155
      %v157 = vrot.slane %v123, %v156
      %v159 = vmul.f32 %v151, %v157
      %v160 = vmul.f32 %v152, %v157
      %v162 = vlaneseq
      %v163 = vshrl.u32 %v162, 7
      %v164 = vsub.s32 0, %v163
      %v165 = vrot.slane %v124, %v164
      %v167 = vadd.f32 %v159, %v165
      %v168 = vadd.f32 %v160, %v165
      %v169 = vpack.c.bf16 %v168, %v167
      %170 = vst.msk [vmem:[#allocation2] sm:$0xff] %vm125, %v169
      %171 = vst.msk [vmem:[#allocation3] sm:$0xff] %vm125, 0.0
      %172 = vst.msk [vmem:[#allocation3 + $0x8] sm:$0xff] %vm125, 0.0
    $region61: #{gpt2_model_pipe_forward.12} parent=1 // pred_fallthru
      _
    %v173 = vld [vmem:[#allocation2] sm:$0xff]
    %v174 = vld [vmem:[#allocation10] sm:$0xf]
    %v175 = vld [vmem:[#allocation10 + $0x4] sm:$0xf]
    %v176 = vld [vmem:[#allocation10 + $0x8] sm:$0xf]
    %v177 = vld [vmem:[#allocation10 + $0xc] sm:$0xf]
    %v178 = vld [vmem:[#allocation12] sm:$0x1]
    %v180 = vlaneseq
    %v181 = vshrl.u32 %v180, 7
    %v182 = vsub.s32 0, %v181
    %v183 = vrot.slane %v178, %v182
    %v189 = vunpack.c.l.b16 %v174
    %v190 = vunpack.c.l.b16 %v175
    %v191 = vunpack.c.l.b16 %v176
    %v192 = vunpack.c.l.b16 %v177
    %v193 = vpack.c.b16 %v190, %v189
    %v194 = vpack.c.b16 %v192, %v191
    %vm197 = vcmask 261120
    %v199 = vsel %vm197, %v173, 0
    %201 = vmatprep.subr.bf16.mxu0 0
    %202 = vmatpush1.bf16.msra.mxu0 %v193
    %203 = vmatprep.subr.bf16.mxu0 0
    %204 = vmatpush1.bf16.msra.mxu0 %v194
    %205 = vmatprep.subr.bf16.mxu0 0
    %206 = vmatpush1.bf16.msra.mxu0 0
    %207 = vmatprep.subr.bf16.mxu0 0
    %208 = vmatpush1.bf16.msra.mxu0 0
    %209 = vmatprep.subr.bf16.mxu0 0
    %210 = vmatpush1.bf16.msra.mxu0 0
    %211 = vmatprep.subr.bf16.mxu0 0
    %212 = vmatpush1.bf16.msra.mxu0 0
    %213 = vmatprep.subr.bf16.mxu0 0
    %214 = vmatpush1.bf16.msra.mxu0 0
    %215 = vmatprep.subr.bf16.mxu0 0
    %216 = vmatpush1.bf16.msra.mxu0 0
    %217 = vmatprep.subr.bf16.mxu0 0
    %218 = vmatpush1.bf16.msra.mxu0 0
    %219 = vmatprep.subr.bf16.mxu0 0
    %220 = vmatpush1.bf16.msra.mxu0 0
    %221 = vmatprep.subr.bf16.mxu0 0
    %222 = vmatpush1.bf16.msra.mxu0 0
    %223 = vmatprep.subr.bf16.mxu0 0
    %224 = vmatpush1.bf16.msra.mxu0 0
    %225 = vmatprep.subr.bf16.mxu0 0
    %226 = vmatpush1.bf16.msra.mxu0 0
    %227 = vmatprep.subr.bf16.mxu0 0
    %228 = vmatpush1.bf16.msra.mxu0 0
    %229 = vmatprep.subr.bf16.mxu0 0
    %230 = vmatpush1.bf16.msra.mxu0 0
    %231 = vmatprep.subr.bf16.mxu0 0
    %232 = vmatpush1.bf16.msra.mxu0 0
    %233 = vmatprep.mubr.bf16.mxu0 0
    %234 = vmatmul.mubr.bf16.gmra.mrb[0].mxu0 %v199
    %v235 = vpop.f32.mrb[0].mxu0
    %v236 = vadd.f32 %v183, %v235
    %v237 = vpop.f32.mrb[0].mxu0
    %v238 = vpop.f32.mrb[0].mxu0
    %v239 = vadd.f32 %v183, %v238
    %v240 = vpop.f32.mrb[0].mxu0
    %241 = vdwg.mxu0
    %v242 = vmul.f32 %v236, %v236
    %v243 = vmul.f32 %v239, %v239
    %v244 = vmul.f32 %v236, %v242
    %v245 = vmul.f32 %v239, %v243
    %v246 = vmul.f32 %v244, 0.044715
    %v247 = vmul.f32 %v245, 0.044715
    %v248 = vadd.f32 %v236, %v246
    %v249 = vadd.f32 %v239, %v247
    %v250 = vmul.f32 %v248, 0.7978846
    %v251 = vmul.f32 %v249, 0.7978846
    %v252 = vtanh.pop %v250
    %v253 = vtanh.pop %v251
    %v254 = vadd.f32 %v252, 1.0
    %v255 = vadd.f32 %v253, 1.0
    %v256 = vmul.f32 %v254, 0.5
    %v257 = vmul.f32 %v255, 0.5
    %v258 = vmul.f32 %v236, %v256
    %v259 = vmul.f32 %v239, %v257
    %v260 = vpack.c.bf16 %v259, %v258
    %v261 = vld [vmem:[#allocation3] sm:$0xff]
    %v262 = vld [vmem:[#allocation3 + $0x8] sm:$0xff]
    %v263 = vld [vmem:[#allocation13] sm:$0xf]
    %v264 = vld [vmem:[#allocation13 + $0x4] sm:$0xf]
    %v265 = vld [vmem:[#allocation13 + $0x8] sm:$0xf]
    %v266 = vld [vmem:[#allocation13 + $0xc] sm:$0xf]
    %v267 = vld [vmem:[#allocation13 + $0x10] sm:$0xf]
    %v268 = vld [vmem:[#allocation13 + $0x14] sm:$0xf]
    %v269 = vld [vmem:[#allocation13 + $0x18] sm:$0xf]
    %v270 = vld [vmem:[#allocation13 + $0x1c] sm:$0xf]
    %v271 = vld [vmem:[#allocation13 + $0x20] sm:$0xf]
    %v272 = vld [vmem:[#allocation13 + $0x24] sm:$0xf]
    %v273 = vld [vmem:[#allocation13 + $0x28] sm:$0xf]
    %v274 = vld [vmem:[#allocation13 + $0x2c] sm:$0xf]
    %v275 = vld [vmem:[#allocation13 + $0x30] sm:$0xf]
    %v276 = vld [vmem:[#allocation13 + $0x34] sm:$0xf]
    %v277 = vld [vmem:[#allocation13 + $0x38] sm:$0xf]
    %v278 = vld [vmem:[#allocation13 + $0x3c] sm:$0xf]
    %v295 = vunpack.c.l.b16 %v263
    %v296 = vunpack.c.l.b16 %v264
    %v297 = vunpack.c.l.b16 %v265
    %v298 = vunpack.c.l.b16 %v266
    %v299 = vunpack.c.l.b16 %v267
    %v300 = vunpack.c.l.b16 %v268
    %v301 = vunpack.c.l.b16 %v269
    %v302 = vunpack.c.l.b16 %v270
    %v303 = vunpack.c.l.b16 %v271
    %v304 = vunpack.c.l.b16 %v272
    %v305 = vunpack.c.l.b16 %v273
    %v306 = vunpack.c.l.b16 %v274
    %v307 = vunpack.c.l.b16 %v275
    %v308 = vunpack.c.l.b16 %v276
    %v309 = vunpack.c.l.b16 %v277
    %v310 = vunpack.c.l.b16 %v278
    %v311 = vpack.c.b16 %v296, %v295
    %v312 = vpack.c.b16 %v298, %v297
    %v313 = vpack.c.b16 %v300, %v299
    %v314 = vpack.c.b16 %v302, %v301
    %v315 = vpack.c.b16 %v304, %v303
    %v316 = vpack.c.b16 %v306, %v305
    %v317 = vpack.c.b16 %v308, %v307
    %v318 = vpack.c.b16 %v310, %v309
    %327 = vmatprep.subr.bf16.mxu0 0
    %328 = vmatpush1.bf16.msra.mxu0 %v311
    %329 = vmatprep.subr.bf16.mxu0 0
    %330 = vmatpush1.bf16.msra.mxu0 %v312
    %331 = vmatprep.subr.bf16.mxu0 0
    %332 = vmatpush1.bf16.msra.mxu0 %v313
    %333 = vmatprep.subr.bf16.mxu0 0
    %334 = vmatpush1.bf16.msra.mxu0 %v314
    %335 = vmatprep.subr.bf16.mxu0 0
    %336 = vmatpush1.bf16.msra.mxu0 %v315
    %337 = vmatprep.subr.bf16.mxu0 0
    %338 = vmatpush1.bf16.msra.mxu0 %v316
    %339 = vmatprep.subr.bf16.mxu0 0
    %340 = vmatpush1.bf16.msra.mxu0 %v317
    %341 = vmatprep.subr.bf16.mxu0 0
    %342 = vmatpush1.bf16.msra.mxu0 %v318
    %343 = vmatprep.subr.bf16.mxu0 0
    %344 = vmatpush1.bf16.msra.mxu0 0
    %345 = vmatprep.subr.bf16.mxu0 0
    %346 = vmatpush1.bf16.msra.mxu0 0
    %347 = vmatprep.subr.bf16.mxu0 0
    %348 = vmatpush1.bf16.msra.mxu0 0
    %349 = vmatprep.subr.bf16.mxu0 0
    %350 = vmatpush1.bf16.msra.mxu0 0
    %351 = vmatprep.subr.bf16.mxu0 0
    %352 = vmatpush1.bf16.msra.mxu0 0
    %353 = vmatprep.subr.bf16.mxu0 0
    %354 = vmatpush1.bf16.msra.mxu0 0
    %355 = vmatprep.subr.bf16.mxu0 0
    %356 = vmatpush1.bf16.msra.mxu0 0
    %357 = vmatprep.subr.bf16.mxu0 0
    %358 = vmatpush1.bf16.msra.mxu0 0
    %359 = vmatprep.mubr.bf16.mxu0 0
    %360 = vmatmul.mubr.bf16.gmra.mrb[0].mxu0 %v260
    %v361 = vpop.f32.mrb[0].mxu0
    %v362 = vadd.f32 0.0, %v361
    %v363 = vpop.f32.mrb[0].mxu0
    %v364 = vpop.f32.mrb[0].mxu0
    %v365 = vadd.f32 0.0, %v364
    %v366 = vpop.f32.mrb[0].mxu0
    %367 = vdwg.mxu0
    %v368 = vadd.f32 %v261, %v362
    %v369 = vadd.f32 %v262, %v365
    %370 = vst.msk [vmem:[#allocation3] sm:$0xff] %vm197, %v368
    %371 = vst.msk [vmem:[#allocation3 + $0x8] sm:$0xff] %vm197, %v369
    // Predicated region
    $region62: #{gpt2_model_pipe_forward.12} parent=1 // pred_check
      %p372 = pneg %p115
    $region63: #{gpt2_model_pipe_forward.12} parent=1 // pred_check_branch
      %374 = sbr.rel (%p372) target = $region65
    $region64: #{gpt2_model_pipe_forward.12} parent=1 // pred_region
      %v375 = vld [vmem:[#allocation3] sm:$0xff]
      %v376 = vld [vmem:[#allocation3 + $0x8] sm:$0xff]
      %v377 = vld [vmem:[#allocation15] sm:$0x1]
      %v379 = vlaneseq
      %v380 = vshrl.u32 %v379, 7
      %v381 = vsub.s32 0, %v380
      %v382 = vrot.slane %v377, %v381
      %v384 = vadd.f32 %v375, %v382
      %v385 = vadd.f32 %v376, %v382
      %v386 = vld [vmem:[#allocation4] sm:$0xf]
      %v387 = vld [vmem:[#allocation4 + $0x4] sm:$0xf]
      %v388 = vunpack.c.l.bf16 %v386
      %v389 = vunpack.c.l.bf16 %v387
      %v390 = vadd.f32 %v384, %v388
      %v391 = vadd.f32 %v385, %v389
      %v392 = vpack.c.bf16 %v391, %v390
      %v394 = vunpack.c.l.b16 %v392
      %v395 = vunpack.c.h.b16 %v392
      %v396 = vpack.c.b16 %v394, %v394
      %v397 = vpack.c.b16 %v395, %v395
      %vm400 = vcmask 257024
      %401 = vst.msk [vmem:[#allocation16] sm:$0xf] %vm400, %v396
      %402 = vst.msk [vmem:[#allocation16 + $0x4] sm:$0xf] %vm400, %v397
    $region65: #{gpt2_model_pipe_forward.12} parent=1 // pred_fallthru
      _
    // Predicated region
    $region66: #{gpt2_model_pipe_forward.12} parent=1 // pred_check
      _
    $region67: #{gpt2_model_pipe_forward.12} parent=1 // pred_check_branch
      %404 = sbr.rel (0) target = $region69
    $region68: #{gpt2_model_pipe_forward.12} parent=1 // pred_region
      %s406 = ssub.s32 128, 128
      %407 = vsyncadd [#allocation6], %s406
      %s408 = sshll.u32 [#allocation16], 4
      %s409 = int_to_ptr.vmem [resolvable:$true] %s408
      %414 = dma.vmem_to_hbm [thread:$0]  %s409, 128, %s7, [#allocation6], 64, 64, 4
    $region69: #{gpt2_model_pipe_forward.12} parent=1 // pred_fallthru
      _
    // Predicated region
    $region70: #{gpt2_model_pipe_forward.12} parent=1 // pred_check
      _
    $region71: #{gpt2_model_pipe_forward.12} parent=1 // pred_check_branch
      %416 = sbr.rel (0) target = $region73
    $region72: #{gpt2_model_pipe_forward.12} parent=1 // pred_region
      %417 = dma.done [#allocation6], 128
    $region73: #{gpt2_model_pipe_forward.12} parent=1 // pred_fallthru
      _
    %418 = vsyncpa [#allocation5], 1
    %419 = vsyncpa [#allocation8], 1
    %420 = vsyncpa [#allocation11], 1
    %421 = vsyncpa [#allocation14], 1
    %422 = vsyncpa [#allocation6], 1

// kernel: gpt2_model_pipe_forward.17
$region0: #{gpt2_model_pipe_forward.17}
  #allocation0 [shape = 'u32[]', space=smem, size = 0x4, offset = 0x4, fixed_abs, tag = 'smem constant byte address 0x4 - core index']
  #allocation1 [shape = 'u32[144,128]{1,0:T(1,128)}', space=vmem, size = 0x12000, scoped, tag = 'internal scratch']
  #allocation2 [shape = 'bf16[16,32]{1,0:T(16,128)(2,1)}', space=vmem, size = 0x1000, scoped, tag = 'scratch operand']
  %s0 = inlined_call_operand.hbm [shape: bf16[16,32], index: 0, kind: input, shape index: {}]
  %s1 = inlined_call_operand.hbm [shape: f32[1,32], index: 1, kind: input, shape index: {}]
  %s2 = inlined_call_operand.hbm [shape: f32[1,32], index: 2, kind: input, shape index: {}]
  %s3 = inlined_call_operand.hbm [shape: bf16[64,32], index: 3, kind: input, shape index: {}]
  %s4 = inlined_call_operand.hbm [shape: f32[16,64], index: 4, kind: output, shape index: {}]
  %s5 = sld [smem:[#allocation0]]
  $region46: #{gpt2_model_pipe_forward.17} parent=0
    _
  %s7 = ssub.s32 1, %s5
  %s8 = scalar_select 0, %s7, %s5
  $region1: #{gpt2_model_pipe_forward.17} parent=0
    #allocation3 [shape = 'u8[4096]{0}', space=vmem, size = 0x1000, scoped, tag = 'input window, operand 0, single buffered']
    #allocation4 [shape = 's32[1]{0}', space=sflag, size = 0x4, scoped, tag = 'scoped memory for gpt2_model_pipe_forward.17']
    #allocation5 [shape = 's32[1]{0}', space=sflag, size = 0x4, scoped, tag = 'scoped memory for gpt2_model_pipe_forward.17']
    #allocation6 [shape = 'u8[512]{0}', space=vmem, size = 0x400, scoped, tag = 'input window, operand 1, single buffered']
    #allocation7 [shape = 's32[1]{0}', space=sflag, size = 0x4, scoped, tag = 'scoped memory for gpt2_model_pipe_forward.17']
    #allocation8 [shape = 'u8[512]{0}', space=vmem, size = 0x400, scoped, tag = 'input window, operand 2, single buffered']
    #allocation9 [shape = 'u8[16384]{0}', space=vmem, size = 0x4000, scoped, tag = 'input window, operand 3, single buffered']
    #allocation10 [shape = 's32[1]{0}', space=sflag, size = 0x4, scoped, tag = 'scoped memory for gpt2_model_pipe_forward.17']
    #allocation11 [shape = 'u8[8192]{0}', space=vmem, size = 0x2000, scoped, tag = 'output window, operand 0, single buffered']
    %9 = vsyncpa [#allocation4], 0
    %10 = vsyncpa [#allocation7], 0
    %11 = vsyncpa [#allocation10], 0
    %12 = vsyncpa [#allocation5], 0
    // Predicated region
    $region2: #{gpt2_model_pipe_forward.17} parent=1 // pred_check
      _
    $region3: #{gpt2_model_pipe_forward.17} parent=1 // pred_check_branch
      %14 = sbr.rel (0) target = $region5
    $region4: #{gpt2_model_pipe_forward.17} parent=1 // pred_region
      %s16 = ssub.s32 128, 128
      %17 = vsyncadd [#allocation4], %s16
      %s18 = sshll.u32 [#allocation3], 4
      %s19 = int_to_ptr.vmem [resolvable:$true] %s18
      %24 = dma.hbm_to_vmem [thread:$0]  %s0, 128, %s19, [#allocation4], 64, 64, 4
    $region5: #{gpt2_model_pipe_forward.17} parent=1 // pred_fallthru
      _
    // Predicated region
    $region6: #{gpt2_model_pipe_forward.17} parent=1 // pred_check
      _
    $region7: #{gpt2_model_pipe_forward.17} parent=1 // pred_check_branch
      %26 = sbr.rel (0) target = $region9
    $region8: #{gpt2_model_pipe_forward.17} parent=1 // pred_region
      %s28 = ssub.s32 16, 16
      %29 = vsyncadd [#allocation7], %s28
      %s31 = sshll.u32 [#allocation6], 4
      %s32 = int_to_ptr.vmem [resolvable:$true] %s31
      %34 = dma.hbm_to_vmem [thread:$0]  %s1, 16, %s32, [#allocation7]
    $region9: #{gpt2_model_pipe_forward.17} parent=1 // pred_fallthru
      _
    // Predicated region
    $region10: #{gpt2_model_pipe_forward.17} parent=1 // pred_check
      _
    $region11: #{gpt2_model_pipe_forward.17} parent=1 // pred_check_branch
      %36 = sbr.rel (0) target = $region13
    $region12: #{gpt2_model_pipe_forward.17} parent=1 // pred_region
      %s38 = ssub.s32 16, 16
      %39 = vsyncadd [#allocation7], %s38
      %s41 = sshll.u32 [#allocation8], 4
      %s42 = int_to_ptr.vmem [resolvable:$true] %s41
      %44 = dma.hbm_to_vmem [thread:$0]  %s2, 16, %s42, [#allocation7]
    $region13: #{gpt2_model_pipe_forward.17} parent=1 // pred_fallthru
      _
    // Predicated region
    $region14: #{gpt2_model_pipe_forward.17} parent=1 // pred_check
      _
    $region15: #{gpt2_model_pipe_forward.17} parent=1 // pred_check_branch
      %46 = sbr.rel (0) target = $region17
    $region16: #{gpt2_model_pipe_forward.17} parent=1 // pred_region
      %s48 = ssub.s32 512, 512
      %49 = vsyncadd [#allocation10], %s48
      %s50 = sshll.u32 [#allocation9], 4
      %s51 = int_to_ptr.vmem [resolvable:$true] %s50
      %56 = dma.hbm_to_vmem [thread:$0]  %s3, 512, %s51, [#allocation10], 64, 64, 4
    $region17: #{gpt2_model_pipe_forward.17} parent=1 // pred_fallthru
      _
    // Predicated region
    $region18: #{gpt2_model_pipe_forward.17} parent=1 // pred_check
      _
    $region19: #{gpt2_model_pipe_forward.17} parent=1 // pred_check_branch
      %58 = sbr.rel (0) target = $region21
    $region20: #{gpt2_model_pipe_forward.17} parent=1 // pred_region
      %59 = dma.done [#allocation4], 128
    $region21: #{gpt2_model_pipe_forward.17} parent=1 // pred_fallthru
      _
    // Predicated region
    $region22: #{gpt2_model_pipe_forward.17} parent=1 // pred_check
      _
    $region23: #{gpt2_model_pipe_forward.17} parent=1 // pred_check_branch
      %61 = sbr.rel (0) target = $region25
    $region24: #{gpt2_model_pipe_forward.17} parent=1 // pred_region
      %62 = dma.done [#allocation7], 16
    $region25: #{gpt2_model_pipe_forward.17} parent=1 // pred_fallthru
      _
    // Predicated region
    $region26: #{gpt2_model_pipe_forward.17} parent=1 // pred_check
      _
    $region27: #{gpt2_model_pipe_forward.17} parent=1 // pred_check_branch
      %64 = sbr.rel (0) target = $region29
    $region28: #{gpt2_model_pipe_forward.17} parent=1 // pred_region
      %65 = dma.done [#allocation7], 16
    $region29: #{gpt2_model_pipe_forward.17} parent=1 // pred_fallthru
      _
    // Predicated region
    $region30: #{gpt2_model_pipe_forward.17} parent=1 // pred_check
      _
    $region31: #{gpt2_model_pipe_forward.17} parent=1 // pred_check_branch
      %67 = sbr.rel (0) target = $region33
    $region32: #{gpt2_model_pipe_forward.17} parent=1 // pred_region
      %68 = dma.done [#allocation10], 512
    $region33: #{gpt2_model_pipe_forward.17} parent=1 // pred_fallthru
      _
    %p70 = scmp.eq.s32.totalorder 0, 0
    // Predicated region
    $region34: #{gpt2_model_pipe_forward.17} parent=1 // pred_check
      %p71 = pneg %p70
    $region35: #{gpt2_model_pipe_forward.17} parent=1 // pred_check_branch
      %73 = sbr.rel (%p71) target = $region37
    $region36: #{gpt2_model_pipe_forward.17} parent=1 // pred_region
      %v74 = vld [vmem:[#allocation3] sm:$0xf]
      %v75 = vld [vmem:[#allocation3 + $0x4] sm:$0xf]
      %v76 = vunpack.c.l.bf16 %v74
      %v77 = vunpack.c.l.bf16 %v75
      %v78 = vld [vmem:[#allocation6] sm:$0x1]
      %v79 = vld [vmem:[#allocation8] sm:$0x1]
      %vm80 = vcmask 261120
      %v81 = vsel %vm80, %v76, 0.0
      %82 = vadd.xlane.f32.xlu0 %v81
      %v83 = vpop.xlane.xlu0 %82
      %v84 = vsel %vm80, %v77, 0.0
      %85 = vadd.xlane.f32.xlu0 %v84
      %v86 = vpop.xlane.xlu0 %85
      %v87 = vrcp.pop 32.0
      %v88 = vmul.f32 %v83, %v87
      %v89 = vmul.f32 %v86, %v87
      %v90 = vsub.f32 %v76, %v88
      %v91 = vsub.f32 %v77, %v89
      %v92 = vmul.f32 %v90, %v90
      %v93 = vmul.f32 %v91, %v91
      %v94 = vsel %vm80, %v92, 0.0
      %95 = vadd.xlane.f32.xlu0 %v94
      %v96 = vpop.xlane.xlu0 %95
      %v97 = vsel %vm80, %v93, 0.0
      %98 = vadd.xlane.f32.xlu0 %v97
      %v99 = vpop.xlane.xlu0 %98
      %v100 = vmul.f32 %v96, %v87
      %v101 = vmul.f32 %v99, %v87
      %v102 = vadd.f32 %v100, 1e-05
      %v103 = vadd.f32 %v101, 1e-05
      %v104 = vrsqrt.pop %v102
      %v105 = vrsqrt.pop %v103
      %v106 = vmul.f32 %v90, %v104
      %v107 = vmul.f32 %v91, %v105
      %v109 = vlaneseq
      %v110 = vshrl.u32 %v109, 7
      %v111 = vsub.s32 0, %v110
      %v112 = vrot.slane %v78, %v111
      %v114 = vmul.f32 %v106, %v112
      %v115 = vmul.f32 %v107, %v112
      %v117 = vlaneseq
      %v118 = vshrl.u32 %v117, 7
      %v119 = vsub.s32 0, %v118
      %v120 = vrot.slane %v79, %v119
      %v122 = vadd.f32 %v114, %v120
      %v123 = vadd.f32 %v115, %v120
      %v124 = vpack.c.bf16 %v123, %v122
      %125 = vst.msk [vmem:[#allocation2] sm:$0xff] %vm80, %v124
    $region37: #{gpt2_model_pipe_forward.17} parent=1 // pred_fallthru
      _
    %v126 = vld [vmem:[#allocation2] sm:$0xff]
    %v127 = vld [vmem:[#allocation9] sm:$0xf]
    %v128 = vld [vmem:[#allocation9 + $0x4] sm:$0xf]
    %v129 = vld [vmem:[#allocation9 + $0x8] sm:$0xf]
    %v130 = vld [vmem:[#allocation9 + $0xc] sm:$0xf]
    %v131 = vld [vmem:[#allocation9 + $0x10] sm:$0xf]
    %v132 = vld [vmem:[#allocation9 + $0x14] sm:$0xf]
    %v133 = vld [vmem:[#allocation9 + $0x18] sm:$0xf]
    %v134 = vld [vmem:[#allocation9 + $0x1c] sm:$0xf]
    %v143 = vunpack.c.l.b16 %v127
    %v144 = vunpack.c.l.b16 %v128
    %v145 = vunpack.c.l.b16 %v129
    %v146 = vunpack.c.l.b16 %v130
    %v147 = vunpack.c.l.b16 %v131
    %v148 = vunpack.c.l.b16 %v132
    %v149 = vunpack.c.l.b16 %v133
    %v150 = vunpack.c.l.b16 %v134
    %v151 = vpack.c.b16 %v144, %v143
    %v152 = vpack.c.b16 %v146, %v145
    %v153 = vpack.c.b16 %v148, %v147
    %v154 = vpack.c.b16 %v150, %v149
    %vm155 = vcmask 261120
    %v157 = vsel %vm155, %v126, 0
    %v160 = vsel %vm155, %v151, 0
    %v163 = vsel %vm155, %v152, 0
    %v166 = vsel %vm155, %v153, 0
    %v169 = vsel %vm155, %v154, 0
    %171 = vmatprep.subr.bf16.mxu0 0
    %172 = vmatpush1.bf16.xpose.msra.mxu0 %v160
    %173 = vmatprep.subr.bf16.mxu0 0
    %174 = vmatpush1.bf16.xpose.msra.mxu0 %v163
    %175 = vmatprep.subr.bf16.mxu0 0
    %176 = vmatpush1.bf16.xpose.msra.mxu0 %v166
    %177 = vmatprep.subr.bf16.mxu0 0
    %178 = vmatpush1.bf16.xpose.msra.mxu0 %v169
    %179 = vmatprep.subr.bf16.mxu0 0
    %180 = vmatpush1.bf16.xpose.msra.mxu0 0
    %181 = vmatprep.subr.bf16.mxu0 0
    %182 = vmatpush1.bf16.xpose.msra.mxu0 0
    %183 = vmatprep.subr.bf16.mxu0 0
    %184 = vmatpush1.bf16.xpose.msra.mxu0 0
    %185 = vmatprep.subr.bf16.mxu0 0
    %186 = vmatpush1.bf16.xpose.msra.mxu0 0
    %187 = vmatprep.subr.bf16.mxu0 0
    %188 = vmatpush1.bf16.xpose.msra.mxu0 0
    %189 = vmatprep.subr.bf16.mxu0 0
    %190 = vmatpush1.bf16.xpose.msra.mxu0 0
    %191 = vmatprep.subr.bf16.mxu0 0
    %192 = vmatpush1.bf16.xpose.msra.mxu0 0
    %193 = vmatprep.subr.bf16.mxu0 0
    %194 = vmatpush1.bf16.xpose.msra.mxu0 0
    %195 = vmatprep.subr.bf16.mxu0 0
    %196 = vmatpush1.bf16.xpose.msra.mxu0 0
    %197 = vmatprep.subr.bf16.mxu0 0
    %198 = vmatpush1.bf16.xpose.msra.mxu0 0
    %199 = vmatprep.subr.bf16.mxu0 0
    %200 = vmatpush1.bf16.xpose.msra.mxu0 0
    %201 = vmatprep.subr.bf16.mxu0 0
    %202 = vmatpush1.bf16.xpose.msra.mxu0 0
    %203 = vmatprep.mubr.bf16.mxu0 0
    %204 = vmatmul.mubr.bf16.gmra.mrb[0].mxu0 %v157
    %v205 = vpop.f32.mrb[0].mxu0
    %v206 = vadd.f32 0.0, %v205
    %v207 = vpop.f32.mrb[0].mxu0
    %v208 = vpop.f32.mrb[0].mxu0
    %v209 = vadd.f32 0.0, %v208
    %v210 = vpop.f32.mrb[0].mxu0
    %211 = vdwg.mxu0
    %vm212 = vcmask 523264
    %213 = vst.msk [vmem:[#allocation11] sm:$0xff] %vm212, %v206
    %214 = vst.msk [vmem:[#allocation11 + $0x8] sm:$0xff] %vm212, %v209
    // Predicated region
    $region38: #{gpt2_model_pipe_forward.17} parent=1 // pred_check
      _
    $region39: #{gpt2_model_pipe_forward.17} parent=1 // pred_check_branch
      %216 = sbr.rel (0) target = $region41
    $region40: #{gpt2_model_pipe_forward.17} parent=1 // pred_region
      %s218 = ssub.s32 256, 256
      %219 = vsyncadd [#allocation5], %s218
      %s220 = sshll.u32 [#allocation11], 4
      %s221 = int_to_ptr.vmem [resolvable:$true] %s220
      %226 = dma.vmem_to_hbm [thread:$0]  %s221, 256, %s4, [#allocation5], 128, 128, 8
    $region41: #{gpt2_model_pipe_forward.17} parent=1 // pred_fallthru
      _
    // Predicated region
    $region42: #{gpt2_model_pipe_forward.17} parent=1 // pred_check
      _
    $region43: #{gpt2_model_pipe_forward.17} parent=1 // pred_check_branch
      %228 = sbr.rel (0) target = $region45
    $region44: #{gpt2_model_pipe_forward.17} parent=1 // pred_region
      %229 = dma.done [#allocation5], 256
    $region45: #{gpt2_model_pipe_forward.17} parent=1 // pred_fallthru
      _
    %230 = vsyncpa [#allocation4], 1
    %231 = vsyncpa [#allocation7], 1
    %232 = vsyncpa [#allocation10], 1
    %233 = vsyncpa [#allocation5], 1

</llo_original>
